<compile_context>
chip_gen: v7x
topology: tpu7x:2x2x1
jax: 0.10.0
libtpu: 0.0.40
codegen_flags: <defaults>
</compile_context>

<pallas_src>
import functools
import math

import jax
import jax.numpy as jnp
from jax import lax
from jax.scipy.special import logsumexp
from jax.experimental import pallas as pl
from jax.experimental.pallas import tpu as pltpu


# --------------------------------------------------------------------------
# Pallas kernel: cost matrix + Sinkhorn loop + transport apply, per batch block
# --------------------------------------------------------------------------
def _ot_resampler_kernel(state_ref, logw_ref, out_ref, *,
                         regularisation, decay_rate, min_update_size, max_iterations):
    bb, n, d = state_ref.shape
    x = state_ref[...].astype(jnp.float32)            # (bb, N, D)  native dtype in HBM
    logw = logw_ref[...].astype(jnp.float32)          # (bb, 1, N)  lane-dense log-weights

    # ---- normalised log-weights (log a) and uniform log b ------------------------------
    m_w = jnp.max(logw, axis=-1, keepdims=True)
    log_a = logw - (m_w + jnp.log(jnp.sum(jnp.exp(logw - m_w), axis=-1, keepdims=True)))
    log_b = jnp.float32(-math.log(n))

    # ---- centre + scale (detached in the torch original; forward-identical) ------------
    mean = jnp.mean(x, axis=-2, keepdims=True)                         # (bb,1,D)
    centred = x - mean
    var = jnp.mean(centred * centred, axis=-2, keepdims=True)          # biased std
    diam = jnp.max(jnp.sqrt(var), axis=-1, keepdims=True)              # (bb,1,1)
    diam = jnp.where(diam == 0.0, jnp.float32(1.0), diam)
    xs = centred / (diam * jnp.float32(math.sqrt(d)))                  # (bb,N,D)

    # ---- cost matrix: one MXU pass + O(N) squared-norm vectors --------------------------
    cross = jnp.einsum('bjd,bid->bji', xs, xs,
                       preferred_element_type=jnp.float32,
                       precision=lax.Precision.HIGHEST)                # (bb,N,N), symmetric
    sq_col = jnp.sum(xs * xs, axis=-1, keepdims=True)                  # (bb,N,1)
    sq_row = jnp.swapaxes(sq_col, -1, -2)                              # (bb,1,N) O(N) XLU
    cost = jnp.maximum(sq_col + sq_row - 2.0 * cross, 0.0)             # (bb,N,N)

    # ---- per-batch extent -> initial regularisation -------------------------------------
    mx = jnp.max(jnp.max(xs, axis=-1, keepdims=True), axis=-2, keepdims=True)
    mn = jnp.min(jnp.min(xs, axis=-1, keepdims=True), axis=-2, keepdims=True)
    eps0 = jnp.maximum(jnp.float32(regularisation), mx - mn)           # (bb,1,1)

    # ---- Sinkhorn loop (log domain, eps decay, per-row freeze, early global exit) -------
    f0 = jnp.zeros((bb, 1, n), jnp.float32)      # potential on the weighted measure (cols i)
    g0 = jnp.zeros((bb, n, 1), jnp.float32)      # potential on the uniform measure  (rows j)
    done0 = jnp.zeros((bb, 1, 1), jnp.float32)
    min_upd = jnp.float32(min_update_size)
    reg = jnp.float32(regularisation)
    decay = jnp.float32(decay_rate)

    def cond(carry):
        it, _, _, _, _, _, running = carry
        return jnp.logical_and(it < max_iterations, running > 0)

    def body(carry):
        it, f, g, eps, eps_used, done, _ = carry
        inv_eps = jnp.float32(1.0) / eps                               # (bb,1,1)
        c_scaled = cost * inv_eps                                      # 1 N^2 mul / iter
        # f_i <- -eps * logsumexp_j[(g_j - C_ji)/eps + log b]   (reduce over sublanes j)
        t1 = (g * inv_eps + log_b) - c_scaled                          # (bb,N,N)
        m1 = jnp.max(t1, axis=-2, keepdims=True)
        f_new = -eps * (m1 + jnp.log(jnp.sum(jnp.exp(t1 - m1), axis=-2, keepdims=True)))
        # g_j <- -eps * logsumexp_i[(f_i - C_ji)/eps + log a_i] (reduce over lanes i)
        t2 = (f_new * inv_eps + log_a) - c_scaled                      # (bb,N,N)
        m2 = jnp.max(t2, axis=-1, keepdims=True)
        g_new = -eps * (m2 + jnp.log(jnp.sum(jnp.exp(t2 - m2), axis=-1, keepdims=True)))

        upd = jnp.maximum(jnp.max(jnp.abs(f_new - f), axis=-1, keepdims=True),
                          jnp.max(jnp.abs(g_new - g), axis=-2, keepdims=True))   # (bb,1,1)
        keep = done > 0.5
        f = jnp.where(keep, f, f_new)
        g = jnp.where(keep, g, g_new)
        eps_used = jnp.where(keep, eps_used, eps)
        done = jnp.maximum(done, (upd < min_upd).astype(jnp.float32))
        running = (jnp.min(done) < 0.5).astype(jnp.int32)              # scalar: any row left?
        eps = jnp.maximum(reg, eps * decay)
        return it + jnp.int32(1), f, g, eps, eps_used, done, running

    carry0 = (jnp.int32(0), f0, g0, eps0, eps0, done0, jnp.int32(1))
    _, f, g, _, eps_used, _, _ = lax.while_loop(cond, body, carry0)

    # ---- transport (rows = new/uniform index j, cols = old/weighted index i) ------------
    log_t = (g + f - cost) * (jnp.float32(1.0) / eps_used) + log_a + log_b
    transport = jnp.exp(log_t)                                         # (bb,N,N)
    new_state = jnp.float32(n) * jnp.einsum('bji,bid->bjd', transport, x,
                                            preferred_element_type=jnp.float32,
                                            precision=lax.Precision.HIGHEST)
    out_ref[...] = new_state.astype(out_ref.dtype)


def _vmem_limit_bytes():
    """Generation-aware scoped-VMEM limit: ~3/4 of physical VMEM, capped at 100 MiB."""
    cap = 64 * 1024 * 1024
    try:
        info = pltpu.get_tpu_info()
        cap = int(getattr(info, "vmem_capacity_bytes", cap) or cap)
    except Exception:
        pass
    return int(min(cap * 3 // 4, 100 * 1024 * 1024))


def optimal_transport_resample(state, weight, *, regularisation, decay_rate,
                               min_update_size, max_iterations, batch_block=1):
    """Pallas call: OT-resampled particles. state (B,N,D), weight = log-weights (B,N).

    batch_block defaults to 1: grid steps run sequentially per TensorCore, so larger blocks
    only amortise ~0.35us/step while multiplying VMEM pressure and forcing every row in the
    block to run until the slowest row converges (defeating the while_loop early exit).
    """
    B, N, D = state.shape
    bb = int(batch_block)
    assert B % bb == 0, (B, bb)
    logw = weight.reshape(B, 1, N)          # lane-dense particle axis, native dtype

    kernel = functools.partial(
        _ot_resampler_kernel,
        regularisation=float(regularisation), decay_rate=float(decay_rate),
        min_update_size=float(min_update_size), max_iterations=int(max_iterations))

    iters = int(max_iterations)
    cost_est = pl.CostEstimate(
        flops=int(B * (4 * N * N * D + 6 * N * N * iters)),
        transcendentals=int(B * N * N * (2 * iters + 1)),
        bytes_accessed=int(2 * B * N * D * state.dtype.itemsize
                           + B * N * weight.dtype.itemsize))

    return pl.pallas_call(
        kernel,
        out_shape=jax.ShapeDtypeStruct((B, N, D), state.dtype),
        grid_spec=pltpu.PrefetchScalarGridSpec(
            num_scalar_prefetch=0,
            grid=(B // bb,),
            in_specs=[pl.BlockSpec((bb, N, D), lambda b: (b, 0, 0)),   # state
                      pl.BlockSpec((bb, 1, N), lambda b: (b, 0, 0))],  # log-weights
            out_specs=pl.BlockSpec((bb, N, D), lambda b: (b, 0, 0)),
        ),
        compiler_params=pltpu.CompilerParams(
            dimension_semantics=("parallel",),
            vmem_limit_bytes=_vmem_limit_bytes()),
        cost_estimate=cost_est,
    )(state, logw)


# --------------------------------------------------------------------------
# Module wrapper (forward only)
# --------------------------------------------------------------------------
class OptimalTransportResampler:
    """JAX/Pallas port of pydpf's OptimalTransportResampler (forward pass)."""

    def __init__(self, regularisation, decay_rate, min_update_size, max_iterations,
                 transport_gradient_clip):
        self.cache = {}
        self.regularisation = float(regularisation)
        self.decay_rate = float(decay_rate)
        self.min_update_size = float(min_update_size)
        self.max_iterations = int(max_iterations)
        self.transport_gradient_clip = float(transport_gradient_clip)
        self._need_weight_output = True

    def __call__(self, state, weight):
        B, N, D = state.shape
        new_state = optimal_transport_resample(
            state, weight,
            regularisation=self.regularisation, decay_rate=self.decay_rate,
            min_update_size=self.min_update_size, max_iterations=self.max_iterations)
        self.cache['used_weight'] = weight
        # TODO(synk): backward-pass transport-gradient clipping (OTGradientWrapper) needs a
        # jax.custom_vjp around the pallas_call; forward semantics are unaffected.
        if self._need_weight_output:
            new_weight = jnp.full(weight.shape, -math.log(N), dtype=weight.dtype)
            return new_state, new_weight
        return new_state


# --------------------------------------------------------------------------
# Pure-JAX reference for the Pallas pipeline (correctness check)
# --------------------------------------------------------------------------
def _ot_resample_reference(state, weight, regularisation, decay_rate,
                           min_update_size, max_iterations):
    x = state.astype(jnp.float32)
    B, N, D = x.shape
    log_a = jax.nn.log_softmax(weight.astype(jnp.float32), axis=-1)    # (B,N)
    log_b = -math.log(N)
    mean = jnp.mean(x, axis=1, keepdims=True)
    c = x - mean
    std = jnp.sqrt(jnp.mean(c * c, axis=1, keepdims=True))             # (B,1,D) biased
    diam = jnp.max(std, axis=-1, keepdims=True)
    diam = jnp.where(diam == 0.0, 1.0, diam)
    xs = c / (diam * math.sqrt(D))
    diff = xs[:, :, None, :] - xs[:, None, :, :]
    cost = jnp.sum(diff * diff, axis=-1)                               # (B,N,N) cost[b,i,j]
    ext = jnp.max(xs, axis=(1, 2)) - jnp.min(xs, axis=(1, 2))          # (B,)
    eps0 = jnp.maximum(regularisation, ext)[:, None]                   # (B,1)
    f0 = jnp.zeros((B, N)); g0 = jnp.zeros((B, N)); done0 = jnp.zeros((B, 1))

    def body(_, carry):
        f, g, eps, eps_used, done = carry
        epsb = eps[:, :, None]
        t1 = (g[:, None, :] - cost) / epsb + log_b
        f_new = -eps * logsumexp(t1, axis=2)                           # (B,N)
        t2 = (f_new[:, :, None] - cost) / epsb + log_a[:, :, None]
        g_new = -eps * logsumexp(t2, axis=1)                           # (B,N)
        upd = jnp.maximum(jnp.max(jnp.abs(f_new - f), axis=1),
                          jnp.max(jnp.abs(g_new - g), axis=1))[:, None]
        keep = done > 0.5
        f = jnp.where(keep, f, f_new)
        g = jnp.where(keep, g, g_new)
        eps_used = jnp.where(keep, eps_used, eps)
        done = jnp.maximum(done, (upd < min_update_size).astype(jnp.float32))
        eps = jnp.maximum(regularisation, eps * decay_rate)
        return f, g, eps, eps_used, done

    f, g, _, eps_used, _ = lax.fori_loop(0, int(max_iterations), body,
                                         (f0, g0, eps0, eps0, done0))
    log_t = ((f[:, :, None] + g[:, None, :] - cost) / eps_used[:, :, None]
             + log_a[:, :, None] + log_b)
    transport = jnp.exp(log_t)                                         # (B,N,N) T[b,i,j]
    return (N * jnp.einsum('bij,bid->bjd', transport, x)).astype(state.dtype)


if __name__ == "__main__":
    B, N, D = 2, 128, 8                      # batch, particles, state dimension
    regularisation, decay_rate = 0.05, 0.9
    min_update_size, max_iterations = 1e-3, 100
    transport_gradient_clip = 1.0

    key = jax.random.PRNGKey(0)
    k_state, k_weight = jax.random.split(key)
    state = jax.random.normal(k_state, (B, N, D), jnp.float32)
    weight = 0.1 * jax.random.normal(k_weight, (B, N), jnp.float32)    # log-weights

    resampler = OptimalTransportResampler(regularisation, decay_rate, min_update_size,
                                          max_iterations, transport_gradient_clip)
    new_state, new_weight = resampler(state, weight)
    new_state = jax.block_until_ready(new_state)
    new_weight = jax.block_until_ready(new_weight)

    assert new_state.shape == (B, N, D)
    assert new_state.dtype == state.dtype
    assert bool(jnp.all(jnp.isfinite(new_state)))
    assert jnp.allclose(new_weight, -math.log(N), atol=1e-6)

    ref = _ot_resample_reference(state, weight, regularisation, decay_rate,
                                 min_update_size, max_iterations)
    max_err = float(jnp.max(jnp.abs(new_state - ref)))
    assert jnp.allclose(new_state, ref, rtol=1e-2, atol=1e-2), max_err

    print("KERNEL_OK")
</pallas_src>

<mosaic_0001>
module attributes {stable_mosaic.version = 11 : i64} {
  func.func @_ot_resampler_kernel(%arg0: i32, %arg1: memref<1x128x8xf32, #tpu.memory_space<vmem>>, %arg2: memref<1x1x128xf32, #tpu.memory_space<vmem>>, %arg3: memref<1x128x8xf32, #tpu.memory_space<vmem>>) attributes {dimension_semantics = [#tpu.dimension_semantics<parallel>], iteration_bounds = array<i64: 2>, scalar_prefetch = 0 : i64, scratch_operands = 0 : i64, tpu.core_type = #tpu.core_type<tc>, window_params = [{transform_indices = @transform_0, window_bounds = array<i64: 1, 128, 8>}, {transform_indices = @transform_1, window_bounds = array<i64: 1, 1, 128>}, {transform_indices = @transform_2, window_bounds = array<i64: 1, 128, 8>}]} {
    %c0 = arith.constant 0 : index
    %c0_0 = arith.constant 0 : index
    %c0_1 = arith.constant 0 : index
    %0 = vector.load %arg1[%c0, %c0_0, %c0_1] : memref<1x128x8xf32, #tpu.memory_space<vmem>>, vector<1x128x8xf32>
    %c0_2 = arith.constant 0 : index
    %c0_3 = arith.constant 0 : index
    %c0_4 = arith.constant 0 : index
    %1 = vector.load %arg2[%c0_2, %c0_3, %c0_4] : memref<1x1x128xf32, #tpu.memory_space<vmem>>, vector<1x1x128xf32>
    %cst = arith.constant dense<0xFF800000> : vector<1x1xf32>
    %2 = vector.multi_reduction <maximumf>, %1, %cst [2] : vector<1x1x128xf32> to vector<1x1xf32>
    %3 = vector.shape_cast %2 : vector<1x1xf32> to vector<1x1x1xf32>
    %4 = vector.broadcast %3 : vector<1x1x1xf32> to vector<1x1x128xf32>
    %5 = arith.subf %1, %4 : vector<1x1x128xf32>
    %6 = math.exp %5 : vector<1x1x128xf32>
    %cst_5 = arith.constant dense<0.000000e+00> : vector<1x1xf32>
    %7 = vector.multi_reduction <add>, %6, %cst_5 [2] : vector<1x1x128xf32> to vector<1x1xf32>
    %8 = vector.shape_cast %7 : vector<1x1xf32> to vector<1x1x1xf32>
    %9 = math.log %8 : vector<1x1x1xf32>
    %10 = arith.addf %3, %9 : vector<1x1x1xf32>
    %11 = vector.broadcast %10 : vector<1x1x1xf32> to vector<1x1x128xf32>
    %12 = arith.subf %1, %11 : vector<1x1x128xf32>
    %cst_6 = arith.constant dense<0.000000e+00> : vector<1x8xf32>
    %13 = vector.multi_reduction <add>, %0, %cst_6 [1] : vector<1x128x8xf32> to vector<1x8xf32>
    %14 = vector.shape_cast %13 : vector<1x8xf32> to vector<1x1x8xf32>
    %cst_7 = arith.constant 1.280000e+02 : f32
    %15 = vector.broadcast %cst_7 : f32 to vector<1x1x8xf32>
    %16 = arith.divf %14, %15 : vector<1x1x8xf32>
    %17 = vector.broadcast %16 : vector<1x1x8xf32> to vector<1x128x8xf32>
    %18 = arith.subf %0, %17 : vector<1x128x8xf32>
    %19 = arith.mulf %18, %18 : vector<1x128x8xf32>
    %cst_8 = arith.constant dense<0.000000e+00> : vector<1x8xf32>
    %20 = vector.multi_reduction <add>, %19, %cst_8 [1] : vector<1x128x8xf32> to vector<1x8xf32>
    %21 = vector.shape_cast %20 : vector<1x8xf32> to vector<1x1x8xf32>
    %cst_9 = arith.constant 1.280000e+02 : f32
    %22 = vector.broadcast %cst_9 : f32 to vector<1x1x8xf32>
    %23 = arith.divf %21, %22 : vector<1x1x8xf32>
    %24 = math.sqrt %23 : vector<1x1x8xf32>
    %cst_10 = arith.constant dense<0xFF800000> : vector<1x1xf32>
    %25 = vector.multi_reduction <maximumf>, %24, %cst_10 [2] : vector<1x1x8xf32> to vector<1x1xf32>
    %26 = vector.shape_cast %25 : vector<1x1xf32> to vector<1x1x1xf32>
    %cst_11 = arith.constant 0.000000e+00 : f32
    %27 = vector.broadcast %cst_11 : f32 to vector<1x1x1xf32>
    %28 = arith.cmpf oeq, %26, %27 : vector<1x1x1xf32>
    %cst_12 = arith.constant 1.000000e+00 : f32
    %29 = vector.broadcast %cst_12 : f32 to vector<1x1x1xf32>
    %30 = arith.select %28, %29, %26 : vector<1x1x1xi1>, vector<1x1x1xf32>
    %cst_13 = arith.constant 2.82842708 : f32
    %31 = vector.broadcast %cst_13 : f32 to vector<1x1x1xf32>
    %32 = arith.mulf %30, %31 : vector<1x1x1xf32>
    %33 = vector.broadcast %32 : vector<1x1x1xf32> to vector<1x128x8xf32>
    %34 = arith.divf %18, %33 : vector<1x128x8xf32>
    "tpu.trace_start"() <{level = 10 : i32, message = "bjd,bid->bji"}> : () -> ()
    %cst_14 = arith.constant dense<0.000000e+00> : vector<1x128x128xf32>
    %35 = tpu.matmul %34, %34, %cst_14 {dimension_numbers = #tpu.dot_dimension_numbers<[2], [2], [1], [1], [0, 0, 0, 1, 1, 1], [0], [0]>, precision = #tpu.contract_precision<fp32>} : vector<1x128x8xf32>, vector<1x128x8xf32>, vector<1x128x128xf32> -> vector<1x128x128xf32>
    "tpu.trace_stop"() : () -> ()
    %36 = arith.mulf %34, %34 : vector<1x128x8xf32>
    %cst_15 = arith.constant dense<0.000000e+00> : vector<1x128xf32>
    %37 = vector.multi_reduction <add>, %36, %cst_15 [2] : vector<1x128x8xf32> to vector<1x128xf32>
    %38 = vector.shape_cast %37 : vector<1x128xf32> to vector<1x128x1xf32>
    %39 = tpu.transpose %38, [0, 2, 1] : vector<1x128x1xf32> -> vector<1x1x128xf32>
    %40 = vector.broadcast %38 : vector<1x128x1xf32> to vector<1x128x128xf32>
    %41 = vector.broadcast %39 : vector<1x1x128xf32> to vector<1x128x128xf32>
    %42 = arith.addf %40, %41 : vector<1x128x128xf32>
    %cst_16 = arith.constant 2.000000e+00 : f32
    %43 = vector.broadcast %cst_16 : f32 to vector<1x128x128xf32>
    %44 = arith.mulf %43, %35 : vector<1x128x128xf32>
    %45 = arith.subf %42, %44 : vector<1x128x128xf32>
    %cst_17 = arith.constant 0.000000e+00 : f32
    %46 = vector.broadcast %cst_17 : f32 to vector<1x128x128xf32>
    %47 = arith.maximumf %45, %46 : vector<1x128x128xf32>
    %cst_18 = arith.constant dense<0xFF800000> : vector<1x128xf32>
    %48 = vector.multi_reduction <maximumf>, %34, %cst_18 [2] : vector<1x128x8xf32> to vector<1x128xf32>
    %49 = vector.shape_cast %48 : vector<1x128xf32> to vector<1x128x1xf32>
    %cst_19 = arith.constant dense<0xFF800000> : vector<1x1xf32>
    %50 = vector.multi_reduction <maximumf>, %49, %cst_19 [1] : vector<1x128x1xf32> to vector<1x1xf32>
    %51 = vector.shape_cast %50 : vector<1x1xf32> to vector<1x1x1xf32>
    %cst_20 = arith.constant dense<0x7F800000> : vector<1x128xf32>
    %52 = vector.multi_reduction <minimumf>, %34, %cst_20 [2] : vector<1x128x8xf32> to vector<1x128xf32>
    %53 = vector.shape_cast %52 : vector<1x128xf32> to vector<1x128x1xf32>
    %cst_21 = arith.constant dense<0x7F800000> : vector<1x1xf32>
    %54 = vector.multi_reduction <minimumf>, %53, %cst_21 [1] : vector<1x128x1xf32> to vector<1x1xf32>
    %55 = vector.shape_cast %54 : vector<1x1xf32> to vector<1x1x1xf32>
    %56 = arith.subf %51, %55 : vector<1x1x1xf32>
    %cst_22 = arith.constant 5.000000e-02 : f32
    %57 = vector.broadcast %cst_22 : f32 to vector<1x1x1xf32>
    %58 = arith.maximumf %57, %56 : vector<1x1x1xf32>
    %cst_23 = arith.constant 0.000000e+00 : f32
    %59 = vector.broadcast %cst_23 : f32 to vector<1x1x128xf32>
    %cst_24 = arith.constant 0.000000e+00 : f32
    %60 = vector.broadcast %cst_24 : f32 to vector<1x128x1xf32>
    %cst_25 = arith.constant 0.000000e+00 : f32
    %61 = vector.broadcast %cst_25 : f32 to vector<1x1x1xf32>
    %cst_26 = arith.constant -4.85203028 : f32
    %cst_27 = arith.constant 1.000000e-03 : f32
    %cst_28 = arith.constant 0.899999976 : f32
    %cst_29 = arith.constant 5.000000e-02 : f32
    %c0_i32 = arith.constant 0 : i32
    %c1_i32 = arith.constant 1 : i32
    %62:7 = scf.while (%arg4 = %c0_i32, %arg5 = %59, %arg6 = %60, %arg7 = %58, %arg8 = %58, %arg9 = %61, %arg10 = %c1_i32) : (i32, vector<1x1x128xf32>, vector<1x128x1xf32>, vector<1x1x1xf32>, vector<1x1x1xf32>, vector<1x1x1xf32>, i32) -> (i32, vector<1x1x128xf32>, vector<1x128x1xf32>, vector<1x1x1xf32>, vector<1x1x1xf32>, vector<1x1x1xf32>, i32) {
      %c100_i32 = arith.constant 100 : i32
      %80 = arith.cmpi slt, %arg4, %c100_i32 : i32
      %c0_i32_37 = arith.constant 0 : i32
      %81 = arith.cmpi sgt, %arg10, %c0_i32_37 : i32
      %82 = arith.andi %80, %81 : i1
      scf.condition(%82) %arg4, %arg5, %arg6, %arg7, %arg8, %arg9, %arg10 : i32, vector<1x1x128xf32>, vector<1x128x1xf32>, vector<1x1x1xf32>, vector<1x1x1xf32>, vector<1x1x1xf32>, i32
    } do {
    ^bb0(%arg4: i32, %arg5: vector<1x1x128xf32>, %arg6: vector<1x128x1xf32>, %arg7: vector<1x1x1xf32>, %arg8: vector<1x1x1xf32>, %arg9: vector<1x1x1xf32>, %arg10: i32):
      %cst_37 = arith.constant 1.000000e+00 : f32
      %80 = vector.broadcast %cst_37 : f32 to vector<1x1x1xf32>
      %81 = arith.divf %80, %arg7 : vector<1x1x1xf32>
      %82 = vector.broadcast %81 : vector<1x1x1xf32> to vector<1x128x128xf32>
      %83 = arith.mulf %47, %82 : vector<1x128x128xf32>
      %84 = vector.broadcast %81 : vector<1x1x1xf32> to vector<1x128x1xf32>
      %85 = arith.mulf %arg6, %84 : vector<1x128x1xf32>
      %86 = vector.broadcast %cst_26 : f32 to vector<1x128x1xf32>
      %87 = arith.addf %85, %86 : vector<1x128x1xf32>
      %88 = vector.broadcast %87 : vector<1x128x1xf32> to vector<1x128x128xf32>
      %89 = arith.subf %88, %83 : vector<1x128x128xf32>
      %cst_38 = arith.constant dense<0xFF800000> : vector<1x128xf32>
      %90 = vector.multi_reduction <maximumf>, %89, %cst_38 [1] : vector<1x128x128xf32> to vector<1x128xf32>
      %91 = vector.shape_cast %90 : vector<1x128xf32> to vector<1x1x128xf32>
      %cst_39 = arith.constant 0.000000e+00 : f32
      %92 = vector.broadcast %cst_39 : f32 to vector<1x1x1xf32>
      %93 = arith.subf %92, %arg7 : vector<1x1x1xf32>
      %94 = vector.broadcast %91 : vector<1x1x128xf32> to vector<1x128x128xf32>
      %95 = arith.subf %89, %94 : vector<1x128x128xf32>
      %96 = math.exp %95 : vector<1x128x128xf32>
      %cst_40 = arith.constant dense<0.000000e+00> : vector<1x128xf32>
      %97 = vector.multi_reduction <add>, %96, %cst_40 [1] : vector<1x128x128xf32> to vector<1x128xf32>
      %98 = vector.shape_cast %97 : vector<1x128xf32> to vector<1x1x128xf32>
      %99 = math.log %98 : vector<1x1x128xf32>
      %100 = arith.addf %91, %99 : vector<1x1x128xf32>
      %101 = vector.broadcast %93 : vector<1x1x1xf32> to vector<1x1x128xf32>
      %102 = arith.mulf %101, %100 : vector<1x1x128xf32>
      %103 = vector.broadcast %81 : vector<1x1x1xf32> to vector<1x1x128xf32>
      %104 = arith.mulf %102, %103 : vector<1x1x128xf32>
      %105 = arith.addf %104, %12 : vector<1x1x128xf32>
      %106 = vector.broadcast %105 : vector<1x1x128xf32> to vector<1x128x128xf32>
      %107 = arith.subf %106, %83 : vector<1x128x128xf32>
      %cst_41 = arith.constant dense<0xFF800000> : vector<1x128xf32>
      %108 = vector.multi_reduction <maximumf>, %107, %cst_41 [2] : vector<1x128x128xf32> to vector<1x128xf32>
      %109 = vector.shape_cast %108 : vector<1x128xf32> to vector<1x128x1xf32>
      %cst_42 = arith.constant 0.000000e+00 : f32
      %110 = vector.broadcast %cst_42 : f32 to vector<1x1x1xf32>
      %111 = arith.subf %110, %arg7 : vector<1x1x1xf32>
      %112 = vector.broadcast %109 : vector<1x128x1xf32> to vector<1x128x128xf32>
      %113 = arith.subf %107, %112 : vector<1x128x128xf32>
      %114 = math.exp %113 : vector<1x128x128xf32>
      %cst_43 = arith.constant dense<0.000000e+00> : vector<1x128xf32>
      %115 = vector.multi_reduction <add>, %114, %cst_43 [2] : vector<1x128x128xf32> to vector<1x128xf32>
      %116 = vector.shape_cast %115 : vector<1x128xf32> to vector<1x128x1xf32>
      %117 = math.log %116 : vector<1x128x1xf32>
      %118 = arith.addf %109, %117 : vector<1x128x1xf32>
      %119 = vector.broadcast %111 : vector<1x1x1xf32> to vector<1x128x1xf32>
      %120 = arith.mulf %119, %118 : vector<1x128x1xf32>
      %121 = arith.subf %102, %arg5 : vector<1x1x128xf32>
      %122 = math.absf %121 : vector<1x1x128xf32>
      %cst_44 = arith.constant dense<0xFF800000> : vector<1x1xf32>
      %123 = vector.multi_reduction <maximumf>, %122, %cst_44 [2] : vector<1x1x128xf32> to vector<1x1xf32>
      %124 = vector.shape_cast %123 : vector<1x1xf32> to vector<1x1x1xf32>
      %125 = arith.subf %120, %arg6 : vector<1x128x1xf32>
      %126 = math.absf %125 : vector<1x128x1xf32>
      %cst_45 = arith.constant dense<0xFF800000> : vector<1x1xf32>
      %127 = vector.multi_reduction <maximumf>, %126, %cst_45 [1] : vector<1x128x1xf32> to vector<1x1xf32>
      %128 = vector.shape_cast %127 : vector<1x1xf32> to vector<1x1x1xf32>
      %129 = arith.maximumf %124, %128 : vector<1x1x1xf32>
      %cst_46 = arith.constant 5.000000e-01 : f32
      %130 = vector.broadcast %cst_46 : f32 to vector<1x1x1xf32>
      %131 = arith.cmpf ogt, %arg9, %130 : vector<1x1x1xf32>
      %132 = vector.shape_cast %131 : vector<1x1x1xi1> to vector<1x1x1xi1>
      %133 = vector.broadcast %132 : vector<1x1x1xi1> to vector<1x1x128xi1>
      %134 = arith.select %133, %arg5, %102 : vector<1x1x128xi1>, vector<1x1x128xf32>
      %135 = vector.shape_cast %131 : vector<1x1x1xi1> to vector<1x1x1xi1>
      %136 = vector.broadcast %135 : vector<1x1x1xi1> to vector<1x128x1xi1>
      %137 = arith.select %136, %arg6, %120 : vector<1x128x1xi1>, vector<1x128x1xf32>
      %138 = arith.select %131, %arg8, %arg7 : vector<1x1x1xi1>, vector<1x1x1xf32>
      %139 = vector.broadcast %cst_27 : f32 to vector<1x1x1xf32>
      %140 = arith.cmpf olt, %129, %139 : vector<1x1x1xf32>
      %141 = arith.extui %140 : vector<1x1x1xi1> to vector<1x1x1xi32>
      %142 = arith.sitofp %141 : vector<1x1x1xi32> to vector<1x1x1xf32>
      %143 = arith.maximumf %arg9, %142 : vector<1x1x1xf32>
      %144 = vector.shape_cast %143 : vector<1x1x1xf32> to vector<1x1x1x1xf32>
      %cst_47 = arith.constant dense<0x7F800000> : vector<1xf32>
      %145 = vector.multi_reduction <minimumf>, %144, %cst_47 [1, 2, 3] : vector<1x1x1x1xf32> to vector<1xf32>
      %146 = vector.shape_cast %145 : vector<1xf32> to vector<1x1x1x1xf32>
      %147 = vector.extract %146[0, 0, 0, 0] : f32 from vector<1x1x1x1xf32>
      %cst_48 = arith.constant 5.000000e-01 : f32
      %148 = arith.cmpf olt, %147, %cst_48 : f32
      %149 = arith.extui %148 : i1 to i32
      %150 = vector.broadcast %cst_28 : f32 to vector<1x1x1xf32>
      %151 = arith.mulf %arg7, %150 : vector<1x1x1xf32>
      %152 = vector.broadcast %cst_29 : f32 to vector<1x1x1xf32>
      %153 = arith.maximumf %152, %151 : vector<1x1x1xf32>
      %c1_i32_49 = arith.constant 1 : i32
      %154 = arith.addi %arg4, %c1_i32_49 : i32
      scf.yield %154, %134, %137, %153, %138, %143, %149 : i32, vector<1x1x128xf32>, vector<1x128x1xf32>, vector<1x1x1xf32>, vector<1x1x1xf32>, vector<1x1x1xf32>, i32
    }
    %63 = vector.broadcast %62#2 : vector<1x128x1xf32> to vector<1x128x128xf32>
    %64 = vector.broadcast %62#1 : vector<1x1x128xf32> to vector<1x128x128xf32>
    %65 = arith.addf %63, %64 : vector<1x128x128xf32>
    %66 = arith.subf %65, %47 : vector<1x128x128xf32>
    %cst_30 = arith.constant 1.000000e+00 : f32
    %67 = vector.broadcast %cst_30 : f32 to vector<1x1x1xf32>
    %68 = arith.divf %67, %62#4 : vector<1x1x1xf32>
    %69 = vector.broadcast %68 : vector<1x1x1xf32> to vector<1x128x128xf32>
    %70 = arith.mulf %66, %69 : vector<1x128x128xf32>
    %71 = vector.broadcast %12 : vector<1x1x128xf32> to vector<1x128x128xf32>
    %72 = arith.addf %70, %71 : vector<1x128x128xf32>
    %cst_31 = arith.constant -4.85203028 : f32
    %73 = vector.broadcast %cst_31 : f32 to vector<1x128x128xf32>
    %74 = arith.addf %72, %73 : vector<1x128x128xf32>
    %75 = math.exp %74 : vector<1x128x128xf32>
    "tpu.trace_start"() <{level = 10 : i32, message = "bji,bid->bjd"}> : () -> ()
    %cst_32 = arith.constant dense<0.000000e+00> : vector<1x128x8xf32>
    %76 = tpu.matmul %75, %0, %cst_32 {dimension_numbers = #tpu.dot_dimension_numbers<[2], [1], [1], [2], [0, 0, 0, 1, 1, 2], [0], [0]>, precision = #tpu.contract_precision<fp32>} : vector<1x128x128xf32>, vector<1x128x8xf32>, vector<1x128x8xf32> -> vector<1x128x8xf32>
    "tpu.trace_stop"() : () -> ()
    %cst_33 = arith.constant 1.280000e+02 : f32
    %77 = vector.broadcast %cst_33 : f32 to vector<1x128x8xf32>
    %78 = arith.mulf %77, %76 : vector<1x128x8xf32>
    %c0_34 = arith.constant 0 : index
    %c0_35 = arith.constant 0 : index
    %c0_36 = arith.constant 0 : index
    %79 = vector.load %arg3[%c0_34, %c0_35, %c0_36] : memref<1x128x8xf32, #tpu.memory_space<vmem>>, vector<1x128x8xf32>
    tpu.vector_store %arg3[%c0_34, %c0_35, %c0_36], %78 {strides = array<i32>} : memref<1x128x8xf32, #tpu.memory_space<vmem>>, vector<1x128x8xf32>,
    return
  }
  func.func @transform_0(%arg0: i32) -> (i32, i32, i32) {
    %c0_i32 = arith.constant 0 : i32
    %c0_i32_0 = arith.constant 0 : i32
    %c0_i32_1 = arith.constant 0 : i32
    return %arg0, %c0_i32, %c0_i32_0 : i32, i32, i32
  }
  func.func @transform_1(%arg0: i32) -> (i32, i32, i32) {
    %c0_i32 = arith.constant 0 : i32
    %c0_i32_0 = arith.constant 0 : i32
    %c0_i32_1 = arith.constant 0 : i32
    return %arg0, %c0_i32, %c0_i32_0 : i32, i32, i32
  }
  func.func @transform_2(%arg0: i32) -> (i32, i32, i32) {
    %c0_i32 = arith.constant 0 : i32
    %c0_i32_0 = arith.constant 0 : i32
    %c0_i32_1 = arith.constant 0 : i32
    return %arg0, %c0_i32, %c0_i32_0 : i32, i32, i32
  }
}

</mosaic_0001>

<llo_original>
// kernel: tpu_custom_call.1
$region0: #{tpu_custom_call.1}
  #allocation0 [shape = 'u32[]', space=smem, size = 0x4, offset = 0x4, fixed_abs, tag = 'smem constant byte address 0x4 - core index']
  #allocation1 [shape = 'u32[144,128]{1,0:T(1,128)}', space=vmem, size = 0x12000, scoped, tag = 'internal scratch']
  %s0 = inlined_call_operand.vmem [shape: f32[2,128,8], index: 0, kind: input, shape index: {}]
  %s1 = inlined_call_operand.vmem [shape: f32[2,1,128], index: 1, kind: input, shape index: {}]
  %s2 = inlined_call_operand.vmem [shape: f32[2,128,8], index: 2, kind: output, shape index: {}]
  %s3 = sld [smem:[#allocation0]]
  $region48: #{tpu_custom_call.1} parent=0
    _
  %s5 = ssub.s32 1, %s3
  %s6 = scalar_select 0, %s5, %s3
  loop: start=0, step=1, limit=4
  $region2: #{tpu_custom_call.1} parent=0 // loop_pre_header
    _
  $region3: #{tpu_custom_call.1} parent=0 // loop_header
    %s8 = sphi 0, %s12
    %p9 = scmp.ge.s32.totalorder %s8, 4
    %s18 = sphi 0, %s20
    %s21 = sphi 0, %s18
    %s22 = sphi 0, %s21
    %s38 = sphi 0, %s22
    %s44 = sphi 0, %s46
    %s47 = sphi 0, %s44
    %s48 = sphi 0, %s47
    %s64 = sphi 0, %s48
    %s70 = sphi 0, %s72
    %s73 = sphi 0, %s70
    %s74 = sphi 0, %s73
    %s90 = sphi 0, %s74
  $region4: #{tpu_custom_call.1} parent=0 // loop_header_branch
    %11 = sbr.rel (%p9) target = $region8
  $region5: #{tpu_custom_call.1} parent=0 // loop_body
    %s13 = ssub.s32 %s8, 1
    %s14 = ssub.s32 %s8, 2
    %s15 = sadd.s32 %s8, 1
    %s16 = ssub.s32 %s8, %s15
    %p17 = scmp.eq.s32.totalorder %s16, 0
    %s19 = sadd.s32 %s18, 1
    %s20 = scalar_select %p17, %s18, %s19
    %p23 = pneg %p17
    %p24 = scmp.eq.s32.totalorder %s8, 1
    %p25 = por %p23, %p24
    %p26 = scmp.ne.s32.totalorder %s18, %s21
    %p27 = scmp.eq.s32.totalorder %s8, 0
    %p28 = por %p26, %p27
    %p29 = scmp.ne.s32.totalorder %s18, %s21
    %p30 = scmp.eq.s32.totalorder %s13, 1
    %p31 = por %p29, %p30
    %p32 = scmp.ne.s32.totalorder %s21, %s22
    %p33 = scmp.eq.s32.totalorder %s13, 0
    %p34 = por %p32, %p33
    %p35 = scmp.ne.s32.totalorder %s21, %s22
    %p36 = scmp.eq.s32.totalorder %s14, 1
    %p37 = por %p35, %p36
    %p39 = scmp.ne.s32.totalorder %s22, %s38
    %p40 = scmp.eq.s32.totalorder %s14, 0
    %p41 = por %p39, %p40
    %s42 = ssub.s32 %s8, %s15
    %p43 = scmp.eq.s32.totalorder %s42, 0
    %s45 = sadd.s32 %s44, 1
    %s46 = scalar_select %p43, %s44, %s45
    %p49 = pneg %p43
    %p50 = scmp.eq.s32.totalorder %s8, 1
    %p51 = por %p49, %p50
    %p52 = scmp.ne.s32.totalorder %s44, %s47
    %p53 = scmp.eq.s32.totalorder %s8, 0
    %p54 = por %p52, %p53
    %p55 = scmp.ne.s32.totalorder %s44, %s47
    %p56 = scmp.eq.s32.totalorder %s13, 1
    %p57 = por %p55, %p56
    %p58 = scmp.ne.s32.totalorder %s47, %s48
    %p59 = scmp.eq.s32.totalorder %s13, 0
    %p60 = por %p58, %p59
    %p61 = scmp.ne.s32.totalorder %s47, %s48
    %p62 = scmp.eq.s32.totalorder %s14, 1
    %p63 = por %p61, %p62
    %p65 = scmp.ne.s32.totalorder %s48, %s64
    %p66 = scmp.eq.s32.totalorder %s14, 0
    %p67 = por %p65, %p66
    %s68 = ssub.s32 %s8, %s15
    %p69 = scmp.eq.s32.totalorder %s68, 0
    %s71 = sadd.s32 %s70, 1
    %s72 = scalar_select %p69, %s70, %s71
    %p75 = pneg %p69
    %p76 = scmp.eq.s32.totalorder %s8, 1
    %p77 = por %p75, %p76
    %p78 = scmp.ne.s32.totalorder %s70, %s73
    %p79 = scmp.eq.s32.totalorder %s8, 0
    %p80 = por %p78, %p79
    %p81 = scmp.ne.s32.totalorder %s70, %s73
    %p82 = scmp.eq.s32.totalorder %s13, 1
    %p83 = por %p81, %p82
    %p84 = scmp.ne.s32.totalorder %s73, %s74
    %p85 = scmp.eq.s32.totalorder %s13, 0
    %p86 = por %p84, %p85
    %p87 = scmp.ne.s32.totalorder %s73, %s74
    %p88 = scmp.eq.s32.totalorder %s14, 1
    %p89 = por %p87, %p88
    %p91 = scmp.ne.s32.totalorder %s74, %s90
    %p92 = scmp.eq.s32.totalorder %s14, 0
    %p93 = por %p91, %p92
    %p94 = scmp.le.s32.totalorder 1, %s8
    %p95 = scmp.lt.s32.totalorder %s8, 3
    %p96 = pnand %p94, %p95
    %p97 = pneg %p96
    // Predicated region
    $region9: #{tpu_custom_call.1} parent=5 // pred_check
      _
    $region10: #{tpu_custom_call.1} parent=5 // pred_check_branch
      %99 = sbr.rel (%p96) target = $region12
    $region11: #{tpu_custom_call.1} parent=5 // pred_region
      %s100 = ssub.s32 %s8, 1
    $region12: #{tpu_custom_call.1} parent=5 // pred_fallthru
      _
    %p101 = scmp.lt.s32.totalorder %s8, 2
    // Predicated region
    $region13: #{tpu_custom_call.1} parent=5 // pred_check
      %p102 = pneg %p101
    $region14: #{tpu_custom_call.1} parent=5 // pred_check_branch
      %104 = sbr.rel (%p102) target = $region16
    $region15: #{tpu_custom_call.1} parent=5 // pred_region
      // Predicated region
      $region17: #{tpu_custom_call.1} parent=15 // pred_check
        %p105 = pneg %p28
      $region18: #{tpu_custom_call.1} parent=15 // pred_check_branch
        %107 = sbr.rel (%p105) target = $region20
      $region19: #{tpu_custom_call.1} parent=15 // pred_region
        %p108 = scmp.lt.s32.totalorder %s8, 1
        %s109 = scalar_select %p108, %s8, 1
        %s110 = smul.addr %s109, 16
        %s111 = smul.addr %s110, 8
        %s112 = scalar_lea.vmem %s0, %s111
      $region20: #{tpu_custom_call.1} parent=15 // pred_fallthru
        _
      // Predicated region
      $region21: #{tpu_custom_call.1} parent=15 // pred_check
        %p113 = pneg %p54
      $region22: #{tpu_custom_call.1} parent=15 // pred_check_branch
        %115 = sbr.rel (%p113) target = $region24
      $region23: #{tpu_custom_call.1} parent=15 // pred_region
        %p116 = scmp.lt.s32.totalorder %s8, 1
        %s117 = scalar_select %p116, %s8, 1
        %s118 = scalar_lea.vmem %s1, %s117
      $region24: #{tpu_custom_call.1} parent=15 // pred_fallthru
        _
    $region16: #{tpu_custom_call.1} parent=5 // pred_fallthru
      _
    %p119 = scmp.le.s32.totalorder 1, %s8
    %p120 = scmp.lt.s32.totalorder %s8, 3
    %p121 = pnand %p119, %p120
    %p122 = pneg %p121
    // Predicated region
    $region25: #{tpu_custom_call.1} parent=5 // pred_check
      _
    $region26: #{tpu_custom_call.1} parent=5 // pred_check_branch
      %124 = sbr.rel (%p121) target = $region28
    $region27: #{tpu_custom_call.1} parent=5 // pred_region
      %s125 = ssub.s32 %s8, 1
      %p126 = scmp.lt.s32.totalorder %s13, 1
      %s127 = scalar_select %p126, %s13, 1
      %s128 = smul.addr %s127, 16
      %s129 = smul.addr %s128, 8
      %s130 = scalar_lea.vmem %s0, %s129
      %p131 = pneg %p34
      %p132 = pneg %p31
      %p133 = scmp.lt.s32.totalorder %s13, 1
      %s134 = scalar_select %p133, %s13, 1
      %s135 = scalar_lea.vmem %s1, %s134
      %p136 = pneg %p60
      %p137 = pneg %p57
      %p138 = pneg %p86
      %p139 = pneg %p83
      %p140 = scmp.lt.s32.totalorder %s13, 1
      %s141 = scalar_select %p140, %s13, 1
      %s142 = smul.addr %s141, 16
      %s143 = smul.addr %s142, 8
      %s144 = scalar_lea.vmem %s2, %s143
      %p145 = scmp.lt.s32.totalorder %s13, 1
      %s146 = scalar_select %p145, %s13, 1
      %s147 = smul.addr %s146, 16
      %s148 = smul.addr %s147, 8
      %s149 = scalar_lea.vmem %s0, %s148
      %p150 = scmp.lt.s32.totalorder %s13, 1
      %s151 = scalar_select %p150, %s13, 1
      %s152 = scalar_lea.vmem %s1, %s151
      %p153 = scmp.lt.s32.totalorder %s13, 1
      %s154 = scalar_select %p153, %s13, 1
      %s155 = smul.addr %s154, 16
      %s156 = smul.addr %s155, 8
      %s157 = scalar_lea.vmem %s2, %s156
      %v158 = vld [vmem:[%s149] sm:$0xff]
      %v159 = vld [vmem:[%s149 + $0x8] sm:$0xff]
      %v160 = vld [vmem:[%s149 + $0x10] sm:$0xff]
      %v161 = vld [vmem:[%s149 + $0x18] sm:$0xff]
      %v162 = vld [vmem:[%s149 + $0x20] sm:$0xff]
      %v163 = vld [vmem:[%s149 + $0x28] sm:$0xff]
      %v164 = vld [vmem:[%s149 + $0x30] sm:$0xff]
      %v165 = vld [vmem:[%s149 + $0x38] sm:$0xff]
      %v166 = vld [vmem:[%s149 + $0x40] sm:$0xff]
      %v167 = vld [vmem:[%s149 + $0x48] sm:$0xff]
      %v168 = vld [vmem:[%s149 + $0x50] sm:$0xff]
      %v169 = vld [vmem:[%s149 + $0x58] sm:$0xff]
      %v170 = vld [vmem:[%s149 + $0x60] sm:$0xff]
      %v171 = vld [vmem:[%s149 + $0x68] sm:$0xff]
      %v172 = vld [vmem:[%s149 + $0x70] sm:$0xff]
      %v173 = vld [vmem:[%s149 + $0x78] sm:$0xff]
      %v174 = vld [vmem:[%s152] sm:$0x1]
      %vm175 = vcmask 1040384
      %v176 = vsel %vm175, %v174, -inf
      %177 = vmax.xlane.f32.xlu0 %v176
      %v178 = vpop.xlane.xlu0 %177
      %v179 = vsub.f32 %v174, %v178
      %v180 = vmul.f32 %v179, 1.442695
      %v181 = vpow.pop %v180
      %v182 = vsel %vm175, %v181, 0.0
      %183 = vadd.xlane.f32.xlu0 %v182
      %v184 = vpop.xlane.xlu0 %183
      %v185 = vlog2.pop %v184
      %v186 = vmul.f32 %v185, 0.6931472
      %v187 = vadd.f32 %v178, %v186
      %v188 = vsub.f32 %v174, %v187
      %vm189 = vcmask 64512
      %v190 = vsel %vm189, %v158, 0.0
      %v191 = vsel %vm189, %v159, 0.0
      %v192 = vadd.f32 %v190, %v191
      %v193 = vsel %vm189, %v160, 0.0
      %v194 = vadd.f32 %v192, %v193
      %v195 = vsel %vm189, %v161, 0.0
      %v196 = vadd.f32 %v194, %v195
      %v197 = vsel %vm189, %v162, 0.0
      %v198 = vadd.f32 %v196, %v197
      %v199 = vsel %vm189, %v163, 0.0
      %v200 = vadd.f32 %v198, %v199
      %v201 = vsel %vm189, %v164, 0.0
      %v202 = vadd.f32 %v200, %v201
      %v203 = vsel %vm189, %v165, 0.0
      %v204 = vadd.f32 %v202, %v203
      %v205 = vsel %vm189, %v166, 0.0
      %v206 = vadd.f32 %v204, %v205
      %v207 = vsel %vm189, %v167, 0.0
      %v208 = vadd.f32 %v206, %v207
      %v209 = vsel %vm189, %v168, 0.0
      %v210 = vadd.f32 %v208, %v209
      %v211 = vsel %vm189, %v169, 0.0
      %v212 = vadd.f32 %v210, %v211
      %v213 = vsel %vm189, %v170, 0.0
      %v214 = vadd.f32 %v212, %v213
      %v215 = vsel %vm189, %v171, 0.0
      %v216 = vadd.f32 %v214, %v215
      %v217 = vsel %vm189, %v172, 0.0
      %v218 = vadd.f32 %v216, %v217
      %v219 = vsel %vm189, %v173, 0.0
      %v220 = vadd.f32 %v218, %v219
      %v221 = vrot.slane %v220, 4
      %v222 = vadd.f32 %v220, %v221
      %v223 = vrot.slane %v222, 2
      %v224 = vadd.f32 %v222, %v223
      %v225 = vrot.slane %v224, 1
      %v226 = vadd.f32 %v224, %v225
      %v227 = vrcp.pop 128.0
      %v228 = vmul.f32 %v226, %v227
      %v229 = vsub.f32 %v158, %v228
      %v230 = vsub.f32 %v159, %v228
      %v231 = vsub.f32 %v160, %v228
      %v232 = vsub.f32 %v161, %v228
      %v233 = vsub.f32 %v162, %v228
      %v234 = vsub.f32 %v163, %v228
      %v235 = vsub.f32 %v164, %v228
      %v236 = vsub.f32 %v165, %v228
      %v237 = vsub.f32 %v166, %v228
      %v238 = vsub.f32 %v167, %v228
      %v239 = vsub.f32 %v168, %v228
      %v240 = vsub.f32 %v169, %v228
      %v241 = vsub.f32 %v170, %v228
      %v242 = vsub.f32 %v171, %v228
      %v243 = vsub.f32 %v172, %v228
      %v244 = vsub.f32 %v173, %v228
      %v245 = vmul.f32 %v229, %v229
      %v246 = vmul.f32 %v230, %v230
      %v247 = vmul.f32 %v231, %v231
      %v248 = vmul.f32 %v232, %v232
      %v249 = vmul.f32 %v233, %v233
      %v250 = vmul.f32 %v234, %v234
      %v251 = vmul.f32 %v235, %v235
      %v252 = vmul.f32 %v236, %v236
      %v253 = vmul.f32 %v237, %v237
      %v254 = vmul.f32 %v238, %v238
      %v255 = vmul.f32 %v239, %v239
      %v256 = vmul.f32 %v240, %v240
      %v257 = vmul.f32 %v241, %v241
      %v258 = vmul.f32 %v242, %v242
      %v259 = vmul.f32 %v243, %v243
      %v260 = vmul.f32 %v244, %v244
      %v261 = vsel %vm189, %v245, 0.0
      %v262 = vsel %vm189, %v246, 0.0
      %v263 = vadd.f32 %v261, %v262
      %v264 = vsel %vm189, %v247, 0.0
      %v265 = vadd.f32 %v263, %v264
      %v266 = vsel %vm189, %v248, 0.0
      %v267 = vadd.f32 %v265, %v266
      %v268 = vsel %vm189, %v249, 0.0
      %v269 = vadd.f32 %v267, %v268
      %v270 = vsel %vm189, %v250, 0.0
      %v271 = vadd.f32 %v269, %v270
      %v272 = vsel %vm189, %v251, 0.0
      %v273 = vadd.f32 %v271, %v272
      %v274 = vsel %vm189, %v252, 0.0
      %v275 = vadd.f32 %v273, %v274
      %v276 = vsel %vm189, %v253, 0.0
      %v277 = vadd.f32 %v275, %v276
      %v278 = vsel %vm189, %v254, 0.0
      %v279 = vadd.f32 %v277, %v278
      %v280 = vsel %vm189, %v255, 0.0
      %v281 = vadd.f32 %v279, %v280
      %v282 = vsel %vm189, %v256, 0.0
      %v283 = vadd.f32 %v281, %v282
      %v284 = vsel %vm189, %v257, 0.0
      %v285 = vadd.f32 %v283, %v284
      %v286 = vsel %vm189, %v258, 0.0
      %v287 = vadd.f32 %v285, %v286
      %v288 = vsel %vm189, %v259, 0.0
      %v289 = vadd.f32 %v287, %v288
      %v290 = vsel %vm189, %v260, 0.0
      %v291 = vadd.f32 %v289, %v290
      %v292 = vrot.slane %v291, 4
      %v293 = vadd.f32 %v291, %v292
      %v294 = vrot.slane %v293, 2
      %v295 = vadd.f32 %v293, %v294
      %v296 = vrot.slane %v295, 1
      %v297 = vadd.f32 %v295, %v296
      %v298 = vmul.f32 %v297, %v227
      %v299 = vrsqrt.pop %v298
      %v300 = vmul.f32 %v298, %v299
      %vm301 = vcmp.eq.f32.partialorder %v298, inf
      %v302 = vsel %vm301, %v298, %v300
      %vm303 = vcmp.eq.f32.partialorder %v298, 0.0
      %v304 = vand.u32 %v298, 2147483648
      %v305 = vsel %vm303, %v304, %v302
      %v306 = vsel %vm189, %v305, -inf
      %307 = vmax.xlane.f32.xlu0 %v306
      %v308 = vpop.xlane.xlu0 %307
      %vm309 = vcmp.eq.f32.partialorder %v308, 0.0
      %v310 = vsel %vm309, 1.0, %v308
      %v311 = vmul.f32 %v310, 2.828427
      %v312 = vrcp.pop %v311
      %v313 = vmul.f32 %v229, %v312
      %v314 = vmul.f32 %v230, %v312
      %v315 = vmul.f32 %v231, %v312
      %v316 = vmul.f32 %v232, %v312
      %v317 = vmul.f32 %v233, %v312
      %v318 = vmul.f32 %v234, %v312
      %v319 = vmul.f32 %v235, %v312
      %v320 = vmul.f32 %v236, %v312
      %v321 = vmul.f32 %v237, %v312
      %v322 = vmul.f32 %v238, %v312
      %v323 = vmul.f32 %v239, %v312
      %v324 = vmul.f32 %v240, %v312
      %v325 = vmul.f32 %v241, %v312
      %v326 = vmul.f32 %v242, %v312
      %v327 = vmul.f32 %v243, %v312
      %v328 = vmul.f32 %v244, %v312
      %v330 = vsel %vm189, %v313, 0
      %v333 = vsel %vm189, %v314, 0
      %v336 = vsel %vm189, %v315, 0
      %v339 = vsel %vm189, %v316, 0
      %v342 = vsel %vm189, %v317, 0
      %v345 = vsel %vm189, %v318, 0
      %v348 = vsel %vm189, %v319, 0
      %v351 = vsel %vm189, %v320, 0
      %v354 = vsel %vm189, %v321, 0
      %v357 = vsel %vm189, %v322, 0
      %v360 = vsel %vm189, %v323, 0
      %v363 = vsel %vm189, %v324, 0
      %v366 = vsel %vm189, %v325, 0
      %v369 = vsel %vm189, %v326, 0
      %v372 = vsel %vm189, %v327, 0
      %v375 = vsel %vm189, %v328, 0
      %377 = vmatprep.subr.mxu0 0.0
      %v378 = vand.u32 %v330, 4294901760
      %379 = vmatpush1.xpose.msra.mxu0 %v378
      %380 = vmatprep.subr.mxu0 0.0
      %v381 = vand.u32 %v333, 4294901760
      %382 = vmatpush1.xpose.msra.mxu0 %v381
      %383 = vmatprep.subr.mxu0 0.0
      %v384 = vand.u32 %v336, 4294901760
      %385 = vmatpush1.xpose.msra.mxu0 %v384
      %386 = vmatprep.subr.mxu0 0.0
      %v387 = vand.u32 %v339, 4294901760
      %388 = vmatpush1.xpose.msra.mxu0 %v387
      %389 = vmatprep.subr.mxu0 0.0
      %v390 = vand.u32 %v342, 4294901760
      %391 = vmatpush1.xpose.msra.mxu0 %v390
      %392 = vmatprep.subr.mxu0 0.0
      %v393 = vand.u32 %v345, 4294901760
      %394 = vmatpush1.xpose.msra.mxu0 %v393
      %395 = vmatprep.subr.mxu0 0.0
      %v396 = vand.u32 %v348, 4294901760
      %397 = vmatpush1.xpose.msra.mxu0 %v396
      %398 = vmatprep.subr.mxu0 0.0
      %v399 = vand.u32 %v351, 4294901760
      %400 = vmatpush1.xpose.msra.mxu0 %v399
      %401 = vmatprep.subr.mxu0 0.0
      %v402 = vand.u32 %v354, 4294901760
      %403 = vmatpush1.xpose.msra.mxu0 %v402
      %404 = vmatprep.subr.mxu0 0.0
      %v405 = vand.u32 %v357, 4294901760
      %406 = vmatpush1.xpose.msra.mxu0 %v405
      %407 = vmatprep.subr.mxu0 0.0
      %v408 = vand.u32 %v360, 4294901760
      %409 = vmatpush1.xpose.msra.mxu0 %v408
      %410 = vmatprep.subr.mxu0 0.0
      %v411 = vand.u32 %v363, 4294901760
      %412 = vmatpush1.xpose.msra.mxu0 %v411
      %413 = vmatprep.subr.mxu0 0.0
      %v414 = vand.u32 %v366, 4294901760
      %415 = vmatpush1.xpose.msra.mxu0 %v414
      %416 = vmatprep.subr.mxu0 0.0
      %v417 = vand.u32 %v369, 4294901760
      %418 = vmatpush1.xpose.msra.mxu0 %v417
      %419 = vmatprep.subr.mxu0 0.0
      %v420 = vand.u32 %v372, 4294901760
      %421 = vmatpush1.xpose.msra.mxu0 %v420
      %422 = vmatprep.subr.mxu0 0.0
      %v423 = vand.u32 %v375, 4294901760
      %424 = vmatpush1.xpose.msra.mxu0 %v423
      %425 = vmatprep.subr.mxu0 0.0
      %426 = vmatpush1.xpose.msra.mxu0 0.0
      %427 = vmatprep.subr.mxu0 0.0
      %428 = vmatpush1.xpose.msra.mxu0 0.0
      %429 = vmatprep.subr.mxu0 0.0
      %430 = vmatpush1.xpose.msra.mxu0 0.0
      %431 = vmatprep.subr.mxu0 0.0
      %432 = vmatpush1.xpose.msra.mxu0 0.0
      %433 = vmatprep.subr.mxu0 0.0
      %434 = vmatpush1.xpose.msra.mxu0 0.0
      %435 = vmatprep.subr.mxu0 0.0
      %436 = vmatpush1.xpose.msra.mxu0 0.0
      %437 = vmatprep.subr.mxu0 0.0
      %438 = vmatpush1.xpose.msra.mxu0 0.0
      %439 = vmatprep.subr.mxu0 0.0
      %440 = vmatpush1.xpose.msra.mxu0 0.0
      %441 = vmatprep.subr.mxu0 0.0
      %442 = vmatpush1.xpose.msra.mxu0 0.0
      %443 = vmatprep.subr.mxu0 0.0
      %444 = vmatpush1.xpose.msra.mxu0 0.0
      %445 = vmatprep.subr.mxu0 0.0
      %446 = vmatpush1.xpose.msra.mxu0 0.0
      %447 = vmatprep.subr.mxu0 0.0
      %448 = vmatpush1.xpose.msra.mxu0 0.0
      %449 = vmatprep.subr.mxu0 0.0
      %450 = vmatpush1.xpose.msra.mxu0 0.0
      %451 = vmatprep.subr.mxu0 0.0
      %452 = vmatpush1.xpose.msra.mxu0 0.0
      %453 = vmatprep.subr.mxu0 0.0
      %454 = vmatpush1.xpose.msra.mxu0 0.0
      %455 = vmatprep.subr.mxu0 0.0
      %456 = vmatpush1.xpose.msra.mxu0 0.0
      %457 = vmatprep.mubr.f32.mxu0 0.0
      %v458 = vand.u32 %v330, 4294901760
      %v459 = vsub.f32 %v330, %v458
      %v460 = vand.u32 %v459, 4294901760
      %v461 = vsub.f32 %v459, %v460
      %v462 = vand.u32 %v461, 4294901760
      %463 = vmatmul.mubr.f32.gmra.mrb[0].mxu0 %v462
      %v464 = vpop.f32.mrb[0].mxu0
      %v465 = vadd.f32 0.0, %v464
      %v466 = vpop.f32.mrb[0].mxu0
      %467 = vmatprep.mubr.f32.mxu0 0.0
      %v468 = vand.u32 %v333, 4294901760
      %v469 = vsub.f32 %v333, %v468
      %v470 = vand.u32 %v469, 4294901760
      %v471 = vsub.f32 %v469, %v470
      %v472 = vand.u32 %v471, 4294901760
      %473 = vmatmul.mubr.f32.gmra.mrb[0].mxu0 %v472
      %v474 = vpop.f32.mrb[0].mxu0
      %v475 = vadd.f32 0.0, %v474
      %v476 = vpop.f32.mrb[0].mxu0
      %477 = vmatprep.mubr.f32.mxu0 0.0
      %v478 = vand.u32 %v336, 4294901760
      %v479 = vsub.f32 %v336, %v478
      %v480 = vand.u32 %v479, 4294901760
      %v481 = vsub.f32 %v479, %v480
      %v482 = vand.u32 %v481, 4294901760
      %483 = vmatmul.mubr.f32.gmra.mrb[0].mxu0 %v482
      %v484 = vpop.f32.mrb[0].mxu0
      %v485 = vadd.f32 0.0, %v484
      %v486 = vpop.f32.mrb[0].mxu0
      %487 = vmatprep.mubr.f32.mxu0 0.0
      %v488 = vand.u32 %v339, 4294901760
      %v489 = vsub.f32 %v339, %v488
      %v490 = vand.u32 %v489, 4294901760
      %v491 = vsub.f32 %v489, %v490
      %v492 = vand.u32 %v491, 4294901760
      %493 = vmatmul.mubr.f32.gmra.mrb[0].mxu0 %v492
      %v494 = vpop.f32.mrb[0].mxu0
      %v495 = vadd.f32 0.0, %v494
      %v496 = vpop.f32.mrb[0].mxu0
      %497 = vmatprep.mubr.f32.mxu0 0.0
      %v498 = vand.u32 %v342, 4294901760
      %v499 = vsub.f32 %v342, %v498
      %v500 = vand.u32 %v499, 4294901760
      %v501 = vsub.f32 %v499, %v500
      %v502 = vand.u32 %v501, 4294901760
      %503 = vmatmul.mubr.f32.gmra.mrb[0].mxu0 %v502
      %v504 = vpop.f32.mrb[0].mxu0
      %v505 = vadd.f32 0.0, %v504
      %v506 = vpop.f32.mrb[0].mxu0
      %507 = vmatprep.mubr.f32.mxu0 0.0
      %v508 = vand.u32 %v345, 4294901760
      %v509 = vsub.f32 %v345, %v508
      %v510 = vand.u32 %v509, 4294901760
      %v511 = vsub.f32 %v509, %v510
      %v512 = vand.u32 %v511, 4294901760
      %513 = vmatmul.mubr.f32.gmra.mrb[0].mxu0 %v512
      %v514 = vpop.f32.mrb[0].mxu0
      %v515 = vadd.f32 0.0, %v514
      %v516 = vpop.f32.mrb[0].mxu0
      %517 = vmatprep.mubr.f32.mxu0 0.0
      %v518 = vand.u32 %v348, 4294901760
      %v519 = vsub.f32 %v348, %v518
      %v520 = vand.u32 %v519, 4294901760
      %v521 = vsub.f32 %v519, %v520
      %v522 = vand.u32 %v521, 4294901760
      %523 = vmatmul.mubr.f32.gmra.mrb[0].mxu0 %v522
      %v524 = vpop.f32.mrb[0].mxu0
      %v525 = vadd.f32 0.0, %v524
      %v526 = vpop.f32.mrb[0].mxu0
      %527 = vmatprep.mubr.f32.mxu0 0.0
      %v528 = vand.u32 %v351, 4294901760
      %v529 = vsub.f32 %v351, %v528
      %v530 = vand.u32 %v529, 4294901760
      %v531 = vsub.f32 %v529, %v530
      %v532 = vand.u32 %v531, 4294901760
      %533 = vmatmul.mubr.f32.gmra.mrb[0].mxu0 %v532
      %v534 = vpop.f32.mrb[0].mxu0
      %v535 = vadd.f32 0.0, %v534
      %v536 = vpop.f32.mrb[0].mxu0
      %537 = vmatprep.mubr.f32.mxu0 0.0
      %v538 = vand.u32 %v354, 4294901760
      %v539 = vsub.f32 %v354, %v538
      %v540 = vand.u32 %v539, 4294901760
      %v541 = vsub.f32 %v539, %v540
      %v542 = vand.u32 %v541, 4294901760
      %543 = vmatmul.mubr.f32.gmra.mrb[0].mxu0 %v542
      %v544 = vpop.f32.mrb[0].mxu0
      %v545 = vadd.f32 0.0, %v544
      %v546 = vpop.f32.mrb[0].mxu0
      %547 = vmatprep.mubr.f32.mxu0 0.0
      %v548 = vand.u32 %v357, 4294901760
      %v549 = vsub.f32 %v357, %v548
      %v550 = vand.u32 %v549, 4294901760
      %v551 = vsub.f32 %v549, %v550
      %v552 = vand.u32 %v551, 4294901760
      %553 = vmatmul.mubr.f32.gmra.mrb[0].mxu0 %v552
      %v554 = vpop.f32.mrb[0].mxu0
      %v555 = vadd.f32 0.0, %v554
      %v556 = vpop.f32.mrb[0].mxu0
      %557 = vmatprep.mubr.f32.mxu0 0.0
      %v558 = vand.u32 %v360, 4294901760
      %v559 = vsub.f32 %v360, %v558
      %v560 = vand.u32 %v559, 4294901760
      %v561 = vsub.f32 %v559, %v560
      %v562 = vand.u32 %v561, 4294901760
      %563 = vmatmul.mubr.f32.gmra.mrb[0].mxu0 %v562
      %v564 = vpop.f32.mrb[0].mxu0
      %v565 = vadd.f32 0.0, %v564
      %v566 = vpop.f32.mrb[0].mxu0
      %567 = vmatprep.mubr.f32.mxu0 0.0
      %v568 = vand.u32 %v363, 4294901760
      %v569 = vsub.f32 %v363, %v568
      %v570 = vand.u32 %v569, 4294901760
      %v571 = vsub.f32 %v569, %v570
      %v572 = vand.u32 %v571, 4294901760
      %573 = vmatmul.mubr.f32.gmra.mrb[0].mxu0 %v572
      %v574 = vpop.f32.mrb[0].mxu0
      %v575 = vadd.f32 0.0, %v574
      %v576 = vpop.f32.mrb[0].mxu0
      %577 = vmatprep.mubr.f32.mxu0 0.0
      %v578 = vand.u32 %v366, 4294901760
      %v579 = vsub.f32 %v366, %v578
      %v580 = vand.u32 %v579, 4294901760
      %v581 = vsub.f32 %v579, %v580
      %v582 = vand.u32 %v581, 4294901760
      %583 = vmatmul.mubr.f32.gmra.mrb[0].mxu0 %v582
      %v584 = vpop.f32.mrb[0].mxu0
      %v585 = vadd.f32 0.0, %v584
      %v586 = vpop.f32.mrb[0].mxu0
      %587 = vmatprep.mubr.f32.mxu0 0.0
      %v588 = vand.u32 %v369, 4294901760
      %v589 = vsub.f32 %v369, %v588
      %v590 = vand.u32 %v589, 4294901760
      %v591 = vsub.f32 %v589, %v590
      %v592 = vand.u32 %v591, 4294901760
      %593 = vmatmul.mubr.f32.gmra.mrb[0].mxu0 %v592
      %v594 = vpop.f32.mrb[0].mxu0
      %v595 = vadd.f32 0.0, %v594
      %v596 = vpop.f32.mrb[0].mxu0
      %597 = vmatprep.mubr.f32.mxu0 0.0
      %v598 = vand.u32 %v372, 4294901760
      %v599 = vsub.f32 %v372, %v598
      %v600 = vand.u32 %v599, 4294901760
      %v601 = vsub.f32 %v599, %v600
      %v602 = vand.u32 %v601, 4294901760
      %603 = vmatmul.mubr.f32.gmra.mrb[0].mxu0 %v602
      %v604 = vpop.f32.mrb[0].mxu0
      %v605 = vadd.f32 0.0, %v604
      %v606 = vpop.f32.mrb[0].mxu0
      %607 = vmatprep.mubr.f32.mxu0 0.0
      %v608 = vand.u32 %v375, 4294901760
      %v609 = vsub.f32 %v375, %v608
      %v610 = vand.u32 %v609, 4294901760
      %v611 = vsub.f32 %v609, %v610
      %v612 = vand.u32 %v611, 4294901760
      %613 = vmatmul.mubr.f32.gmra.mrb[0].mxu0 %v612
      %v614 = vpop.f32.mrb[0].mxu0
      %v615 = vadd.f32 0.0, %v614
      %v616 = vpop.f32.mrb[0].mxu0
      %617 = vdwg.mxu0
      %618 = vmatprep.subr.mxu0 0.0
      %v619 = vand.u32 %v330, 4294901760
      %v620 = vsub.f32 %v330, %v619
      %v621 = vand.u32 %v620, 4294901760
      %v622 = vsub.f32 %v620, %v621
      %v623 = vand.u32 %v622, 4294901760
      %624 = vmatpush1.xpose.msra.mxu0 %v623
      %625 = vmatprep.subr.mxu0 0.0
      %v626 = vand.u32 %v333, 4294901760
      %v627 = vsub.f32 %v333, %v626
      %v628 = vand.u32 %v627, 4294901760
      %v629 = vsub.f32 %v627, %v628
      %v630 = vand.u32 %v629, 4294901760
      %631 = vmatpush1.xpose.msra.mxu0 %v630
      %632 = vmatprep.subr.mxu0 0.0
      %v633 = vand.u32 %v336, 4294901760
      %v634 = vsub.f32 %v336, %v633
      %v635 = vand.u32 %v634, 4294901760
      %v636 = vsub.f32 %v634, %v635
      %v637 = vand.u32 %v636, 4294901760
      %638 = vmatpush1.xpose.msra.mxu0 %v637
      %639 = vmatprep.subr.mxu0 0.0
      %v640 = vand.u32 %v339, 4294901760
      %v641 = vsub.f32 %v339, %v640
      %v642 = vand.u32 %v641, 4294901760
      %v643 = vsub.f32 %v641, %v642
      %v644 = vand.u32 %v643, 4294901760
      %645 = vmatpush1.xpose.msra.mxu0 %v644
      %646 = vmatprep.subr.mxu0 0.0
      %v647 = vand.u32 %v342, 4294901760
      %v648 = vsub.f32 %v342, %v647
      %v649 = vand.u32 %v648, 4294901760
      %v650 = vsub.f32 %v648, %v649
      %v651 = vand.u32 %v650, 4294901760
      %652 = vmatpush1.xpose.msra.mxu0 %v651
      %653 = vmatprep.subr.mxu0 0.0
      %v654 = vand.u32 %v345, 4294901760
      %v655 = vsub.f32 %v345, %v654
      %v656 = vand.u32 %v655, 4294901760
      %v657 = vsub.f32 %v655, %v656
      %v658 = vand.u32 %v657, 4294901760
      %659 = vmatpush1.xpose.msra.mxu0 %v658
      %660 = vmatprep.subr.mxu0 0.0
      %v661 = vand.u32 %v348, 4294901760
      %v662 = vsub.f32 %v348, %v661
      %v663 = vand.u32 %v662, 4294901760
      %v664 = vsub.f32 %v662, %v663
      %v665 = vand.u32 %v664, 4294901760
      %666 = vmatpush1.xpose.msra.mxu0 %v665
      %667 = vmatprep.subr.mxu0 0.0
      %v668 = vand.u32 %v351, 4294901760
      %v669 = vsub.f32 %v351, %v668
      %v670 = vand.u32 %v669, 4294901760
      %v671 = vsub.f32 %v669, %v670
      %v672 = vand.u32 %v671, 4294901760
      %673 = vmatpush1.xpose.msra.mxu0 %v672
      %674 = vmatprep.subr.mxu0 0.0
      %v675 = vand.u32 %v354, 4294901760
      %v676 = vsub.f32 %v354, %v675
      %v677 = vand.u32 %v676, 4294901760
      %v678 = vsub.f32 %v676, %v677
      %v679 = vand.u32 %v678, 4294901760
      %680 = vmatpush1.xpose.msra.mxu0 %v679
      %681 = vmatprep.subr.mxu0 0.0
      %v682 = vand.u32 %v357, 4294901760
      %v683 = vsub.f32 %v357, %v682
      %v684 = vand.u32 %v683, 4294901760
      %v685 = vsub.f32 %v683, %v684
      %v686 = vand.u32 %v685, 4294901760
      %687 = vmatpush1.xpose.msra.mxu0 %v686
      %688 = vmatprep.subr.mxu0 0.0
      %v689 = vand.u32 %v360, 4294901760
      %v690 = vsub.f32 %v360, %v689
      %v691 = vand.u32 %v690, 4294901760
      %v692 = vsub.f32 %v690, %v691
      %v693 = vand.u32 %v692, 4294901760
      %694 = vmatpush1.xpose.msra.mxu0 %v693
      %695 = vmatprep.subr.mxu0 0.0
      %v696 = vand.u32 %v363, 4294901760
      %v697 = vsub.f32 %v363, %v696
      %v698 = vand.u32 %v697, 4294901760
      %v699 = vsub.f32 %v697, %v698
      %v700 = vand.u32 %v699, 4294901760
      %701 = vmatpush1.xpose.msra.mxu0 %v700
      %702 = vmatprep.subr.mxu0 0.0
      %v703 = vand.u32 %v366, 4294901760
      %v704 = vsub.f32 %v366, %v703
      %v705 = vand.u32 %v704, 4294901760
      %v706 = vsub.f32 %v704, %v705
      %v707 = vand.u32 %v706, 4294901760
      %708 = vmatpush1.xpose.msra.mxu0 %v707
      %709 = vmatprep.subr.mxu0 0.0
      %v710 = vand.u32 %v369, 4294901760
      %v711 = vsub.f32 %v369, %v710
      %v712 = vand.u32 %v711, 4294901760
      %v713 = vsub.f32 %v711, %v712
      %v714 = vand.u32 %v713, 4294901760
      %715 = vmatpush1.xpose.msra.mxu0 %v714
      %716 = vmatprep.subr.mxu0 0.0
      %v717 = vand.u32 %v372, 4294901760
      %v718 = vsub.f32 %v372, %v717
      %v719 = vand.u32 %v718, 4294901760
      %v720 = vsub.f32 %v718, %v719
      %v721 = vand.u32 %v720, 4294901760
      %722 = vmatpush1.xpose.msra.mxu0 %v721
      %723 = vmatprep.subr.mxu0 0.0
      %v724 = vand.u32 %v375, 4294901760
      %v725 = vsub.f32 %v375, %v724
      %v726 = vand.u32 %v725, 4294901760
      %v727 = vsub.f32 %v725, %v726
      %v728 = vand.u32 %v727, 4294901760
      %729 = vmatpush1.xpose.msra.mxu0 %v728
      %730 = vmatprep.subr.mxu0 0.0
      %731 = vmatpush1.xpose.msra.mxu0 0.0
      %732 = vmatprep.subr.mxu0 0.0
      %733 = vmatpush1.xpose.msra.mxu0 0.0
      %734 = vmatprep.subr.mxu0 0.0
      %735 = vmatpush1.xpose.msra.mxu0 0.0
      %736 = vmatprep.subr.mxu0 0.0
      %737 = vmatpush1.xpose.msra.mxu0 0.0
      %738 = vmatprep.subr.mxu0 0.0
      %739 = vmatpush1.xpose.msra.mxu0 0.0
      %740 = vmatprep.subr.mxu0 0.0
      %741 = vmatpush1.xpose.msra.mxu0 0.0
      %742 = vmatprep.subr.mxu0 0.0
      %743 = vmatpush1.xpose.msra.mxu0 0.0
      %744 = vmatprep.subr.mxu0 0.0
      %745 = vmatpush1.xpose.msra.mxu0 0.0
      %746 = vmatprep.subr.mxu0 0.0
      %747 = vmatpush1.xpose.msra.mxu0 0.0
      %748 = vmatprep.subr.mxu0 0.0
      %749 = vmatpush1.xpose.msra.mxu0 0.0
      %750 = vmatprep.subr.mxu0 0.0
      %751 = vmatpush1.xpose.msra.mxu0 0.0
      %752 = vmatprep.subr.mxu0 0.0
      %753 = vmatpush1.xpose.msra.mxu0 0.0
      %754 = vmatprep.subr.mxu0 0.0
      %755 = vmatpush1.xpose.msra.mxu0 0.0
      %756 = vmatprep.subr.mxu0 0.0
      %757 = vmatpush1.xpose.msra.mxu0 0.0
      %758 = vmatprep.subr.mxu0 0.0
      %759 = vmatpush1.xpose.msra.mxu0 0.0
      %760 = vmatprep.subr.mxu0 0.0
      %761 = vmatpush1.xpose.msra.mxu0 0.0
      %762 = vmatprep.mubr.f32.mxu0 0.0
      %v763 = vand.u32 %v330, 4294901760
      %764 = vmatmul.mubr.f32.gmra.mrb[0].mxu0 %v763
      %v765 = vpop.f32.mrb[0].mxu0
      %v766 = vadd.f32 %v465, %v765
      %v767 = vpop.f32.mrb[0].mxu0
      %768 = vmatprep.mubr.f32.mxu0 0.0
      %v769 = vand.u32 %v333, 4294901760
      %770 = vmatmul.mubr.f32.gmra.mrb[0].mxu0 %v769
      %v771 = vpop.f32.mrb[0].mxu0
      %v772 = vadd.f32 %v475, %v771
      %v773 = vpop.f32.mrb[0].mxu0
      %774 = vmatprep.mubr.f32.mxu0 0.0
      %v775 = vand.u32 %v336, 4294901760
      %776 = vmatmul.mubr.f32.gmra.mrb[0].mxu0 %v775
      %v777 = vpop.f32.mrb[0].mxu0
      %v778 = vadd.f32 %v485, %v777
      %v779 = vpop.f32.mrb[0].mxu0
      %780 = vmatprep.mubr.f32.mxu0 0.0
      %v781 = vand.u32 %v339, 4294901760
      %782 = vmatmul.mubr.f32.gmra.mrb[0].mxu0 %v781
      %v783 = vpop.f32.mrb[0].mxu0
      %v784 = vadd.f32 %v495, %v783
      %v785 = vpop.f32.mrb[0].mxu0
      %786 = vmatprep.mubr.f32.mxu0 0.0
      %v787 = vand.u32 %v342, 4294901760
      %788 = vmatmul.mubr.f32.gmra.mrb[0].mxu0 %v787
      %v789 = vpop.f32.mrb[0].mxu0
      %v790 = vadd.f32 %v505, %v789
      %v791 = vpop.f32.mrb[0].mxu0
      %792 = vmatprep.mubr.f32.mxu0 0.0
      %v793 = vand.u32 %v345, 4294901760
      %794 = vmatmul.mubr.f32.gmra.mrb[0].mxu0 %v793
      %v795 = vpop.f32.mrb[0].mxu0
      %v796 = vadd.f32 %v515, %v795
      %v797 = vpop.f32.mrb[0].mxu0
      %798 = vmatprep.mubr.f32.mxu0 0.0
      %v799 = vand.u32 %v348, 4294901760
      %800 = vmatmul.mubr.f32.gmra.mrb[0].mxu0 %v799
      %v801 = vpop.f32.mrb[0].mxu0
      %v802 = vadd.f32 %v525, %v801
      %v803 = vpop.f32.mrb[0].mxu0
      %804 = vmatprep.mubr.f32.mxu0 0.0
      %v805 = vand.u32 %v351, 4294901760
      %806 = vmatmul.mubr.f32.gmra.mrb[0].mxu0 %v805
      %v807 = vpop.f32.mrb[0].mxu0
      %v808 = vadd.f32 %v535, %v807
      %v809 = vpop.f32.mrb[0].mxu0
      %810 = vmatprep.mubr.f32.mxu0 0.0
      %v811 = vand.u32 %v354, 4294901760
      %812 = vmatmul.mubr.f32.gmra.mrb[0].mxu0 %v811
      %v813 = vpop.f32.mrb[0].mxu0
      %v814 = vadd.f32 %v545, %v813
      %v815 = vpop.f32.mrb[0].mxu0
      %816 = vmatprep.mubr.f32.mxu0 0.0
      %v817 = vand.u32 %v357, 4294901760
      %818 = vmatmul.mubr.f32.gmra.mrb[0].mxu0 %v817
      %v819 = vpop.f32.mrb[0].mxu0
      %v820 = vadd.f32 %v555, %v819
      %v821 = vpop.f32.mrb[0].mxu0
      %822 = vmatprep.mubr.f32.mxu0 0.0
      %v823 = vand.u32 %v360, 4294901760
      %824 = vmatmul.mubr.f32.gmra.mrb[0].mxu0 %v823
      %v825 = vpop.f32.mrb[0].mxu0
      %v826 = vadd.f32 %v565, %v825
      %v827 = vpop.f32.mrb[0].mxu0
      %828 = vmatprep.mubr.f32.mxu0 0.0
      %v829 = vand.u32 %v363, 4294901760
      %830 = vmatmul.mubr.f32.gmra.mrb[0].mxu0 %v829
      %v831 = vpop.f32.mrb[0].mxu0
      %v832 = vadd.f32 %v575, %v831
      %v833 = vpop.f32.mrb[0].mxu0
      %834 = vmatprep.mubr.f32.mxu0 0.0
      %v835 = vand.u32 %v366, 4294901760
      %836 = vmatmul.mubr.f32.gmra.mrb[0].mxu0 %v835
      %v837 = vpop.f32.mrb[0].mxu0
      %v838 = vadd.f32 %v585, %v837
      %v839 = vpop.f32.mrb[0].mxu0
      %840 = vmatprep.mubr.f32.mxu0 0.0
      %v841 = vand.u32 %v369, 4294901760
      %842 = vmatmul.mubr.f32.gmra.mrb[0].mxu0 %v841
      %v843 = vpop.f32.mrb[0].mxu0
      %v844 = vadd.f32 %v595, %v843
      %v845 = vpop.f32.mrb[0].mxu0
      %846 = vmatprep.mubr.f32.mxu0 0.0
      %v847 = vand.u32 %v372, 4294901760
      %848 = vmatmul.mubr.f32.gmra.mrb[0].mxu0 %v847
      %v849 = vpop.f32.mrb[0].mxu0
      %v850 = vadd.f32 %v605, %v849
      %v851 = vpop.f32.mrb[0].mxu0
      %852 = vmatprep.mubr.f32.mxu0 0.0
      %v853 = vand.u32 %v375, 4294901760
      %854 = vmatmul.mubr.f32.gmra.mrb[0].mxu0 %v853
      %v855 = vpop.f32.mrb[0].mxu0
      %v856 = vadd.f32 %v615, %v855
      %v857 = vpop.f32.mrb[0].mxu0
      %858 = vdwg.mxu0
      %859 = vmatprep.subr.mxu0 0.0
      %v860 = vand.u32 %v330, 4294901760
      %v861 = vsub.f32 %v330, %v860
      %862 = vmatpush1.xpose.msra.mxu0 %v861
      %863 = vmatprep.subr.mxu0 0.0
      %v864 = vand.u32 %v333, 4294901760
      %v865 = vsub.f32 %v333, %v864
      %866 = vmatpush1.xpose.msra.mxu0 %v865
      %867 = vmatprep.subr.mxu0 0.0
      %v868 = vand.u32 %v336, 4294901760
      %v869 = vsub.f32 %v336, %v868
      %870 = vmatpush1.xpose.msra.mxu0 %v869
      %871 = vmatprep.subr.mxu0 0.0
      %v872 = vand.u32 %v339, 4294901760
      %v873 = vsub.f32 %v339, %v872
      %874 = vmatpush1.xpose.msra.mxu0 %v873
      %875 = vmatprep.subr.mxu0 0.0
      %v876 = vand.u32 %v342, 4294901760
      %v877 = vsub.f32 %v342, %v876
      %878 = vmatpush1.xpose.msra.mxu0 %v877
      %879 = vmatprep.subr.mxu0 0.0
      %v880 = vand.u32 %v345, 4294901760
      %v881 = vsub.f32 %v345, %v880
      %882 = vmatpush1.xpose.msra.mxu0 %v881
      %883 = vmatprep.subr.mxu0 0.0
      %v884 = vand.u32 %v348, 4294901760
      %v885 = vsub.f32 %v348, %v884
      %886 = vmatpush1.xpose.msra.mxu0 %v885
      %887 = vmatprep.subr.mxu0 0.0
      %v888 = vand.u32 %v351, 4294901760
      %v889 = vsub.f32 %v351, %v888
      %890 = vmatpush1.xpose.msra.mxu0 %v889
      %891 = vmatprep.subr.mxu0 0.0
      %v892 = vand.u32 %v354, 4294901760
      %v893 = vsub.f32 %v354, %v892
      %894 = vmatpush1.xpose.msra.mxu0 %v893
      %895 = vmatprep.subr.mxu0 0.0
      %v896 = vand.u32 %v357, 4294901760
      %v897 = vsub.f32 %v357, %v896
      %898 = vmatpush1.xpose.msra.mxu0 %v897
      %899 = vmatprep.subr.mxu0 0.0
      %v900 = vand.u32 %v360, 4294901760
      %v901 = vsub.f32 %v360, %v900
      %902 = vmatpush1.xpose.msra.mxu0 %v901
      %903 = vmatprep.subr.mxu0 0.0
      %v904 = vand.u32 %v363, 4294901760
      %v905 = vsub.f32 %v363, %v904
      %906 = vmatpush1.xpose.msra.mxu0 %v905
      %907 = vmatprep.subr.mxu0 0.0
      %v908 = vand.u32 %v366, 4294901760
      %v909 = vsub.f32 %v366, %v908
      %910 = vmatpush1.xpose.msra.mxu0 %v909
      %911 = vmatprep.subr.mxu0 0.0
      %v912 = vand.u32 %v369, 4294901760
      %v913 = vsub.f32 %v369, %v912
      %914 = vmatpush1.xpose.msra.mxu0 %v913
      %915 = vmatprep.subr.mxu0 0.0
      %v916 = vand.u32 %v372, 4294901760
      %v917 = vsub.f32 %v372, %v916
      %918 = vmatpush1.xpose.msra.mxu0 %v917
      %919 = vmatprep.subr.mxu0 0.0
      %v920 = vand.u32 %v375, 4294901760
      %v921 = vsub.f32 %v375, %v920
      %922 = vmatpush1.xpose.msra.mxu0 %v921
      %923 = vmatprep.subr.mxu0 0.0
      %924 = vmatpush1.xpose.msra.mxu0 0.0
      %925 = vmatprep.subr.mxu0 0.0
      %926 = vmatpush1.xpose.msra.mxu0 0.0
      %927 = vmatprep.subr.mxu0 0.0
      %928 = vmatpush1.xpose.msra.mxu0 0.0
      %929 = vmatprep.subr.mxu0 0.0
      %930 = vmatpush1.xpose.msra.mxu0 0.0
      %931 = vmatprep.subr.mxu0 0.0
      %932 = vmatpush1.xpose.msra.mxu0 0.0
      %933 = vmatprep.subr.mxu0 0.0
      %934 = vmatpush1.xpose.msra.mxu0 0.0
      %935 = vmatprep.subr.mxu0 0.0
      %936 = vmatpush1.xpose.msra.mxu0 0.0
      %937 = vmatprep.subr.mxu0 0.0
      %938 = vmatpush1.xpose.msra.mxu0 0.0
      %939 = vmatprep.subr.mxu0 0.0
      %940 = vmatpush1.xpose.msra.mxu0 0.0
      %941 = vmatprep.subr.mxu0 0.0
      %942 = vmatpush1.xpose.msra.mxu0 0.0
      %943 = vmatprep.subr.mxu0 0.0
      %944 = vmatpush1.xpose.msra.mxu0 0.0
      %945 = vmatprep.subr.mxu0 0.0
      %946 = vmatpush1.xpose.msra.mxu0 0.0
      %947 = vmatprep.subr.mxu0 0.0
      %948 = vmatpush1.xpose.msra.mxu0 0.0
      %949 = vmatprep.subr.mxu0 0.0
      %950 = vmatpush1.xpose.msra.mxu0 0.0
      %951 = vmatprep.subr.mxu0 0.0
      %952 = vmatpush1.xpose.msra.mxu0 0.0
      %953 = vmatprep.subr.mxu0 0.0
      %954 = vmatpush1.xpose.msra.mxu0 0.0
      %955 = vmatprep.mubr.f32.mxu0 0.0
      %v956 = vand.u32 %v330, 4294901760
      %v957 = vsub.f32 %v330, %v956
      %958 = vmatmul.mubr.f32.gmra.mrb[0].mxu0 %v957
      %v959 = vpop.f32.mrb[0].mxu0
      %v960 = vadd.f32 %v766, %v959
      %v961 = vpop.f32.mrb[0].mxu0
      %962 = vmatprep.mubr.f32.mxu0 0.0
      %v963 = vand.u32 %v333, 4294901760
      %v964 = vsub.f32 %v333, %v963
      %965 = vmatmul.mubr.f32.gmra.mrb[0].mxu0 %v964
      %v966 = vpop.f32.mrb[0].mxu0
      %v967 = vadd.f32 %v772, %v966
      %v968 = vpop.f32.mrb[0].mxu0
      %969 = vmatprep.mubr.f32.mxu0 0.0
      %v970 = vand.u32 %v336, 4294901760
      %v971 = vsub.f32 %v336, %v970
      %972 = vmatmul.mubr.f32.gmra.mrb[0].mxu0 %v971
      %v973 = vpop.f32.mrb[0].mxu0
      %v974 = vadd.f32 %v778, %v973
      %v975 = vpop.f32.mrb[0].mxu0
      %976 = vmatprep.mubr.f32.mxu0 0.0
      %v977 = vand.u32 %v339, 4294901760
      %v978 = vsub.f32 %v339, %v977
      %979 = vmatmul.mubr.f32.gmra.mrb[0].mxu0 %v978
      %v980 = vpop.f32.mrb[0].mxu0
      %v981 = vadd.f32 %v784, %v980
      %v982 = vpop.f32.mrb[0].mxu0
      %983 = vmatprep.mubr.f32.mxu0 0.0
      %v984 = vand.u32 %v342, 4294901760
      %v985 = vsub.f32 %v342, %v984
      %986 = vmatmul.mubr.f32.gmra.mrb[0].mxu0 %v985
      %v987 = vpop.f32.mrb[0].mxu0
      %v988 = vadd.f32 %v790, %v987
      %v989 = vpop.f32.mrb[0].mxu0
      %990 = vmatprep.mubr.f32.mxu0 0.0
      %v991 = vand.u32 %v345, 4294901760
      %v992 = vsub.f32 %v345, %v991
      %993 = vmatmul.mubr.f32.gmra.mrb[0].mxu0 %v992
      %v994 = vpop.f32.mrb[0].mxu0
      %v995 = vadd.f32 %v796, %v994
      %v996 = vpop.f32.mrb[0].mxu0
      %997 = vmatprep.mubr.f32.mxu0 0.0
      %v998 = vand.u32 %v348, 4294901760
      %v999 = vsub.f32 %v348, %v998
      %1000 = vmatmul.mubr.f32.gmra.mrb[0].mxu0 %v999
      %v1001 = vpop.f32.mrb[0].mxu0
      %v1002 = vadd.f32 %v802, %v1001
      %v1003 = vpop.f32.mrb[0].mxu0
      %1004 = vmatprep.mubr.f32.mxu0 0.0
      %v1005 = vand.u32 %v351, 4294901760
      %v1006 = vsub.f32 %v351, %v1005
      %1007 = vmatmul.mubr.f32.gmra.mrb[0].mxu0 %v1006
      %v1008 = vpop.f32.mrb[0].mxu0
      %v1009 = vadd.f32 %v808, %v1008
      %v1010 = vpop.f32.mrb[0].mxu0
      %1011 = vmatprep.mubr.f32.mxu0 0.0
      %v1012 = vand.u32 %v354, 4294901760
      %v1013 = vsub.f32 %v354, %v1012
      %1014 = vmatmul.mubr.f32.gmra.mrb[0].mxu0 %v1013
      %v1015 = vpop.f32.mrb[0].mxu0
      %v1016 = vadd.f32 %v814, %v1015
      %v1017 = vpop.f32.mrb[0].mxu0
      %1018 = vmatprep.mubr.f32.mxu0 0.0
      %v1019 = vand.u32 %v357, 4294901760
      %v1020 = vsub.f32 %v357, %v1019
      %1021 = vmatmul.mubr.f32.gmra.mrb[0].mxu0 %v1020
      %v1022 = vpop.f32.mrb[0].mxu0
      %v1023 = vadd.f32 %v820, %v1022
      %v1024 = vpop.f32.mrb[0].mxu0
      %1025 = vmatprep.mubr.f32.mxu0 0.0
      %v1026 = vand.u32 %v360, 4294901760
      %v1027 = vsub.f32 %v360, %v1026
      %1028 = vmatmul.mubr.f32.gmra.mrb[0].mxu0 %v1027
      %v1029 = vpop.f32.mrb[0].mxu0
      %v1030 = vadd.f32 %v826, %v1029
      %v1031 = vpop.f32.mrb[0].mxu0
      %1032 = vmatprep.mubr.f32.mxu0 0.0
      %v1033 = vand.u32 %v363, 4294901760
      %v1034 = vsub.f32 %v363, %v1033
      %1035 = vmatmul.mubr.f32.gmra.mrb[0].mxu0 %v1034
      %v1036 = vpop.f32.mrb[0].mxu0
      %v1037 = vadd.f32 %v832, %v1036
      %v1038 = vpop.f32.mrb[0].mxu0
      %1039 = vmatprep.mubr.f32.mxu0 0.0
      %v1040 = vand.u32 %v366, 4294901760
      %v1041 = vsub.f32 %v366, %v1040
      %1042 = vmatmul.mubr.f32.gmra.mrb[0].mxu0 %v1041
      %v1043 = vpop.f32.mrb[0].mxu0
      %v1044 = vadd.f32 %v838, %v1043
      %v1045 = vpop.f32.mrb[0].mxu0
      %1046 = vmatprep.mubr.f32.mxu0 0.0
      %v1047 = vand.u32 %v369, 4294901760
      %v1048 = vsub.f32 %v369, %v1047
      %1049 = vmatmul.mubr.f32.gmra.mrb[0].mxu0 %v1048
      %v1050 = vpop.f32.mrb[0].mxu0
      %v1051 = vadd.f32 %v844, %v1050
      %v1052 = vpop.f32.mrb[0].mxu0
      %1053 = vmatprep.mubr.f32.mxu0 0.0
      %v1054 = vand.u32 %v372, 4294901760
      %v1055 = vsub.f32 %v372, %v1054
      %1056 = vmatmul.mubr.f32.gmra.mrb[0].mxu0 %v1055
      %v1057 = vpop.f32.mrb[0].mxu0
      %v1058 = vadd.f32 %v850, %v1057
      %v1059 = vpop.f32.mrb[0].mxu0
      %1060 = vmatprep.mubr.f32.mxu0 0.0
      %v1061 = vand.u32 %v375, 4294901760
      %v1062 = vsub.f32 %v375, %v1061
      %1063 = vmatmul.mubr.f32.gmra.mrb[0].mxu0 %v1062
      %v1064 = vpop.f32.mrb[0].mxu0
      %v1065 = vadd.f32 %v856, %v1064
      %v1066 = vpop.f32.mrb[0].mxu0
      %1067 = vdwg.mxu0
      %1068 = vmatprep.subr.mxu0 0.0
      %v1069 = vand.u32 %v330, 4294901760
      %1070 = vmatpush1.xpose.msra.mxu0 %v1069
      %1071 = vmatprep.subr.mxu0 0.0
      %v1072 = vand.u32 %v333, 4294901760
      %1073 = vmatpush1.xpose.msra.mxu0 %v1072
      %1074 = vmatprep.subr.mxu0 0.0
      %v1075 = vand.u32 %v336, 4294901760
      %1076 = vmatpush1.xpose.msra.mxu0 %v1075
      %1077 = vmatprep.subr.mxu0 0.0
      %v1078 = vand.u32 %v339, 4294901760
      %1079 = vmatpush1.xpose.msra.mxu0 %v1078
      %1080 = vmatprep.subr.mxu0 0.0
      %v1081 = vand.u32 %v342, 4294901760
      %1082 = vmatpush1.xpose.msra.mxu0 %v1081
      %1083 = vmatprep.subr.mxu0 0.0
      %v1084 = vand.u32 %v345, 4294901760
      %1085 = vmatpush1.xpose.msra.mxu0 %v1084
      %1086 = vmatprep.subr.mxu0 0.0
      %v1087 = vand.u32 %v348, 4294901760
      %1088 = vmatpush1.xpose.msra.mxu0 %v1087
      %1089 = vmatprep.subr.mxu0 0.0
      %v1090 = vand.u32 %v351, 4294901760
      %1091 = vmatpush1.xpose.msra.mxu0 %v1090
      %1092 = vmatprep.subr.mxu0 0.0
      %v1093 = vand.u32 %v354, 4294901760
      %1094 = vmatpush1.xpose.msra.mxu0 %v1093
      %1095 = vmatprep.subr.mxu0 0.0
      %v1096 = vand.u32 %v357, 4294901760
      %1097 = vmatpush1.xpose.msra.mxu0 %v1096
      %1098 = vmatprep.subr.mxu0 0.0
      %v1099 = vand.u32 %v360, 4294901760
      %1100 = vmatpush1.xpose.msra.mxu0 %v1099
      %1101 = vmatprep.subr.mxu0 0.0
      %v1102 = vand.u32 %v363, 4294901760
      %1103 = vmatpush1.xpose.msra.mxu0 %v1102
      %1104 = vmatprep.subr.mxu0 0.0
      %v1105 = vand.u32 %v366, 4294901760
      %1106 = vmatpush1.xpose.msra.mxu0 %v1105
      %1107 = vmatprep.subr.mxu0 0.0
      %v1108 = vand.u32 %v369, 4294901760
      %1109 = vmatpush1.xpose.msra.mxu0 %v1108
      %1110 = vmatprep.subr.mxu0 0.0
      %v1111 = vand.u32 %v372, 4294901760
      %1112 = vmatpush1.xpose.msra.mxu0 %v1111
      %1113 = vmatprep.subr.mxu0 0.0
      %v1114 = vand.u32 %v375, 4294901760
      %1115 = vmatpush1.xpose.msra.mxu0 %v1114
      %1116 = vmatprep.subr.mxu0 0.0
      %1117 = vmatpush1.xpose.msra.mxu0 0.0
      %1118 = vmatprep.subr.mxu0 0.0
      %1119 = vmatpush1.xpose.msra.mxu0 0.0
      %1120 = vmatprep.subr.mxu0 0.0
      %1121 = vmatpush1.xpose.msra.mxu0 0.0
      %1122 = vmatprep.subr.mxu0 0.0
      %1123 = vmatpush1.xpose.msra.mxu0 0.0
      %1124 = vmatprep.subr.mxu0 0.0
      %1125 = vmatpush1.xpose.msra.mxu0 0.0
      %1126 = vmatprep.subr.mxu0 0.0
      %1127 = vmatpush1.xpose.msra.mxu0 0.0
      %1128 = vmatprep.subr.mxu0 0.0
      %1129 = vmatpush1.xpose.msra.mxu0 0.0
      %1130 = vmatprep.subr.mxu0 0.0
      %1131 = vmatpush1.xpose.msra.mxu0 0.0
      %1132 = vmatprep.subr.mxu0 0.0
      %1133 = vmatpush1.xpose.msra.mxu0 0.0
      %1134 = vmatprep.subr.mxu0 0.0
      %1135 = vmatpush1.xpose.msra.mxu0 0.0
      %1136 = vmatprep.subr.mxu0 0.0
      %1137 = vmatpush1.xpose.msra.mxu0 0.0
      %1138 = vmatprep.subr.mxu0 0.0
      %1139 = vmatpush1.xpose.msra.mxu0 0.0
      %1140 = vmatprep.subr.mxu0 0.0
      %1141 = vmatpush1.xpose.msra.mxu0 0.0
      %1142 = vmatprep.subr.mxu0 0.0
      %1143 = vmatpush1.xpose.msra.mxu0 0.0
      %1144 = vmatprep.subr.mxu0 0.0
      %1145 = vmatpush1.xpose.msra.mxu0 0.0
      %1146 = vmatprep.subr.mxu0 0.0
      %1147 = vmatpush1.xpose.msra.mxu0 0.0
      %1148 = vmatprep.mubr.f32.mxu0 0.0
      %v1149 = vand.u32 %v330, 4294901760
      %v1150 = vsub.f32 %v330, %v1149
      %v1151 = vand.u32 %v1150, 4294901760
      %1152 = vmatmul.mubr.f32.gmra.mrb[0].mxu0 %v1151
      %v1153 = vpop.f32.mrb[0].mxu0
      %v1154 = vadd.f32 %v960, %v1153
      %v1155 = vpop.f32.mrb[0].mxu0
      %1156 = vmatprep.mubr.f32.mxu0 0.0
      %v1157 = vand.u32 %v333, 4294901760
      %v1158 = vsub.f32 %v333, %v1157
      %v1159 = vand.u32 %v1158, 4294901760
      %1160 = vmatmul.mubr.f32.gmra.mrb[0].mxu0 %v1159
      %v1161 = vpop.f32.mrb[0].mxu0
      %v1162 = vadd.f32 %v967, %v1161
      %v1163 = vpop.f32.mrb[0].mxu0
      %1164 = vmatprep.mubr.f32.mxu0 0.0
      %v1165 = vand.u32 %v336, 4294901760
      %v1166 = vsub.f32 %v336, %v1165
      %v1167 = vand.u32 %v1166, 4294901760
      %1168 = vmatmul.mubr.f32.gmra.mrb[0].mxu0 %v1167
      %v1169 = vpop.f32.mrb[0].mxu0
      %v1170 = vadd.f32 %v974, %v1169
      %v1171 = vpop.f32.mrb[0].mxu0
      %1172 = vmatprep.mubr.f32.mxu0 0.0
      %v1173 = vand.u32 %v339, 4294901760
      %v1174 = vsub.f32 %v339, %v1173
      %v1175 = vand.u32 %v1174, 4294901760
      %1176 = vmatmul.mubr.f32.gmra.mrb[0].mxu0 %v1175
      %v1177 = vpop.f32.mrb[0].mxu0
      %v1178 = vadd.f32 %v981, %v1177
      %v1179 = vpop.f32.mrb[0].mxu0
      %1180 = vmatprep.mubr.f32.mxu0 0.0
      %v1181 = vand.u32 %v342, 4294901760
      %v1182 = vsub.f32 %v342, %v1181
      %v1183 = vand.u32 %v1182, 4294901760
      %1184 = vmatmul.mubr.f32.gmra.mrb[0].mxu0 %v1183
      %v1185 = vpop.f32.mrb[0].mxu0
      %v1186 = vadd.f32 %v988, %v1185
      %v1187 = vpop.f32.mrb[0].mxu0
      %1188 = vmatprep.mubr.f32.mxu0 0.0
      %v1189 = vand.u32 %v345, 4294901760
      %v1190 = vsub.f32 %v345, %v1189
      %v1191 = vand.u32 %v1190, 4294901760
      %1192 = vmatmul.mubr.f32.gmra.mrb[0].mxu0 %v1191
      %v1193 = vpop.f32.mrb[0].mxu0
      %v1194 = vadd.f32 %v995, %v1193
      %v1195 = vpop.f32.mrb[0].mxu0
      %1196 = vmatprep.mubr.f32.mxu0 0.0
      %v1197 = vand.u32 %v348, 4294901760
      %v1198 = vsub.f32 %v348, %v1197
      %v1199 = vand.u32 %v1198, 4294901760
      %1200 = vmatmul.mubr.f32.gmra.mrb[0].mxu0 %v1199
      %v1201 = vpop.f32.mrb[0].mxu0
      %v1202 = vadd.f32 %v1002, %v1201
      %v1203 = vpop.f32.mrb[0].mxu0
      %1204 = vmatprep.mubr.f32.mxu0 0.0
      %v1205 = vand.u32 %v351, 4294901760
      %v1206 = vsub.f32 %v351, %v1205
      %v1207 = vand.u32 %v1206, 4294901760
      %1208 = vmatmul.mubr.f32.gmra.mrb[0].mxu0 %v1207
      %v1209 = vpop.f32.mrb[0].mxu0
      %v1210 = vadd.f32 %v1009, %v1209
      %v1211 = vpop.f32.mrb[0].mxu0
      %1212 = vmatprep.mubr.f32.mxu0 0.0
      %v1213 = vand.u32 %v354, 4294901760
      %v1214 = vsub.f32 %v354, %v1213
      %v1215 = vand.u32 %v1214, 4294901760
      %1216 = vmatmul.mubr.f32.gmra.mrb[0].mxu0 %v1215
      %v1217 = vpop.f32.mrb[0].mxu0
      %v1218 = vadd.f32 %v1016, %v1217
      %v1219 = vpop.f32.mrb[0].mxu0
      %1220 = vmatprep.mubr.f32.mxu0 0.0
      %v1221 = vand.u32 %v357, 4294901760
      %v1222 = vsub.f32 %v357, %v1221
      %v1223 = vand.u32 %v1222, 4294901760
      %1224 = vmatmul.mubr.f32.gmra.mrb[0].mxu0 %v1223
      %v1225 = vpop.f32.mrb[0].mxu0
      %v1226 = vadd.f32 %v1023, %v1225
      %v1227 = vpop.f32.mrb[0].mxu0
      %1228 = vmatprep.mubr.f32.mxu0 0.0
      %v1229 = vand.u32 %v360, 4294901760
      %v1230 = vsub.f32 %v360, %v1229
      %v1231 = vand.u32 %v1230, 4294901760
      %1232 = vmatmul.mubr.f32.gmra.mrb[0].mxu0 %v1231
      %v1233 = vpop.f32.mrb[0].mxu0
      %v1234 = vadd.f32 %v1030, %v1233
      %v1235 = vpop.f32.mrb[0].mxu0
      %1236 = vmatprep.mubr.f32.mxu0 0.0
      %v1237 = vand.u32 %v363, 4294901760
      %v1238 = vsub.f32 %v363, %v1237
      %v1239 = vand.u32 %v1238, 4294901760
      %1240 = vmatmul.mubr.f32.gmra.mrb[0].mxu0 %v1239
      %v1241 = vpop.f32.mrb[0].mxu0
      %v1242 = vadd.f32 %v1037, %v1241
      %v1243 = vpop.f32.mrb[0].mxu0
      %1244 = vmatprep.mubr.f32.mxu0 0.0
      %v1245 = vand.u32 %v366, 4294901760
      %v1246 = vsub.f32 %v366, %v1245
      %v1247 = vand.u32 %v1246, 4294901760
      %1248 = vmatmul.mubr.f32.gmra.mrb[0].mxu0 %v1247
      %v1249 = vpop.f32.mrb[0].mxu0
      %v1250 = vadd.f32 %v1044, %v1249
      %v1251 = vpop.f32.mrb[0].mxu0
      %1252 = vmatprep.mubr.f32.mxu0 0.0
      %v1253 = vand.u32 %v369, 4294901760
      %v1254 = vsub.f32 %v369, %v1253
      %v1255 = vand.u32 %v1254, 4294901760
      %1256 = vmatmul.mubr.f32.gmra.mrb[0].mxu0 %v1255
      %v1257 = vpop.f32.mrb[0].mxu0
      %v1258 = vadd.f32 %v1051, %v1257
      %v1259 = vpop.f32.mrb[0].mxu0
      %1260 = vmatprep.mubr.f32.mxu0 0.0
      %v1261 = vand.u32 %v372, 4294901760
      %v1262 = vsub.f32 %v372, %v1261
      %v1263 = vand.u32 %v1262, 4294901760
      %1264 = vmatmul.mubr.f32.gmra.mrb[0].mxu0 %v1263
      %v1265 = vpop.f32.mrb[0].mxu0
      %v1266 = vadd.f32 %v1058, %v1265
      %v1267 = vpop.f32.mrb[0].mxu0
      %1268 = vmatprep.mubr.f32.mxu0 0.0
      %v1269 = vand.u32 %v375, 4294901760
      %v1270 = vsub.f32 %v375, %v1269
      %v1271 = vand.u32 %v1270, 4294901760
      %1272 = vmatmul.mubr.f32.gmra.mrb[0].mxu0 %v1271
      %v1273 = vpop.f32.mrb[0].mxu0
      %v1274 = vadd.f32 %v1065, %v1273
      %v1275 = vpop.f32.mrb[0].mxu0
      %1276 = vdwg.mxu0
      %1277 = vmatprep.subr.mxu0 0.0
      %v1278 = vand.u32 %v330, 4294901760
      %v1279 = vsub.f32 %v330, %v1278
      %v1280 = vand.u32 %v1279, 4294901760
      %1281 = vmatpush1.xpose.msra.mxu0 %v1280
      %1282 = vmatprep.subr.mxu0 0.0
      %v1283 = vand.u32 %v333, 4294901760
      %v1284 = vsub.f32 %v333, %v1283
      %v1285 = vand.u32 %v1284, 4294901760
      %1286 = vmatpush1.xpose.msra.mxu0 %v1285
      %1287 = vmatprep.subr.mxu0 0.0
      %v1288 = vand.u32 %v336, 4294901760
      %v1289 = vsub.f32 %v336, %v1288
      %v1290 = vand.u32 %v1289, 4294901760
      %1291 = vmatpush1.xpose.msra.mxu0 %v1290
      %1292 = vmatprep.subr.mxu0 0.0
      %v1293 = vand.u32 %v339, 4294901760
      %v1294 = vsub.f32 %v339, %v1293
      %v1295 = vand.u32 %v1294, 4294901760
      %1296 = vmatpush1.xpose.msra.mxu0 %v1295
      %1297 = vmatprep.subr.mxu0 0.0
      %v1298 = vand.u32 %v342, 4294901760
      %v1299 = vsub.f32 %v342, %v1298
      %v1300 = vand.u32 %v1299, 4294901760
      %1301 = vmatpush1.xpose.msra.mxu0 %v1300
      %1302 = vmatprep.subr.mxu0 0.0
      %v1303 = vand.u32 %v345, 4294901760
      %v1304 = vsub.f32 %v345, %v1303
      %v1305 = vand.u32 %v1304, 4294901760
      %1306 = vmatpush1.xpose.msra.mxu0 %v1305
      %1307 = vmatprep.subr.mxu0 0.0
      %v1308 = vand.u32 %v348, 4294901760
      %v1309 = vsub.f32 %v348, %v1308
      %v1310 = vand.u32 %v1309, 4294901760
      %1311 = vmatpush1.xpose.msra.mxu0 %v1310
      %1312 = vmatprep.subr.mxu0 0.0
      %v1313 = vand.u32 %v351, 4294901760
      %v1314 = vsub.f32 %v351, %v1313
      %v1315 = vand.u32 %v1314, 4294901760
      %1316 = vmatpush1.xpose.msra.mxu0 %v1315
      %1317 = vmatprep.subr.mxu0 0.0
      %v1318 = vand.u32 %v354, 4294901760
      %v1319 = vsub.f32 %v354, %v1318
      %v1320 = vand.u32 %v1319, 4294901760
      %1321 = vmatpush1.xpose.msra.mxu0 %v1320
      %1322 = vmatprep.subr.mxu0 0.0
      %v1323 = vand.u32 %v357, 4294901760
      %v1324 = vsub.f32 %v357, %v1323
      %v1325 = vand.u32 %v1324, 4294901760
      %1326 = vmatpush1.xpose.msra.mxu0 %v1325
      %1327 = vmatprep.subr.mxu0 0.0
      %v1328 = vand.u32 %v360, 4294901760
      %v1329 = vsub.f32 %v360, %v1328
      %v1330 = vand.u32 %v1329, 4294901760
      %1331 = vmatpush1.xpose.msra.mxu0 %v1330
      %1332 = vmatprep.subr.mxu0 0.0
      %v1333 = vand.u32 %v363, 4294901760
      %v1334 = vsub.f32 %v363, %v1333
      %v1335 = vand.u32 %v1334, 4294901760
      %1336 = vmatpush1.xpose.msra.mxu0 %v1335
      %1337 = vmatprep.subr.mxu0 0.0
      %v1338 = vand.u32 %v366, 4294901760
      %v1339 = vsub.f32 %v366, %v1338
      %v1340 = vand.u32 %v1339, 4294901760
      %1341 = vmatpush1.xpose.msra.mxu0 %v1340
      %1342 = vmatprep.subr.mxu0 0.0
      %v1343 = vand.u32 %v369, 4294901760
      %v1344 = vsub.f32 %v369, %v1343
      %v1345 = vand.u32 %v1344, 4294901760
      %1346 = vmatpush1.xpose.msra.mxu0 %v1345
      %1347 = vmatprep.subr.mxu0 0.0
      %v1348 = vand.u32 %v372, 4294901760
      %v1349 = vsub.f32 %v372, %v1348
      %v1350 = vand.u32 %v1349, 4294901760
      %1351 = vmatpush1.xpose.msra.mxu0 %v1350
      %1352 = vmatprep.subr.mxu0 0.0
      %v1353 = vand.u32 %v375, 4294901760
      %v1354 = vsub.f32 %v375, %v1353
      %v1355 = vand.u32 %v1354, 4294901760
      %1356 = vmatpush1.xpose.msra.mxu0 %v1355
      %1357 = vmatprep.subr.mxu0 0.0
      %1358 = vmatpush1.xpose.msra.mxu0 0.0
      %1359 = vmatprep.subr.mxu0 0.0
      %1360 = vmatpush1.xpose.msra.mxu0 0.0
      %1361 = vmatprep.subr.mxu0 0.0
      %1362 = vmatpush1.xpose.msra.mxu0 0.0
      %1363 = vmatprep.subr.mxu0 0.0
      %1364 = vmatpush1.xpose.msra.mxu0 0.0
      %1365 = vmatprep.subr.mxu0 0.0
      %1366 = vmatpush1.xpose.msra.mxu0 0.0
      %1367 = vmatprep.subr.mxu0 0.0
      %1368 = vmatpush1.xpose.msra.mxu0 0.0
      %1369 = vmatprep.subr.mxu0 0.0
      %1370 = vmatpush1.xpose.msra.mxu0 0.0
      %1371 = vmatprep.subr.mxu0 0.0
      %1372 = vmatpush1.xpose.msra.mxu0 0.0
      %1373 = vmatprep.subr.mxu0 0.0
      %1374 = vmatpush1.xpose.msra.mxu0 0.0
      %1375 = vmatprep.subr.mxu0 0.0
      %1376 = vmatpush1.xpose.msra.mxu0 0.0
      %1377 = vmatprep.subr.mxu0 0.0
      %1378 = vmatpush1.xpose.msra.mxu0 0.0
      %1379 = vmatprep.subr.mxu0 0.0
      %1380 = vmatpush1.xpose.msra.mxu0 0.0
      %1381 = vmatprep.subr.mxu0 0.0
      %1382 = vmatpush1.xpose.msra.mxu0 0.0
      %1383 = vmatprep.subr.mxu0 0.0
      %1384 = vmatpush1.xpose.msra.mxu0 0.0
      %1385 = vmatprep.subr.mxu0 0.0
      %1386 = vmatpush1.xpose.msra.mxu0 0.0
      %1387 = vmatprep.subr.mxu0 0.0
      %1388 = vmatpush1.xpose.msra.mxu0 0.0
      %1389 = vmatprep.mubr.f32.mxu0 0.0
      %v1390 = vand.u32 %v330, 4294901760
      %1391 = vmatmul.mubr.f32.gmra.mrb[0].mxu0 %v1390
      %v1392 = vpop.f32.mrb[0].mxu0
      %v1393 = vadd.f32 %v1154, %v1392
      %v1394 = vpop.f32.mrb[0].mxu0
      %1395 = vmatprep.mubr.f32.mxu0 0.0
      %v1396 = vand.u32 %v333, 4294901760
      %1397 = vmatmul.mubr.f32.gmra.mrb[0].mxu0 %v1396
      %v1398 = vpop.f32.mrb[0].mxu0
      %v1399 = vadd.f32 %v1162, %v1398
      %v1400 = vpop.f32.mrb[0].mxu0
      %1401 = vmatprep.mubr.f32.mxu0 0.0
      %v1402 = vand.u32 %v336, 4294901760
      %1403 = vmatmul.mubr.f32.gmra.mrb[0].mxu0 %v1402
      %v1404 = vpop.f32.mrb[0].mxu0
      %v1405 = vadd.f32 %v1170, %v1404
      %v1406 = vpop.f32.mrb[0].mxu0
      %1407 = vmatprep.mubr.f32.mxu0 0.0
      %v1408 = vand.u32 %v339, 4294901760
      %1409 = vmatmul.mubr.f32.gmra.mrb[0].mxu0 %v1408
      %v1410 = vpop.f32.mrb[0].mxu0
      %v1411 = vadd.f32 %v1178, %v1410
      %v1412 = vpop.f32.mrb[0].mxu0
      %1413 = vmatprep.mubr.f32.mxu0 0.0
      %v1414 = vand.u32 %v342, 4294901760
      %1415 = vmatmul.mubr.f32.gmra.mrb[0].mxu0 %v1414
      %v1416 = vpop.f32.mrb[0].mxu0
      %v1417 = vadd.f32 %v1186, %v1416
      %v1418 = vpop.f32.mrb[0].mxu0
      %1419 = vmatprep.mubr.f32.mxu0 0.0
      %v1420 = vand.u32 %v345, 4294901760
      %1421 = vmatmul.mubr.f32.gmra.mrb[0].mxu0 %v1420
      %v1422 = vpop.f32.mrb[0].mxu0
      %v1423 = vadd.f32 %v1194, %v1422
      %v1424 = vpop.f32.mrb[0].mxu0
      %1425 = vmatprep.mubr.f32.mxu0 0.0
      %v1426 = vand.u32 %v348, 4294901760
      %1427 = vmatmul.mubr.f32.gmra.mrb[0].mxu0 %v1426
      %v1428 = vpop.f32.mrb[0].mxu0
      %v1429 = vadd.f32 %v1202, %v1428
      %v1430 = vpop.f32.mrb[0].mxu0
      %1431 = vmatprep.mubr.f32.mxu0 0.0
      %v1432 = vand.u32 %v351, 4294901760
      %1433 = vmatmul.mubr.f32.gmra.mrb[0].mxu0 %v1432
      %v1434 = vpop.f32.mrb[0].mxu0
      %v1435 = vadd.f32 %v1210, %v1434
      %v1436 = vpop.f32.mrb[0].mxu0
      %1437 = vmatprep.mubr.f32.mxu0 0.0
      %v1438 = vand.u32 %v354, 4294901760
      %1439 = vmatmul.mubr.f32.gmra.mrb[0].mxu0 %v1438
      %v1440 = vpop.f32.mrb[0].mxu0
      %v1441 = vadd.f32 %v1218, %v1440
      %v1442 = vpop.f32.mrb[0].mxu0
      %1443 = vmatprep.mubr.f32.mxu0 0.0
      %v1444 = vand.u32 %v357, 4294901760
      %1445 = vmatmul.mubr.f32.gmra.mrb[0].mxu0 %v1444
      %v1446 = vpop.f32.mrb[0].mxu0
      %v1447 = vadd.f32 %v1226, %v1446
      %v1448 = vpop.f32.mrb[0].mxu0
      %1449 = vmatprep.mubr.f32.mxu0 0.0
      %v1450 = vand.u32 %v360, 4294901760
      %1451 = vmatmul.mubr.f32.gmra.mrb[0].mxu0 %v1450
      %v1452 = vpop.f32.mrb[0].mxu0
      %v1453 = vadd.f32 %v1234, %v1452
      %v1454 = vpop.f32.mrb[0].mxu0
      %1455 = vmatprep.mubr.f32.mxu0 0.0
      %v1456 = vand.u32 %v363, 4294901760
      %1457 = vmatmul.mubr.f32.gmra.mrb[0].mxu0 %v1456
      %v1458 = vpop.f32.mrb[0].mxu0
      %v1459 = vadd.f32 %v1242, %v1458
      %v1460 = vpop.f32.mrb[0].mxu0
      %1461 = vmatprep.mubr.f32.mxu0 0.0
      %v1462 = vand.u32 %v366, 4294901760
      %1463 = vmatmul.mubr.f32.gmra.mrb[0].mxu0 %v1462
      %v1464 = vpop.f32.mrb[0].mxu0
      %v1465 = vadd.f32 %v1250, %v1464
      %v1466 = vpop.f32.mrb[0].mxu0
      %1467 = vmatprep.mubr.f32.mxu0 0.0
      %v1468 = vand.u32 %v369, 4294901760
      %1469 = vmatmul.mubr.f32.gmra.mrb[0].mxu0 %v1468
      %v1470 = vpop.f32.mrb[0].mxu0
      %v1471 = vadd.f32 %v1258, %v1470
      %v1472 = vpop.f32.mrb[0].mxu0
      %1473 = vmatprep.mubr.f32.mxu0 0.0
      %v1474 = vand.u32 %v372, 4294901760
      %1475 = vmatmul.mubr.f32.gmra.mrb[0].mxu0 %v1474
      %v1476 = vpop.f32.mrb[0].mxu0
      %v1477 = vadd.f32 %v1266, %v1476
      %v1478 = vpop.f32.mrb[0].mxu0
      %1479 = vmatprep.mubr.f32.mxu0 0.0
      %v1480 = vand.u32 %v375, 4294901760
      %1481 = vmatmul.mubr.f32.gmra.mrb[0].mxu0 %v1480
      %v1482 = vpop.f32.mrb[0].mxu0
      %v1483 = vadd.f32 %v1274, %v1482
      %v1484 = vpop.f32.mrb[0].mxu0
      %1485 = vdwg.mxu0
      %1486 = vmatprep.subr.mxu0 0.0
      %v1487 = vand.u32 %v330, 4294901760
      %1488 = vmatpush1.xpose.msra.mxu0 %v1487
      %1489 = vmatprep.subr.mxu0 0.0
      %v1490 = vand.u32 %v333, 4294901760
      %1491 = vmatpush1.xpose.msra.mxu0 %v1490
      %1492 = vmatprep.subr.mxu0 0.0
      %v1493 = vand.u32 %v336, 4294901760
      %1494 = vmatpush1.xpose.msra.mxu0 %v1493
      %1495 = vmatprep.subr.mxu0 0.0
      %v1496 = vand.u32 %v339, 4294901760
      %1497 = vmatpush1.xpose.msra.mxu0 %v1496
      %1498 = vmatprep.subr.mxu0 0.0
      %v1499 = vand.u32 %v342, 4294901760
      %1500 = vmatpush1.xpose.msra.mxu0 %v1499
      %1501 = vmatprep.subr.mxu0 0.0
      %v1502 = vand.u32 %v345, 4294901760
      %1503 = vmatpush1.xpose.msra.mxu0 %v1502
      %1504 = vmatprep.subr.mxu0 0.0
      %v1505 = vand.u32 %v348, 4294901760
      %1506 = vmatpush1.xpose.msra.mxu0 %v1505
      %1507 = vmatprep.subr.mxu0 0.0
      %v1508 = vand.u32 %v351, 4294901760
      %1509 = vmatpush1.xpose.msra.mxu0 %v1508
      %1510 = vmatprep.subr.mxu0 0.0
      %v1511 = vand.u32 %v354, 4294901760
      %1512 = vmatpush1.xpose.msra.mxu0 %v1511
      %1513 = vmatprep.subr.mxu0 0.0
      %v1514 = vand.u32 %v357, 4294901760
      %1515 = vmatpush1.xpose.msra.mxu0 %v1514
      %1516 = vmatprep.subr.mxu0 0.0
      %v1517 = vand.u32 %v360, 4294901760
      %1518 = vmatpush1.xpose.msra.mxu0 %v1517
      %1519 = vmatprep.subr.mxu0 0.0
      %v1520 = vand.u32 %v363, 4294901760
      %1521 = vmatpush1.xpose.msra.mxu0 %v1520
      %1522 = vmatprep.subr.mxu0 0.0
      %v1523 = vand.u32 %v366, 4294901760
      %1524 = vmatpush1.xpose.msra.mxu0 %v1523
      %1525 = vmatprep.subr.mxu0 0.0
      %v1526 = vand.u32 %v369, 4294901760
      %1527 = vmatpush1.xpose.msra.mxu0 %v1526
      %1528 = vmatprep.subr.mxu0 0.0
      %v1529 = vand.u32 %v372, 4294901760
      %1530 = vmatpush1.xpose.msra.mxu0 %v1529
      %1531 = vmatprep.subr.mxu0 0.0
      %v1532 = vand.u32 %v375, 4294901760
      %1533 = vmatpush1.xpose.msra.mxu0 %v1532
      %1534 = vmatprep.subr.mxu0 0.0
      %1535 = vmatpush1.xpose.msra.mxu0 0.0
      %1536 = vmatprep.subr.mxu0 0.0
      %1537 = vmatpush1.xpose.msra.mxu0 0.0
      %1538 = vmatprep.subr.mxu0 0.0
      %1539 = vmatpush1.xpose.msra.mxu0 0.0
      %1540 = vmatprep.subr.mxu0 0.0
      %1541 = vmatpush1.xpose.msra.mxu0 0.0
      %1542 = vmatprep.subr.mxu0 0.0
      %1543 = vmatpush1.xpose.msra.mxu0 0.0
      %1544 = vmatprep.subr.mxu0 0.0
      %1545 = vmatpush1.xpose.msra.mxu0 0.0
      %1546 = vmatprep.subr.mxu0 0.0
      %1547 = vmatpush1.xpose.msra.mxu0 0.0
      %1548 = vmatprep.subr.mxu0 0.0
      %1549 = vmatpush1.xpose.msra.mxu0 0.0
      %1550 = vmatprep.subr.mxu0 0.0
      %1551 = vmatpush1.xpose.msra.mxu0 0.0
      %1552 = vmatprep.subr.mxu0 0.0
      %1553 = vmatpush1.xpose.msra.mxu0 0.0
      %1554 = vmatprep.subr.mxu0 0.0
      %1555 = vmatpush1.xpose.msra.mxu0 0.0
      %1556 = vmatprep.subr.mxu0 0.0
      %1557 = vmatpush1.xpose.msra.mxu0 0.0
      %1558 = vmatprep.subr.mxu0 0.0
      %1559 = vmatpush1.xpose.msra.mxu0 0.0
      %1560 = vmatprep.subr.mxu0 0.0
      %1561 = vmatpush1.xpose.msra.mxu0 0.0
      %1562 = vmatprep.subr.mxu0 0.0
      %1563 = vmatpush1.xpose.msra.mxu0 0.0
      %1564 = vmatprep.subr.mxu0 0.0
      %1565 = vmatpush1.xpose.msra.mxu0 0.0
      %1566 = vmatprep.mubr.f32.mxu0 0.0
      %v1567 = vand.u32 %v330, 4294901760
      %1568 = vmatmul.mubr.f32.gmra.mrb[0].mxu0 %v1567
      %v1569 = vpop.f32.mrb[0].mxu0
      %v1570 = vadd.f32 %v1393, %v1569
      %v1571 = vpop.f32.mrb[0].mxu0
      %1572 = vmatprep.mubr.f32.mxu0 0.0
      %v1573 = vand.u32 %v333, 4294901760
      %1574 = vmatmul.mubr.f32.gmra.mrb[0].mxu0 %v1573
      %v1575 = vpop.f32.mrb[0].mxu0
      %v1576 = vadd.f32 %v1399, %v1575
      %v1577 = vpop.f32.mrb[0].mxu0
      %1578 = vmatprep.mubr.f32.mxu0 0.0
      %v1579 = vand.u32 %v336, 4294901760
      %1580 = vmatmul.mubr.f32.gmra.mrb[0].mxu0 %v1579
      %v1581 = vpop.f32.mrb[0].mxu0
      %v1582 = vadd.f32 %v1405, %v1581
      %v1583 = vpop.f32.mrb[0].mxu0
      %1584 = vmatprep.mubr.f32.mxu0 0.0
      %v1585 = vand.u32 %v339, 4294901760
      %1586 = vmatmul.mubr.f32.gmra.mrb[0].mxu0 %v1585
      %v1587 = vpop.f32.mrb[0].mxu0
      %v1588 = vadd.f32 %v1411, %v1587
      %v1589 = vpop.f32.mrb[0].mxu0
      %1590 = vmatprep.mubr.f32.mxu0 0.0
      %v1591 = vand.u32 %v342, 4294901760
      %1592 = vmatmul.mubr.f32.gmra.mrb[0].mxu0 %v1591
      %v1593 = vpop.f32.mrb[0].mxu0
      %v1594 = vadd.f32 %v1417, %v1593
      %v1595 = vpop.f32.mrb[0].mxu0
      %1596 = vmatprep.mubr.f32.mxu0 0.0
      %v1597 = vand.u32 %v345, 4294901760
      %1598 = vmatmul.mubr.f32.gmra.mrb[0].mxu0 %v1597
      %v1599 = vpop.f32.mrb[0].mxu0
      %v1600 = vadd.f32 %v1423, %v1599
      %v1601 = vpop.f32.mrb[0].mxu0
      %1602 = vmatprep.mubr.f32.mxu0 0.0
      %v1603 = vand.u32 %v348, 4294901760
      %1604 = vmatmul.mubr.f32.gmra.mrb[0].mxu0 %v1603
      %v1605 = vpop.f32.mrb[0].mxu0
      %v1606 = vadd.f32 %v1429, %v1605
      %v1607 = vpop.f32.mrb[0].mxu0
      %1608 = vmatprep.mubr.f32.mxu0 0.0
      %v1609 = vand.u32 %v351, 4294901760
      %1610 = vmatmul.mubr.f32.gmra.mrb[0].mxu0 %v1609
      %v1611 = vpop.f32.mrb[0].mxu0
      %v1612 = vadd.f32 %v1435, %v1611
      %v1613 = vpop.f32.mrb[0].mxu0
      %1614 = vmatprep.mubr.f32.mxu0 0.0
      %v1615 = vand.u32 %v354, 4294901760
      %1616 = vmatmul.mubr.f32.gmra.mrb[0].mxu0 %v1615
      %v1617 = vpop.f32.mrb[0].mxu0
      %v1618 = vadd.f32 %v1441, %v1617
      %v1619 = vpop.f32.mrb[0].mxu0
      %1620 = vmatprep.mubr.f32.mxu0 0.0
      %v1621 = vand.u32 %v357, 4294901760
      %1622 = vmatmul.mubr.f32.gmra.mrb[0].mxu0 %v1621
      %v1623 = vpop.f32.mrb[0].mxu0
      %v1624 = vadd.f32 %v1447, %v1623
      %v1625 = vpop.f32.mrb[0].mxu0
      %1626 = vmatprep.mubr.f32.mxu0 0.0
      %v1627 = vand.u32 %v360, 4294901760
      %1628 = vmatmul.mubr.f32.gmra.mrb[0].mxu0 %v1627
      %v1629 = vpop.f32.mrb[0].mxu0
      %v1630 = vadd.f32 %v1453, %v1629
      %v1631 = vpop.f32.mrb[0].mxu0
      %1632 = vmatprep.mubr.f32.mxu0 0.0
      %v1633 = vand.u32 %v363, 4294901760
      %1634 = vmatmul.mubr.f32.gmra.mrb[0].mxu0 %v1633
      %v1635 = vpop.f32.mrb[0].mxu0
      %v1636 = vadd.f32 %v1459, %v1635
      %v1637 = vpop.f32.mrb[0].mxu0
      %1638 = vmatprep.mubr.f32.mxu0 0.0
      %v1639 = vand.u32 %v366, 4294901760
      %1640 = vmatmul.mubr.f32.gmra.mrb[0].mxu0 %v1639
      %v1641 = vpop.f32.mrb[0].mxu0
      %v1642 = vadd.f32 %v1465, %v1641
      %v1643 = vpop.f32.mrb[0].mxu0
      %1644 = vmatprep.mubr.f32.mxu0 0.0
      %v1645 = vand.u32 %v369, 4294901760
      %1646 = vmatmul.mubr.f32.gmra.mrb[0].mxu0 %v1645
      %v1647 = vpop.f32.mrb[0].mxu0
      %v1648 = vadd.f32 %v1471, %v1647
      %v1649 = vpop.f32.mrb[0].mxu0
      %1650 = vmatprep.mubr.f32.mxu0 0.0
      %v1651 = vand.u32 %v372, 4294901760
      %1652 = vmatmul.mubr.f32.gmra.mrb[0].mxu0 %v1651
      %v1653 = vpop.f32.mrb[0].mxu0
      %v1654 = vadd.f32 %v1477, %v1653
      %v1655 = vpop.f32.mrb[0].mxu0
      %1656 = vmatprep.mubr.f32.mxu0 0.0
      %v1657 = vand.u32 %v375, 4294901760
      %1658 = vmatmul.mubr.f32.gmra.mrb[0].mxu0 %v1657
      %v1659 = vpop.f32.mrb[0].mxu0
      %v1660 = vadd.f32 %v1483, %v1659
      %v1661 = vpop.f32.mrb[0].mxu0
      %1662 = vdwg.mxu0
      %v1663 = vmul.f32 %v313, %v313
      %v1664 = vmul.f32 %v314, %v314
      %v1665 = vmul.f32 %v315, %v315
      %v1666 = vmul.f32 %v316, %v316
      %v1667 = vmul.f32 %v317, %v317
      %v1668 = vmul.f32 %v318, %v318
      %v1669 = vmul.f32 %v319, %v319
      %v1670 = vmul.f32 %v320, %v320
      %v1671 = vmul.f32 %v321, %v321
      %v1672 = vmul.f32 %v322, %v322
      %v1673 = vmul.f32 %v323, %v323
      %v1674 = vmul.f32 %v324, %v324
      %v1675 = vmul.f32 %v325, %v325
      %v1676 = vmul.f32 %v326, %v326
      %v1677 = vmul.f32 %v327, %v327
      %v1678 = vmul.f32 %v328, %v328
      %v1679 = vsel %vm189, %v1663, 0.0
      %1680 = vadd.xlane.f32.xlu0 %v1679
      %v1681 = vpop.xlane.xlu0 %1680
      %v1682 = vsel %vm189, %v1664, 0.0
      %1683 = vadd.xlane.f32.xlu0 %v1682
      %v1684 = vpop.xlane.xlu0 %1683
      %v1685 = vsel %vm189, %v1665, 0.0
      %1686 = vadd.xlane.f32.xlu0 %v1685
      %v1687 = vpop.xlane.xlu0 %1686
      %v1688 = vsel %vm189, %v1666, 0.0
      %1689 = vadd.xlane.f32.xlu0 %v1688
      %v1690 = vpop.xlane.xlu0 %1689
      %v1691 = vsel %vm189, %v1667, 0.0
      %1692 = vadd.xlane.f32.xlu0 %v1691
      %v1693 = vpop.xlane.xlu0 %1692
      %v1694 = vsel %vm189, %v1668, 0.0
      %1695 = vadd.xlane.f32.xlu0 %v1694
      %v1696 = vpop.xlane.xlu0 %1695
      %v1697 = vsel %vm189, %v1669, 0.0
      %1698 = vadd.xlane.f32.xlu0 %v1697
      %v1699 = vpop.xlane.xlu0 %1698
      %v1700 = vsel %vm189, %v1670, 0.0
      %1701 = vadd.xlane.f32.xlu0 %v1700
      %v1702 = vpop.xlane.xlu0 %1701
      %v1703 = vsel %vm189, %v1671, 0.0
      %1704 = vadd.xlane.f32.xlu0 %v1703
      %v1705 = vpop.xlane.xlu0 %1704
      %v1706 = vsel %vm189, %v1672, 0.0
      %1707 = vadd.xlane.f32.xlu0 %v1706
      %v1708 = vpop.xlane.xlu0 %1707
      %v1709 = vsel %vm189, %v1673, 0.0
      %1710 = vadd.xlane.f32.xlu0 %v1709
      %v1711 = vpop.xlane.xlu0 %1710
      %v1712 = vsel %vm189, %v1674, 0.0
      %1713 = vadd.xlane.f32.xlu0 %v1712
      %v1714 = vpop.xlane.xlu0 %1713
      %v1715 = vsel %vm189, %v1675, 0.0
      %1716 = vadd.xlane.f32.xlu0 %v1715
      %v1717 = vpop.xlane.xlu0 %1716
      %v1718 = vsel %vm189, %v1676, 0.0
      %1719 = vadd.xlane.f32.xlu0 %v1718
      %v1720 = vpop.xlane.xlu0 %1719
      %v1721 = vsel %vm189, %v1677, 0.0
      %1722 = vadd.xlane.f32.xlu0 %v1721
      %v1723 = vpop.xlane.xlu0 %1722
      %v1724 = vsel %vm189, %v1678, 0.0
      %1725 = vadd.xlane.f32.xlu0 %v1724
      %v1726 = vpop.xlane.xlu0 %1725
      %1727 = vxpose.xlu0.b32.start [1/16] %v1681, 128
      %1728 = vxpose.xlu0.b32.cont [2/16] %v1684, 128
      %1729 = vxpose.xlu0.b32.cont [3/16] %v1687, 128
      %1730 = vxpose.xlu0.b32.cont [4/16] %v1690, 128
      %1731 = vxpose.xlu0.b32.cont [5/16] %v1693, 128
      %1732 = vxpose.xlu0.b32.cont [6/16] %v1696, 128
      %1733 = vxpose.xlu0.b32.cont [7/16] %v1699, 128
      %1734 = vxpose.xlu0.b32.cont [8/16] %v1702, 128
      %1735 = vxpose.xlu0.b32.cont [9/16] %v1705, 128
      %1736 = vxpose.xlu0.b32.cont [10/16] %v1708, 128
      %1737 = vxpose.xlu0.b32.cont [11/16] %v1711, 128
      %1738 = vxpose.xlu0.b32.cont [12/16] %v1714, 128
      %1739 = vxpose.xlu0.b32.cont [13/16] %v1717, 128
      %1740 = vxpose.xlu0.b32.cont [14/16] %v1720, 128
      %1741 = vxpose.xlu0.b32.cont [15/16] %v1723, 128
      %1742 = vxpose.xlu0.b32.end [16/16] %v1726, 128
      %v1743 = vpop.trf.xlu0
      %v1744 = vpop.trf.xlu0
      %v1745 = vpop.trf.xlu0
      %v1746 = vpop.trf.xlu0
      %v1747 = vpop.trf.xlu0
      %v1748 = vpop.trf.xlu0
      %v1749 = vpop.trf.xlu0
      %v1750 = vpop.trf.xlu0
      %v1751 = vpop.trf.xlu0
      %v1752 = vpop.trf.xlu0
      %v1753 = vpop.trf.xlu0
      %v1754 = vpop.trf.xlu0
      %v1755 = vpop.trf.xlu0
      %v1756 = vpop.trf.xlu0
      %v1757 = vpop.trf.xlu0
      %v1758 = vpop.trf.xlu0
      %v1759 = vlaneseq
      %v1760 = vshrl.u32 %v1759, 7
      %v1761 = vsub.s32 0, %v1760
      %v1762 = vrot.slane %v1743, %v1761
      %v1763 = vadd.f32 %v1681, %v1762
      %v1764 = vadd.f32 %v1684, %v1762
      %v1765 = vadd.f32 %v1687, %v1762
      %v1766 = vadd.f32 %v1690, %v1762
      %v1767 = vadd.f32 %v1693, %v1762
      %v1768 = vadd.f32 %v1696, %v1762
      %v1769 = vadd.f32 %v1699, %v1762
      %v1770 = vadd.f32 %v1702, %v1762
      %v1771 = vadd.f32 %v1705, %v1762
      %v1772 = vadd.f32 %v1708, %v1762
      %v1773 = vadd.f32 %v1711, %v1762
      %v1774 = vadd.f32 %v1714, %v1762
      %v1775 = vadd.f32 %v1717, %v1762
      %v1776 = vadd.f32 %v1720, %v1762
      %v1777 = vadd.f32 %v1723, %v1762
      %v1778 = vadd.f32 %v1726, %v1762
      %v1779 = vmul.f32 %v1570, 2.0
      %v1780 = vmul.f32 %v1576, 2.0
      %v1781 = vmul.f32 %v1582, 2.0
      %v1782 = vmul.f32 %v1588, 2.0
      %v1783 = vmul.f32 %v1594, 2.0
      %v1784 = vmul.f32 %v1600, 2.0
      %v1785 = vmul.f32 %v1606, 2.0
      %v1786 = vmul.f32 %v1612, 2.0
      %v1787 = vmul.f32 %v1618, 2.0
      %v1788 = vmul.f32 %v1624, 2.0
      %v1789 = vmul.f32 %v1630, 2.0
      %v1790 = vmul.f32 %v1636, 2.0
      %v1791 = vmul.f32 %v1642, 2.0
      %v1792 = vmul.f32 %v1648, 2.0
      %v1793 = vmul.f32 %v1654, 2.0
      %v1794 = vmul.f32 %v1660, 2.0
      %v1795 = vsub.f32 %v1763, %v1779
      %v1796 = vsub.f32 %v1764, %v1780
      %v1797 = vsub.f32 %v1765, %v1781
      %v1798 = vsub.f32 %v1766, %v1782
      %v1799 = vsub.f32 %v1767, %v1783
      %v1800 = vsub.f32 %v1768, %v1784
      %v1801 = vsub.f32 %v1769, %v1785
      %v1802 = vsub.f32 %v1770, %v1786
      %v1803 = vsub.f32 %v1771, %v1787
      %v1804 = vsub.f32 %v1772, %v1788
      %v1805 = vsub.f32 %v1773, %v1789
      %v1806 = vsub.f32 %v1774, %v1790
      %v1807 = vsub.f32 %v1775, %v1791
      %v1808 = vsub.f32 %v1776, %v1792
      %v1809 = vsub.f32 %v1777, %v1793
      %v1810 = vsub.f32 %v1778, %v1794
      %v1811 = vmax.f32 %v1795, 0.0
      %v1812 = vmax.f32 %v1796, 0.0
      %v1813 = vmax.f32 %v1797, 0.0
      %v1814 = vmax.f32 %v1798, 0.0
      %v1815 = vmax.f32 %v1799, 0.0
      %v1816 = vmax.f32 %v1800, 0.0
      %v1817 = vmax.f32 %v1801, 0.0
      %v1818 = vmax.f32 %v1802, 0.0
      %v1819 = vmax.f32 %v1803, 0.0
      %v1820 = vmax.f32 %v1804, 0.0
      %v1821 = vmax.f32 %v1805, 0.0
      %v1822 = vmax.f32 %v1806, 0.0
      %v1823 = vmax.f32 %v1807, 0.0
      %v1824 = vmax.f32 %v1808, 0.0
      %v1825 = vmax.f32 %v1809, 0.0
      %v1826 = vmax.f32 %v1810, 0.0
      %v1827 = vsel %vm189, %v313, -inf
      %1828 = vmax.xlane.f32.xlu0 %v1827
      %v1829 = vpop.xlane.xlu0 %1828
      %v1830 = vsel %vm189, %v314, -inf
      %1831 = vmax.xlane.f32.xlu0 %v1830
      %v1832 = vpop.xlane.xlu0 %1831
      %v1833 = vsel %vm189, %v315, -inf
      %1834 = vmax.xlane.f32.xlu0 %v1833
      %v1835 = vpop.xlane.xlu0 %1834
      %v1836 = vsel %vm189, %v316, -inf
      %1837 = vmax.xlane.f32.xlu0 %v1836
      %v1838 = vpop.xlane.xlu0 %1837
      %v1839 = vsel %vm189, %v317, -inf
      %1840 = vmax.xlane.f32.xlu0 %v1839
      %v1841 = vpop.xlane.xlu0 %1840
      %v1842 = vsel %vm189, %v318, -inf
      %1843 = vmax.xlane.f32.xlu0 %v1842
      %v1844 = vpop.xlane.xlu0 %1843
      %v1845 = vsel %vm189, %v319, -inf
      %1846 = vmax.xlane.f32.xlu0 %v1845
      %v1847 = vpop.xlane.xlu0 %1846
      %v1848 = vsel %vm189, %v320, -inf
      %1849 = vmax.xlane.f32.xlu0 %v1848
      %v1850 = vpop.xlane.xlu0 %1849
      %v1851 = vsel %vm189, %v321, -inf
      %1852 = vmax.xlane.f32.xlu0 %v1851
      %v1853 = vpop.xlane.xlu0 %1852
      %v1854 = vsel %vm189, %v322, -inf
      %1855 = vmax.xlane.f32.xlu0 %v1854
      %v1856 = vpop.xlane.xlu0 %1855
      %v1857 = vsel %vm189, %v323, -inf
      %1858 = vmax.xlane.f32.xlu0 %v1857
      %v1859 = vpop.xlane.xlu0 %1858
      %v1860 = vsel %vm189, %v324, -inf
      %1861 = vmax.xlane.f32.xlu0 %v1860
      %v1862 = vpop.xlane.xlu0 %1861
      %v1863 = vsel %vm189, %v325, -inf
      %1864 = vmax.xlane.f32.xlu0 %v1863
      %v1865 = vpop.xlane.xlu0 %1864
      %v1866 = vsel %vm189, %v326, -inf
      %1867 = vmax.xlane.f32.xlu0 %v1866
      %v1868 = vpop.xlane.xlu0 %1867
      %v1869 = vsel %vm189, %v327, -inf
      %1870 = vmax.xlane.f32.xlu0 %v1869
      %v1871 = vpop.xlane.xlu0 %1870
      %v1872 = vsel %vm189, %v328, -inf
      %1873 = vmax.xlane.f32.xlu0 %v1872
      %v1874 = vpop.xlane.xlu0 %1873
      %v1875 = vmax.f32 %v1829, %v1841
      %v1876 = vmax.f32 %v1832, %v1844
      %v1877 = vmax.f32 %v1835, %v1847
      %v1878 = vmax.f32 %v1838, %v1850
      %v1879 = vmax.f32 %v1875, %v1853
      %v1880 = vmax.f32 %v1876, %v1856
      %v1881 = vmax.f32 %v1877, %v1859
      %v1882 = vmax.f32 %v1878, %v1862
      %v1883 = vmax.f32 %v1879, %v1865
      %v1884 = vmax.f32 %v1880, %v1868
      %v1885 = vmax.f32 %v1881, %v1871
      %v1886 = vmax.f32 %v1882, %v1874
      %v1887 = vmax.f32 %v1883, %v1884
      %v1888 = vmax.f32 %v1885, %v1886
      %v1889 = vmax.f32 %v1887, %v1888
      %v1890 = vrot.slane %v1889, 4
      %v1891 = vmax.f32 %v1889, %v1890
      %v1892 = vrot.slane %v1891, 2
      %v1893 = vmax.f32 %v1891, %v1892
      %v1894 = vrot.slane %v1893, 1
      %v1895 = vmax.f32 %v1893, %v1894
      %v1896 = vsel %vm189, %v313, inf
      %1897 = vmin.xlane.f32.xlu0 %v1896
      %v1898 = vpop.xlane.xlu0 %1897
      %v1899 = vsel %vm189, %v314, inf
      %1900 = vmin.xlane.f32.xlu0 %v1899
      %v1901 = vpop.xlane.xlu0 %1900
      %v1902 = vsel %vm189, %v315, inf
      %1903 = vmin.xlane.f32.xlu0 %v1902
      %v1904 = vpop.xlane.xlu0 %1903
      %v1905 = vsel %vm189, %v316, inf
      %1906 = vmin.xlane.f32.xlu0 %v1905
      %v1907 = vpop.xlane.xlu0 %1906
      %v1908 = vsel %vm189, %v317, inf
      %1909 = vmin.xlane.f32.xlu0 %v1908
      %v1910 = vpop.xlane.xlu0 %1909
      %v1911 = vsel %vm189, %v318, inf
      %1912 = vmin.xlane.f32.xlu0 %v1911
      %v1913 = vpop.xlane.xlu0 %1912
      %v1914 = vsel %vm189, %v319, inf
      %1915 = vmin.xlane.f32.xlu0 %v1914
      %v1916 = vpop.xlane.xlu0 %1915
      %v1917 = vsel %vm189, %v320, inf
      %1918 = vmin.xlane.f32.xlu0 %v1917
      %v1919 = vpop.xlane.xlu0 %1918
      %v1920 = vsel %vm189, %v321, inf
      %1921 = vmin.xlane.f32.xlu0 %v1920
      %v1922 = vpop.xlane.xlu0 %1921
      %v1923 = vsel %vm189, %v322, inf
      %1924 = vmin.xlane.f32.xlu0 %v1923
      %v1925 = vpop.xlane.xlu0 %1924
      %v1926 = vsel %vm189, %v323, inf
      %1927 = vmin.xlane.f32.xlu0 %v1926
      %v1928 = vpop.xlane.xlu0 %1927
      %v1929 = vsel %vm189, %v324, inf
      %1930 = vmin.xlane.f32.xlu0 %v1929
      %v1931 = vpop.xlane.xlu0 %1930
      %v1932 = vsel %vm189, %v325, inf
      %1933 = vmin.xlane.f32.xlu0 %v1932
      %v1934 = vpop.xlane.xlu0 %1933
      %v1935 = vsel %vm189, %v326, inf
      %1936 = vmin.xlane.f32.xlu0 %v1935
      %v1937 = vpop.xlane.xlu0 %1936
      %v1938 = vsel %vm189, %v327, inf
      %1939 = vmin.xlane.f32.xlu0 %v1938
      %v1940 = vpop.xlane.xlu0 %1939
      %v1941 = vsel %vm189, %v328, inf
      %1942 = vmin.xlane.f32.xlu0 %v1941
      %v1943 = vpop.xlane.xlu0 %1942
      %v1944 = vmin.f32 %v1898, %v1910
      %v1945 = vmin.f32 %v1901, %v1913
      %v1946 = vmin.f32 %v1904, %v1916
      %v1947 = vmin.f32 %v1907, %v1919
      %v1948 = vmin.f32 %v1944, %v1922
      %v1949 = vmin.f32 %v1945, %v1925
      %v1950 = vmin.f32 %v1946, %v1928
      %v1951 = vmin.f32 %v1947, %v1931
      %v1952 = vmin.f32 %v1948, %v1934
      %v1953 = vmin.f32 %v1949, %v1937
      %v1954 = vmin.f32 %v1950, %v1940
      %v1955 = vmin.f32 %v1951, %v1943
      %v1956 = vmin.f32 %v1952, %v1953
      %v1957 = vmin.f32 %v1954, %v1955
      %v1958 = vmin.f32 %v1956, %v1957
      %v1959 = vrot.slane %v1958, 4
      %v1960 = vmin.f32 %v1958, %v1959
      %v1961 = vrot.slane %v1960, 2
      %v1962 = vmin.f32 %v1960, %v1961
      %v1963 = vrot.slane %v1962, 1
      %v1964 = vmin.f32 %v1962, %v1963
      %v1965 = vsub.f32 %v1895, %v1964
      %v1966 = vmax.f32 %v1965, 0.05
      // While loop
      $region29: #{tpu_custom_call.1} parent=27 // loop_pre_header
        _
      $region30: #{tpu_custom_call.1} parent=27 // loop_header
        %s1968 = sphi 0, %s2443
        %v1969 = vphi 0.0, %v2416
        %v1970 = vphi 0.0, %v2417
        %v1971 = vphi 0.0, %v2418
        %v1972 = vphi 0.0, %v2419
        %v1973 = vphi 0.0, %v2420
        %v1974 = vphi 0.0, %v2421
        %v1975 = vphi 0.0, %v2422
        %v1976 = vphi 0.0, %v2423
        %v1977 = vphi 0.0, %v2424
        %v1978 = vphi 0.0, %v2425
        %v1979 = vphi 0.0, %v2426
        %v1980 = vphi 0.0, %v2427
        %v1981 = vphi 0.0, %v2428
        %v1982 = vphi 0.0, %v2429
        %v1983 = vphi 0.0, %v2430
        %v1984 = vphi 0.0, %v2431
        %v1985 = vphi 0.0, %v2432
        %v1986 = vphi %v1966, %v2442
        %v1987 = vphi %v1966, %v2433
        %v1988 = vphi 0.0, %v2437
        %s1989 = sphi 1, %s2440
        %p1990 = scmp.lt.s32.totalorder %s1968, 100
        %p1991 = scmp.gt.s32.totalorder %s1989, 0
        %p1992 = pnand %p1990, %p1991
        %p1993 = pneg %p1992
      $region31: #{tpu_custom_call.1} parent=27 // loop_header_branch
        %1995 = sbr.rel (%p1992) target = $region35
      $region32: #{tpu_custom_call.1} parent=27 // loop_body
        %v1996 = vrcp.pop %v1986
        %v1997 = vmul.f32 1.0, %v1996
        %v1998 = vmul.f32 %v1811, %v1997
        %v1999 = vmul.f32 %v1812, %v1997
        %v2000 = vmul.f32 %v1813, %v1997
        %v2001 = vmul.f32 %v1814, %v1997
        %v2002 = vmul.f32 %v1815, %v1997
        %v2003 = vmul.f32 %v1816, %v1997
        %v2004 = vmul.f32 %v1817, %v1997
        %v2005 = vmul.f32 %v1818, %v1997
        %v2006 = vmul.f32 %v1819, %v1997
        %v2007 = vmul.f32 %v1820, %v1997
        %v2008 = vmul.f32 %v1821, %v1997
        %v2009 = vmul.f32 %v1822, %v1997
        %v2010 = vmul.f32 %v1823, %v1997
        %v2011 = vmul.f32 %v1824, %v1997
        %v2012 = vmul.f32 %v1825, %v1997
        %v2013 = vmul.f32 %v1826, %v1997
        %v2014 = vmul.f32 %v1970, %v1997
        %v2015 = vmul.f32 %v1971, %v1997
        %v2016 = vmul.f32 %v1972, %v1997
        %v2017 = vmul.f32 %v1973, %v1997
        %v2018 = vmul.f32 %v1974, %v1997
        %v2019 = vmul.f32 %v1975, %v1997
        %v2020 = vmul.f32 %v1976, %v1997
        %v2021 = vmul.f32 %v1977, %v1997
        %v2022 = vmul.f32 %v1978, %v1997
        %v2023 = vmul.f32 %v1979, %v1997
        %v2024 = vmul.f32 %v1980, %v1997
        %v2025 = vmul.f32 %v1981, %v1997
        %v2026 = vmul.f32 %v1982, %v1997
        %v2027 = vmul.f32 %v1983, %v1997
        %v2028 = vmul.f32 %v1984, %v1997
        %v2029 = vmul.f32 %v1985, %v1997
        %v2030 = vadd.f32 %v2014, -4.8520303
        %v2031 = vadd.f32 %v2015, -4.8520303
        %v2032 = vadd.f32 %v2016, -4.8520303
        %v2033 = vadd.f32 %v2017, -4.8520303
        %v2034 = vadd.f32 %v2018, -4.8520303
        %v2035 = vadd.f32 %v2019, -4.8520303
        %v2036 = vadd.f32 %v2020, -4.8520303
        %v2037 = vadd.f32 %v2021, -4.8520303
        %v2038 = vadd.f32 %v2022, -4.8520303
        %v2039 = vadd.f32 %v2023, -4.8520303
        %v2040 = vadd.f32 %v2024, -4.8520303
        %v2041 = vadd.f32 %v2025, -4.8520303
        %v2042 = vadd.f32 %v2026, -4.8520303
        %v2043 = vadd.f32 %v2027, -4.8520303
        %v2044 = vadd.f32 %v2028, -4.8520303
        %v2045 = vadd.f32 %v2029, -4.8520303
        %v2046 = vsub.f32 %v2030, %v1998
        %v2047 = vsub.f32 %v2031, %v1999
        %v2048 = vsub.f32 %v2032, %v2000
        %v2049 = vsub.f32 %v2033, %v2001
        %v2050 = vsub.f32 %v2034, %v2002
        %v2051 = vsub.f32 %v2035, %v2003
        %v2052 = vsub.f32 %v2036, %v2004
        %v2053 = vsub.f32 %v2037, %v2005
        %v2054 = vsub.f32 %v2038, %v2006
        %v2055 = vsub.f32 %v2039, %v2007
        %v2056 = vsub.f32 %v2040, %v2008
        %v2057 = vsub.f32 %v2041, %v2009
        %v2058 = vsub.f32 %v2042, %v2010
        %v2059 = vsub.f32 %v2043, %v2011
        %v2060 = vsub.f32 %v2044, %v2012
        %v2061 = vsub.f32 %v2045, %v2013
        %v2062 = vmax.f32 %v2046, %v2050
        %v2063 = vmax.f32 %v2047, %v2051
        %v2064 = vmax.f32 %v2048, %v2052
        %v2065 = vmax.f32 %v2049, %v2053
        %v2066 = vmax.f32 %v2062, %v2054
        %v2067 = vmax.f32 %v2063, %v2055
        %v2068 = vmax.f32 %v2064, %v2056
        %v2069 = vmax.f32 %v2065, %v2057
        %v2070 = vmax.f32 %v2066, %v2058
        %v2071 = vmax.f32 %v2067, %v2059
        %v2072 = vmax.f32 %v2068, %v2060
        %v2073 = vmax.f32 %v2069, %v2061
        %v2074 = vmax.f32 %v2070, %v2071
        %v2075 = vmax.f32 %v2072, %v2073
        %v2076 = vmax.f32 %v2074, %v2075
        %v2077 = vrot.slane %v2076, 4
        %v2078 = vmax.f32 %v2076, %v2077
        %v2079 = vrot.slane %v2078, 2
        %v2080 = vmax.f32 %v2078, %v2079
        %v2081 = vrot.slane %v2080, 1
        %v2082 = vmax.f32 %v2080, %v2081
        %v2083 = vsub.f32 0.0, %v1986
        %v2084 = vsub.f32 %v2046, %v2082
        %v2085 = vsub.f32 %v2047, %v2082
        %v2086 = vsub.f32 %v2048, %v2082
        %v2087 = vsub.f32 %v2049, %v2082
        %v2088 = vsub.f32 %v2050, %v2082
        %v2089 = vsub.f32 %v2051, %v2082
        %v2090 = vsub.f32 %v2052, %v2082
        %v2091 = vsub.f32 %v2053, %v2082
        %v2092 = vsub.f32 %v2054, %v2082
        %v2093 = vsub.f32 %v2055, %v2082
        %v2094 = vsub.f32 %v2056, %v2082
        %v2095 = vsub.f32 %v2057, %v2082
        %v2096 = vsub.f32 %v2058, %v2082
        %v2097 = vsub.f32 %v2059, %v2082
        %v2098 = vsub.f32 %v2060, %v2082
        %v2099 = vsub.f32 %v2061, %v2082
        %v2100 = vmul.f32 %v2084, 1.442695
        %v2101 = vpow.pop %v2100
        %v2102 = vmul.f32 %v2085, 1.442695
        %v2103 = vpow.pop %v2102
        %v2104 = vmul.f32 %v2086, 1.442695
        %v2105 = vpow.pop %v2104
        %v2106 = vmul.f32 %v2087, 1.442695
        %v2107 = vpow.pop %v2106
        %v2108 = vmul.f32 %v2088, 1.442695
        %v2109 = vpow.pop %v2108
        %v2110 = vmul.f32 %v2089, 1.442695
        %v2111 = vpow.pop %v2110
        %v2112 = vmul.f32 %v2090, 1.442695
        %v2113 = vpow.pop %v2112
        %v2114 = vmul.f32 %v2091, 1.442695
        %v2115 = vpow.pop %v2114
        %v2116 = vmul.f32 %v2092, 1.442695
        %v2117 = vpow.pop %v2116
        %v2118 = vmul.f32 %v2093, 1.442695
        %v2119 = vpow.pop %v2118
        %v2120 = vmul.f32 %v2094, 1.442695
        %v2121 = vpow.pop %v2120
        %v2122 = vmul.f32 %v2095, 1.442695
        %v2123 = vpow.pop %v2122
        %v2124 = vmul.f32 %v2096, 1.442695
        %v2125 = vpow.pop %v2124
        %v2126 = vmul.f32 %v2097, 1.442695
        %v2127 = vpow.pop %v2126
        %v2128 = vmul.f32 %v2098, 1.442695
        %v2129 = vpow.pop %v2128
        %v2130 = vmul.f32 %v2099, 1.442695
        %v2131 = vpow.pop %v2130
        %v2132 = vadd.f32 %v2101, %v2103
        %v2133 = vadd.f32 %v2132, %v2105
        %v2134 = vadd.f32 %v2133, %v2107
        %v2135 = vadd.f32 %v2134, %v2109
        %v2136 = vadd.f32 %v2135, %v2111
        %v2137 = vadd.f32 %v2136, %v2113
        %v2138 = vadd.f32 %v2137, %v2115
        %v2139 = vadd.f32 %v2138, %v2117
        %v2140 = vadd.f32 %v2139, %v2119
        %v2141 = vadd.f32 %v2140, %v2121
        %v2142 = vadd.f32 %v2141, %v2123
        %v2143 = vadd.f32 %v2142, %v2125
        %v2144 = vadd.f32 %v2143, %v2127
        %v2145 = vadd.f32 %v2144, %v2129
        %v2146 = vadd.f32 %v2145, %v2131
        %v2147 = vrot.slane %v2146, 4
        %v2148 = vadd.f32 %v2146, %v2147
        %v2149 = vrot.slane %v2148, 2
        %v2150 = vadd.f32 %v2148, %v2149
        %v2151 = vrot.slane %v2150, 1
        %v2152 = vadd.f32 %v2150, %v2151
        %v2153 = vlog2.pop %v2152
        %v2154 = vmul.f32 %v2153, 0.6931472
        %v2155 = vadd.f32 %v2082, %v2154
        %v2156 = vmul.f32 %v2083, %v2155
        %v2157 = vmul.f32 %v2156, %v1997
        %v2158 = vadd.f32 %v2157, %v188
        %v2159 = vlaneseq
        %v2160 = vshrl.u32 %v2159, 7
        %v2161 = vsub.s32 0, %v2160
        %v2162 = vrot.slane %v2158, %v2161
        %v2163 = vsub.f32 %v2162, %v1998
        %v2164 = vsub.f32 %v2162, %v1999
        %v2165 = vsub.f32 %v2162, %v2000
        %v2166 = vsub.f32 %v2162, %v2001
        %v2167 = vsub.f32 %v2162, %v2002
        %v2168 = vsub.f32 %v2162, %v2003
        %v2169 = vsub.f32 %v2162, %v2004
        %v2170 = vsub.f32 %v2162, %v2005
        %v2171 = vsub.f32 %v2162, %v2006
        %v2172 = vsub.f32 %v2162, %v2007
        %v2173 = vsub.f32 %v2162, %v2008
        %v2174 = vsub.f32 %v2162, %v2009
        %v2175 = vsub.f32 %v2162, %v2010
        %v2176 = vsub.f32 %v2162, %v2011
        %v2177 = vsub.f32 %v2162, %v2012
        %v2178 = vsub.f32 %v2162, %v2013
        %2179 = vmax.xlane.f32.xlu0 %v2163
        %v2180 = vpop.xlane.xlu0 %2179
        %2181 = vmax.xlane.f32.xlu0 %v2164
        %v2182 = vpop.xlane.xlu0 %2181
        %2183 = vmax.xlane.f32.xlu0 %v2165
        %v2184 = vpop.xlane.xlu0 %2183
        %2185 = vmax.xlane.f32.xlu0 %v2166
        %v2186 = vpop.xlane.xlu0 %2185
        %2187 = vmax.xlane.f32.xlu0 %v2167
        %v2188 = vpop.xlane.xlu0 %2187
        %2189 = vmax.xlane.f32.xlu0 %v2168
        %v2190 = vpop.xlane.xlu0 %2189
        %2191 = vmax.xlane.f32.xlu0 %v2169
        %v2192 = vpop.xlane.xlu0 %2191
        %2193 = vmax.xlane.f32.xlu0 %v2170
        %v2194 = vpop.xlane.xlu0 %2193
        %2195 = vmax.xlane.f32.xlu0 %v2171
        %v2196 = vpop.xlane.xlu0 %2195
        %2197 = vmax.xlane.f32.xlu0 %v2172
        %v2198 = vpop.xlane.xlu0 %2197
        %2199 = vmax.xlane.f32.xlu0 %v2173
        %v2200 = vpop.xlane.xlu0 %2199
        %2201 = vmax.xlane.f32.xlu0 %v2174
        %v2202 = vpop.xlane.xlu0 %2201
        %2203 = vmax.xlane.f32.xlu0 %v2175
        %v2204 = vpop.xlane.xlu0 %2203
        %2205 = vmax.xlane.f32.xlu0 %v2176
        %v2206 = vpop.xlane.xlu0 %2205
        %2207 = vmax.xlane.f32.xlu0 %v2177
        %v2208 = vpop.xlane.xlu0 %2207
        %2209 = vmax.xlane.f32.xlu0 %v2178
        %v2210 = vpop.xlane.xlu0 %2209
        %v2211 = vsub.f32 %v2163, %v2180
        %v2212 = vsub.f32 %v2164, %v2182
        %v2213 = vsub.f32 %v2165, %v2184
        %v2214 = vsub.f32 %v2166, %v2186
        %v2215 = vsub.f32 %v2167, %v2188
        %v2216 = vsub.f32 %v2168, %v2190
        %v2217 = vsub.f32 %v2169, %v2192
        %v2218 = vsub.f32 %v2170, %v2194
        %v2219 = vsub.f32 %v2171, %v2196
        %v2220 = vsub.f32 %v2172, %v2198
        %v2221 = vsub.f32 %v2173, %v2200
        %v2222 = vsub.f32 %v2174, %v2202
        %v2223 = vsub.f32 %v2175, %v2204
        %v2224 = vsub.f32 %v2176, %v2206
        %v2225 = vsub.f32 %v2177, %v2208
        %v2226 = vsub.f32 %v2178, %v2210
        %v2227 = vmul.f32 %v2211, 1.442695
        %v2228 = vpow.pop %v2227
        %v2229 = vmul.f32 %v2212, 1.442695
        %v2230 = vpow.pop %v2229
        %v2231 = vmul.f32 %v2213, 1.442695
        %v2232 = vpow.pop %v2231
        %v2233 = vmul.f32 %v2214, 1.442695
        %v2234 = vpow.pop %v2233
        %v2235 = vmul.f32 %v2215, 1.442695
        %v2236 = vpow.pop %v2235
        %v2237 = vmul.f32 %v2216, 1.442695
        %v2238 = vpow.pop %v2237
        %v2239 = vmul.f32 %v2217, 1.442695
        %v2240 = vpow.pop %v2239
        %v2241 = vmul.f32 %v2218, 1.442695
        %v2242 = vpow.pop %v2241
        %v2243 = vmul.f32 %v2219, 1.442695
        %v2244 = vpow.pop %v2243
        %v2245 = vmul.f32 %v2220, 1.442695
        %v2246 = vpow.pop %v2245
        %v2247 = vmul.f32 %v2221, 1.442695
        %v2248 = vpow.pop %v2247
        %v2249 = vmul.f32 %v2222, 1.442695
        %v2250 = vpow.pop %v2249
        %v2251 = vmul.f32 %v2223, 1.442695
        %v2252 = vpow.pop %v2251
        %v2253 = vmul.f32 %v2224, 1.442695
        %v2254 = vpow.pop %v2253
        %v2255 = vmul.f32 %v2225, 1.442695
        %v2256 = vpow.pop %v2255
        %v2257 = vmul.f32 %v2226, 1.442695
        %v2258 = vpow.pop %v2257
        %2259 = vadd.xlane.f32.xlu0 %v2228
        %v2260 = vpop.xlane.xlu0 %2259
        %2261 = vadd.xlane.f32.xlu0 %v2230
        %v2262 = vpop.xlane.xlu0 %2261
        %2263 = vadd.xlane.f32.xlu0 %v2232
        %v2264 = vpop.xlane.xlu0 %2263
        %2265 = vadd.xlane.f32.xlu0 %v2234
        %v2266 = vpop.xlane.xlu0 %2265
        %2267 = vadd.xlane.f32.xlu0 %v2236
        %v2268 = vpop.xlane.xlu0 %2267
        %2269 = vadd.xlane.f32.xlu0 %v2238
        %v2270 = vpop.xlane.xlu0 %2269
        %2271 = vadd.xlane.f32.xlu0 %v2240
        %v2272 = vpop.xlane.xlu0 %2271
        %2273 = vadd.xlane.f32.xlu0 %v2242
        %v2274 = vpop.xlane.xlu0 %2273
        %2275 = vadd.xlane.f32.xlu0 %v2244
        %v2276 = vpop.xlane.xlu0 %2275
        %2277 = vadd.xlane.f32.xlu0 %v2246
        %v2278 = vpop.xlane.xlu0 %2277
        %2279 = vadd.xlane.f32.xlu0 %v2248
        %v2280 = vpop.xlane.xlu0 %2279
        %2281 = vadd.xlane.f32.xlu0 %v2250
        %v2282 = vpop.xlane.xlu0 %2281
        %2283 = vadd.xlane.f32.xlu0 %v2252
        %v2284 = vpop.xlane.xlu0 %2283
        %2285 = vadd.xlane.f32.xlu0 %v2254
        %v2286 = vpop.xlane.xlu0 %2285
        %2287 = vadd.xlane.f32.xlu0 %v2256
        %v2288 = vpop.xlane.xlu0 %2287
        %2289 = vadd.xlane.f32.xlu0 %v2258
        %v2290 = vpop.xlane.xlu0 %2289
        %v2291 = vlog2.pop %v2260
        %v2292 = vmul.f32 %v2291, 0.6931472
        %v2293 = vlog2.pop %v2262
        %v2294 = vmul.f32 %v2293, 0.6931472
        %v2295 = vlog2.pop %v2264
        %v2296 = vmul.f32 %v2295, 0.6931472
        %v2297 = vlog2.pop %v2266
        %v2298 = vmul.f32 %v2297, 0.6931472
        %v2299 = vlog2.pop %v2268
        %v2300 = vmul.f32 %v2299, 0.6931472
        %v2301 = vlog2.pop %v2270
        %v2302 = vmul.f32 %v2301, 0.6931472
        %v2303 = vlog2.pop %v2272
        %v2304 = vmul.f32 %v2303, 0.6931472
        %v2305 = vlog2.pop %v2274
        %v2306 = vmul.f32 %v2305, 0.6931472
        %v2307 = vlog2.pop %v2276
        %v2308 = vmul.f32 %v2307, 0.6931472
        %v2309 = vlog2.pop %v2278
        %v2310 = vmul.f32 %v2309, 0.6931472
        %v2311 = vlog2.pop %v2280
        %v2312 = vmul.f32 %v2311, 0.6931472
        %v2313 = vlog2.pop %v2282
        %v2314 = vmul.f32 %v2313, 0.6931472
        %v2315 = vlog2.pop %v2284
        %v2316 = vmul.f32 %v2315, 0.6931472
        %v2317 = vlog2.pop %v2286
        %v2318 = vmul.f32 %v2317, 0.6931472
        %v2319 = vlog2.pop %v2288
        %v2320 = vmul.f32 %v2319, 0.6931472
        %v2321 = vlog2.pop %v2290
        %v2322 = vmul.f32 %v2321, 0.6931472
        %v2323 = vadd.f32 %v2180, %v2292
        %v2324 = vadd.f32 %v2182, %v2294
        %v2325 = vadd.f32 %v2184, %v2296
        %v2326 = vadd.f32 %v2186, %v2298
        %v2327 = vadd.f32 %v2188, %v2300
        %v2328 = vadd.f32 %v2190, %v2302
        %v2329 = vadd.f32 %v2192, %v2304
        %v2330 = vadd.f32 %v2194, %v2306
        %v2331 = vadd.f32 %v2196, %v2308
        %v2332 = vadd.f32 %v2198, %v2310
        %v2333 = vadd.f32 %v2200, %v2312
        %v2334 = vadd.f32 %v2202, %v2314
        %v2335 = vadd.f32 %v2204, %v2316
        %v2336 = vadd.f32 %v2206, %v2318
        %v2337 = vadd.f32 %v2208, %v2320
        %v2338 = vadd.f32 %v2210, %v2322
        %v2339 = vmul.f32 %v2083, %v2323
        %v2340 = vmul.f32 %v2083, %v2324
        %v2341 = vmul.f32 %v2083, %v2325
        %v2342 = vmul.f32 %v2083, %v2326
        %v2343 = vmul.f32 %v2083, %v2327
        %v2344 = vmul.f32 %v2083, %v2328
        %v2345 = vmul.f32 %v2083, %v2329
        %v2346 = vmul.f32 %v2083, %v2330
        %v2347 = vmul.f32 %v2083, %v2331
        %v2348 = vmul.f32 %v2083, %v2332
        %v2349 = vmul.f32 %v2083, %v2333
        %v2350 = vmul.f32 %v2083, %v2334
        %v2351 = vmul.f32 %v2083, %v2335
        %v2352 = vmul.f32 %v2083, %v2336
        %v2353 = vmul.f32 %v2083, %v2337
        %v2354 = vmul.f32 %v2083, %v2338
        %v2355 = vsub.f32 %v2156, %v1969
        %v2356 = vand.u32 2147483647, %v2355
        %2357 = vmax.xlane.f32.xlu0 %v2356
        %v2358 = vpop.xlane.xlu0 %2357
        %v2359 = vsub.f32 %v2339, %v1970
        %v2360 = vsub.f32 %v2340, %v1971
        %v2361 = vsub.f32 %v2341, %v1972
        %v2362 = vsub.f32 %v2342, %v1973
        %v2363 = vsub.f32 %v2343, %v1974
        %v2364 = vsub.f32 %v2344, %v1975
        %v2365 = vsub.f32 %v2345, %v1976
        %v2366 = vsub.f32 %v2346, %v1977
        %v2367 = vsub.f32 %v2347, %v1978
        %v2368 = vsub.f32 %v2348, %v1979
        %v2369 = vsub.f32 %v2349, %v1980
        %v2370 = vsub.f32 %v2350, %v1981
        %v2371 = vsub.f32 %v2351, %v1982
        %v2372 = vsub.f32 %v2352, %v1983
        %v2373 = vsub.f32 %v2353, %v1984
        %v2374 = vsub.f32 %v2354, %v1985
        %v2375 = vand.u32 2147483647, %v2359
        %v2376 = vand.u32 2147483647, %v2360
        %v2377 = vand.u32 2147483647, %v2361
        %v2378 = vand.u32 2147483647, %v2362
        %v2379 = vand.u32 2147483647, %v2363
        %v2380 = vand.u32 2147483647, %v2364
        %v2381 = vand.u32 2147483647, %v2365
        %v2382 = vand.u32 2147483647, %v2366
        %v2383 = vand.u32 2147483647, %v2367
        %v2384 = vand.u32 2147483647, %v2368
        %v2385 = vand.u32 2147483647, %v2369
        %v2386 = vand.u32 2147483647, %v2370
        %v2387 = vand.u32 2147483647, %v2371
        %v2388 = vand.u32 2147483647, %v2372
        %v2389 = vand.u32 2147483647, %v2373
        %v2390 = vand.u32 2147483647, %v2374
        %v2391 = vmax.f32 %v2375, %v2379
        %v2392 = vmax.f32 %v2376, %v2380
        %v2393 = vmax.f32 %v2377, %v2381
        %v2394 = vmax.f32 %v2378, %v2382
        %v2395 = vmax.f32 %v2391, %v2383
        %v2396 = vmax.f32 %v2392, %v2384
        %v2397 = vmax.f32 %v2393, %v2385
        %v2398 = vmax.f32 %v2394, %v2386
        %v2399 = vmax.f32 %v2395, %v2387
        %v2400 = vmax.f32 %v2396, %v2388
        %v2401 = vmax.f32 %v2397, %v2389
        %v2402 = vmax.f32 %v2398, %v2390
        %v2403 = vmax.f32 %v2399, %v2400
        %v2404 = vmax.f32 %v2401, %v2402
        %v2405 = vmax.f32 %v2403, %v2404
        %v2406 = vrot.slane %v2405, 4
        %v2407 = vmax.f32 %v2405, %v2406
        %v2408 = vrot.slane %v2407, 2
        %v2409 = vmax.f32 %v2407, %v2408
        %v2410 = vrot.slane %v2409, 1
        %v2411 = vmax.f32 %v2409, %v2410
        %v2412 = vmax.f32 %v2358, %v2411
        %vm2413 = vcmp.gt.f32.partialorder %v1988, 0.5
        %v2414 = vsel %vm2413, 1, 0
        %vm2415 = vcmp.eq.s32.totalorder %v2414, 1
        %v2416 = vsel %vm2415, %v1969, %v2156
        %v2417 = vsel %vm2415, %v1970, %v2339
        %v2418 = vsel %vm2415, %v1971, %v2340
        %v2419 = vsel %vm2415, %v1972, %v2341
        %v2420 = vsel %vm2415, %v1973, %v2342
        %v2421 = vsel %vm2415, %v1974, %v2343
        %v2422 = vsel %vm2415, %v1975, %v2344
        %v2423 = vsel %vm2415, %v1976, %v2345
        %v2424 = vsel %vm2415, %v1977, %v2346
        %v2425 = vsel %vm2415, %v1978, %v2347
        %v2426 = vsel %vm2415, %v1979, %v2348
        %v2427 = vsel %vm2415, %v1980, %v2349
        %v2428 = vsel %vm2415, %v1981, %v2350
        %v2429 = vsel %vm2415, %v1982, %v2351
        %v2430 = vsel %vm2415, %v1983, %v2352
        %v2431 = vsel %vm2415, %v1984, %v2353
        %v2432 = vsel %vm2415, %v1985, %v2354
        %v2433 = vsel %vm2413, %v1987, %v1986
        %vm2434 = vcmp.lt.f32.partialorder %v2412, 0.001
        %v2435 = vsel %vm2434, 1, 0
        %v2436 = vcvt.s32.f32 %v2435
        %v2437 = vmax.f32 %v1988, %v2436
        %s2438 = vtos %v2437
        %p2439 = scmp.lt.f32.partialorder %s2438, 0.5
        %s2440 = scalar_select %p2439, 1, 0
        %v2441 = vmul.f32 %v1986, 0.9
        %v2442 = vmax.f32 %v2441, 0.05
        %s2443 = sadd.s32 %s1968, 1
      $region33: #{tpu_custom_call.1} parent=27 // loop_footer
        _
      $region34: #{tpu_custom_call.1} parent=27 // loop_footer_branch
        %1967 = sbr.rel target = $region30
      $region35: #{tpu_custom_call.1} parent=27 // loop_exit
        _
      %v2444 = vadd.f32 %v1970, %v1969
      %v2445 = vadd.f32 %v1971, %v1969
      %v2446 = vadd.f32 %v1972, %v1969
      %v2447 = vadd.f32 %v1973, %v1969
      %v2448 = vadd.f32 %v1974, %v1969
      %v2449 = vadd.f32 %v1975, %v1969
      %v2450 = vadd.f32 %v1976, %v1969
      %v2451 = vadd.f32 %v1977, %v1969
      %v2452 = vadd.f32 %v1978, %v1969
      %v2453 = vadd.f32 %v1979, %v1969
      %v2454 = vadd.f32 %v1980, %v1969
      %v2455 = vadd.f32 %v1981, %v1969
      %v2456 = vadd.f32 %v1982, %v1969
      %v2457 = vadd.f32 %v1983, %v1969
      %v2458 = vadd.f32 %v1984, %v1969
      %v2459 = vadd.f32 %v1985, %v1969
      %v2460 = vsub.f32 %v2444, %v1811
      %v2461 = vsub.f32 %v2445, %v1812
      %v2462 = vsub.f32 %v2446, %v1813
      %v2463 = vsub.f32 %v2447, %v1814
      %v2464 = vsub.f32 %v2448, %v1815
      %v2465 = vsub.f32 %v2449, %v1816
      %v2466 = vsub.f32 %v2450, %v1817
      %v2467 = vsub.f32 %v2451, %v1818
      %v2468 = vsub.f32 %v2452, %v1819
      %v2469 = vsub.f32 %v2453, %v1820
      %v2470 = vsub.f32 %v2454, %v1821
      %v2471 = vsub.f32 %v2455, %v1822
      %v2472 = vsub.f32 %v2456, %v1823
      %v2473 = vsub.f32 %v2457, %v1824
      %v2474 = vsub.f32 %v2458, %v1825
      %v2475 = vsub.f32 %v2459, %v1826
      %v2476 = vrcp.pop %v1987
      %v2477 = vmul.f32 1.0, %v2476
      %v2478 = vmul.f32 %v2460, %v2477
      %v2479 = vmul.f32 %v2461, %v2477
      %v2480 = vmul.f32 %v2462, %v2477
      %v2481 = vmul.f32 %v2463, %v2477
      %v2482 = vmul.f32 %v2464, %v2477
      %v2483 = vmul.f32 %v2465, %v2477
      %v2484 = vmul.f32 %v2466, %v2477
      %v2485 = vmul.f32 %v2467, %v2477
      %v2486 = vmul.f32 %v2468, %v2477
      %v2487 = vmul.f32 %v2469, %v2477
      %v2488 = vmul.f32 %v2470, %v2477
      %v2489 = vmul.f32 %v2471, %v2477
      %v2490 = vmul.f32 %v2472, %v2477
      %v2491 = vmul.f32 %v2473, %v2477
      %v2492 = vmul.f32 %v2474, %v2477
      %v2493 = vmul.f32 %v2475, %v2477
      %v2495 = vlaneseq
      %v2496 = vshrl.u32 %v2495, 7
      %v2497 = vsub.s32 0, %v2496
      %v2498 = vrot.slane %v188, %v2497
      %v2500 = vadd.f32 %v2478, %v2498
      %v2501 = vadd.f32 %v2479, %v2498
      %v2502 = vadd.f32 %v2480, %v2498
      %v2503 = vadd.f32 %v2481, %v2498
      %v2504 = vadd.f32 %v2482, %v2498
      %v2505 = vadd.f32 %v2483, %v2498
      %v2506 = vadd.f32 %v2484, %v2498
      %v2507 = vadd.f32 %v2485, %v2498
      %v2508 = vadd.f32 %v2486, %v2498
      %v2509 = vadd.f32 %v2487, %v2498
      %v2510 = vadd.f32 %v2488, %v2498
      %v2511 = vadd.f32 %v2489, %v2498
      %v2512 = vadd.f32 %v2490, %v2498
      %v2513 = vadd.f32 %v2491, %v2498
      %v2514 = vadd.f32 %v2492, %v2498
      %v2515 = vadd.f32 %v2493, %v2498
      %v2516 = vadd.f32 %v2500, -4.8520303
      %v2517 = vadd.f32 %v2501, -4.8520303
      %v2518 = vadd.f32 %v2502, -4.8520303
      %v2519 = vadd.f32 %v2503, -4.8520303
      %v2520 = vadd.f32 %v2504, -4.8520303
      %v2521 = vadd.f32 %v2505, -4.8520303
      %v2522 = vadd.f32 %v2506, -4.8520303
      %v2523 = vadd.f32 %v2507, -4.8520303
      %v2524 = vadd.f32 %v2508, -4.8520303
      %v2525 = vadd.f32 %v2509, -4.8520303
      %v2526 = vadd.f32 %v2510, -4.8520303
      %v2527 = vadd.f32 %v2511, -4.8520303
      %v2528 = vadd.f32 %v2512, -4.8520303
      %v2529 = vadd.f32 %v2513, -4.8520303
      %v2530 = vadd.f32 %v2514, -4.8520303
      %v2531 = vadd.f32 %v2515, -4.8520303
      %v2532 = vmul.f32 %v2516, 1.442695
      %v2533 = vpow.pop %v2532
      %v2534 = vmul.f32 %v2517, 1.442695
      %v2535 = vpow.pop %v2534
      %v2536 = vmul.f32 %v2518, 1.442695
      %v2537 = vpow.pop %v2536
      %v2538 = vmul.f32 %v2519, 1.442695
      %v2539 = vpow.pop %v2538
      %v2540 = vmul.f32 %v2520, 1.442695
      %v2541 = vpow.pop %v2540
      %v2542 = vmul.f32 %v2521, 1.442695
      %v2543 = vpow.pop %v2542
      %v2544 = vmul.f32 %v2522, 1.442695
      %v2545 = vpow.pop %v2544
      %v2546 = vmul.f32 %v2523, 1.442695
      %v2547 = vpow.pop %v2546
      %v2548 = vmul.f32 %v2524, 1.442695
      %v2549 = vpow.pop %v2548
      %v2550 = vmul.f32 %v2525, 1.442695
      %v2551 = vpow.pop %v2550
      %v2552 = vmul.f32 %v2526, 1.442695
      %v2553 = vpow.pop %v2552
      %v2554 = vmul.f32 %v2527, 1.442695
      %v2555 = vpow.pop %v2554
      %v2556 = vmul.f32 %v2528, 1.442695
      %v2557 = vpow.pop %v2556
      %v2558 = vmul.f32 %v2529, 1.442695
      %v2559 = vpow.pop %v2558
      %v2560 = vmul.f32 %v2530, 1.442695
      %v2561 = vpow.pop %v2560
      %v2562 = vmul.f32 %v2531, 1.442695
      %v2563 = vpow.pop %v2562
      %2564 = vmatprep.subr.mxu0 0.0
      %v2565 = vand.u32 %v158, 4294901760
      %2566 = vmatpush1.msra.mxu0 %v2565
      %2567 = vmatprep.subr.mxu0 0.0
      %v2568 = vand.u32 %v159, 4294901760
      %2569 = vmatpush1.msra.mxu0 %v2568
      %2570 = vmatprep.subr.mxu0 0.0
      %v2571 = vand.u32 %v160, 4294901760
      %2572 = vmatpush1.msra.mxu0 %v2571
      %2573 = vmatprep.subr.mxu0 0.0
      %v2574 = vand.u32 %v161, 4294901760
      %2575 = vmatpush1.msra.mxu0 %v2574
      %2576 = vmatprep.subr.mxu0 0.0
      %v2577 = vand.u32 %v162, 4294901760
      %2578 = vmatpush1.msra.mxu0 %v2577
      %2579 = vmatprep.subr.mxu0 0.0
      %v2580 = vand.u32 %v163, 4294901760
      %2581 = vmatpush1.msra.mxu0 %v2580
      %2582 = vmatprep.subr.mxu0 0.0
      %v2583 = vand.u32 %v164, 4294901760
      %2584 = vmatpush1.msra.mxu0 %v2583
      %2585 = vmatprep.subr.mxu0 0.0
      %v2586 = vand.u32 %v165, 4294901760
      %2587 = vmatpush1.msra.mxu0 %v2586
      %2588 = vmatprep.subr.mxu0 0.0
      %v2589 = vand.u32 %v166, 4294901760
      %2590 = vmatpush1.msra.mxu0 %v2589
      %2591 = vmatprep.subr.mxu0 0.0
      %v2592 = vand.u32 %v167, 4294901760
      %2593 = vmatpush1.msra.mxu0 %v2592
      %2594 = vmatprep.subr.mxu0 0.0
      %v2595 = vand.u32 %v168, 4294901760
      %2596 = vmatpush1.msra.mxu0 %v2595
      %2597 = vmatprep.subr.mxu0 0.0
      %v2598 = vand.u32 %v169, 4294901760
      %2599 = vmatpush1.msra.mxu0 %v2598
      %2600 = vmatprep.subr.mxu0 0.0
      %v2601 = vand.u32 %v170, 4294901760
      %2602 = vmatpush1.msra.mxu0 %v2601
      %2603 = vmatprep.subr.mxu0 0.0
      %v2604 = vand.u32 %v171, 4294901760
      %2605 = vmatpush1.msra.mxu0 %v2604
      %2606 = vmatprep.subr.mxu0 0.0
      %v2607 = vand.u32 %v172, 4294901760
      %2608 = vmatpush1.msra.mxu0 %v2607
      %2609 = vmatprep.subr.mxu0 0.0
      %v2610 = vand.u32 %v173, 4294901760
      %2611 = vmatpush1.msra.mxu0 %v2610
      %2612 = vmatprep.subr.mxu0 0.0
      %2613 = vmatpush1.msra.mxu0 0.0
      %2614 = vmatprep.subr.mxu0 0.0
      %2615 = vmatpush1.msra.mxu0 0.0
      %2616 = vmatprep.subr.mxu0 0.0
      %2617 = vmatpush1.msra.mxu0 0.0
      %2618 = vmatprep.subr.mxu0 0.0
      %2619 = vmatpush1.msra.mxu0 0.0
      %2620 = vmatprep.subr.mxu0 0.0
      %2621 = vmatpush1.msra.mxu0 0.0
      %2622 = vmatprep.subr.mxu0 0.0
      %2623 = vmatpush1.msra.mxu0 0.0
      %2624 = vmatprep.subr.mxu0 0.0
      %2625 = vmatpush1.msra.mxu0 0.0
      %2626 = vmatprep.subr.mxu0 0.0
      %2627 = vmatpush1.msra.mxu0 0.0
      %2628 = vmatprep.subr.mxu0 0.0
      %2629 = vmatpush1.msra.mxu0 0.0
      %2630 = vmatprep.subr.mxu0 0.0
      %2631 = vmatpush1.msra.mxu0 0.0
      %2632 = vmatprep.subr.mxu0 0.0
      %2633 = vmatpush1.msra.mxu0 0.0
      %2634 = vmatprep.subr.mxu0 0.0
      %2635 = vmatpush1.msra.mxu0 0.0
      %2636 = vmatprep.subr.mxu0 0.0
      %2637 = vmatpush1.msra.mxu0 0.0
      %2638 = vmatprep.subr.mxu0 0.0
      %2639 = vmatpush1.msra.mxu0 0.0
      %2640 = vmatprep.subr.mxu0 0.0
      %2641 = vmatpush1.msra.mxu0 0.0
      %2642 = vmatprep.subr.mxu0 0.0
      %2643 = vmatpush1.msra.mxu0 0.0
      %2644 = vmatprep.mubr.f32.mxu0 0.0
      %v2645 = vand.u32 %v2533, 4294901760
      %v2646 = vsub.f32 %v2533, %v2645
      %v2647 = vand.u32 %v2646, 4294901760
      %v2648 = vsub.f32 %v2646, %v2647
      %v2649 = vand.u32 %v2648, 4294901760
      %2650 = vmatmul.mubr.f32.gmra.mrb[0].mxu0 %v2649
      %v2651 = vpop.f32.mrb[0].mxu0
      %v2652 = vadd.f32 0.0, %v2651
      %v2653 = vpop.f32.mrb[0].mxu0
      %2654 = vmatprep.mubr.f32.mxu0 0.0
      %v2655 = vand.u32 %v2535, 4294901760
      %v2656 = vsub.f32 %v2535, %v2655
      %v2657 = vand.u32 %v2656, 4294901760
      %v2658 = vsub.f32 %v2656, %v2657
      %v2659 = vand.u32 %v2658, 4294901760
      %2660 = vmatmul.mubr.f32.gmra.mrb[0].mxu0 %v2659
      %v2661 = vpop.f32.mrb[0].mxu0
      %v2662 = vadd.f32 0.0, %v2661
      %v2663 = vpop.f32.mrb[0].mxu0
      %2664 = vmatprep.mubr.f32.mxu0 0.0
      %v2665 = vand.u32 %v2537, 4294901760
      %v2666 = vsub.f32 %v2537, %v2665
      %v2667 = vand.u32 %v2666, 4294901760
      %v2668 = vsub.f32 %v2666, %v2667
      %v2669 = vand.u32 %v2668, 4294901760
      %2670 = vmatmul.mubr.f32.gmra.mrb[0].mxu0 %v2669
      %v2671 = vpop.f32.mrb[0].mxu0
      %v2672 = vadd.f32 0.0, %v2671
      %v2673 = vpop.f32.mrb[0].mxu0
      %2674 = vmatprep.mubr.f32.mxu0 0.0
      %v2675 = vand.u32 %v2539, 4294901760
      %v2676 = vsub.f32 %v2539, %v2675
      %v2677 = vand.u32 %v2676, 4294901760
      %v2678 = vsub.f32 %v2676, %v2677
      %v2679 = vand.u32 %v2678, 4294901760
      %2680 = vmatmul.mubr.f32.gmra.mrb[0].mxu0 %v2679
      %v2681 = vpop.f32.mrb[0].mxu0
      %v2682 = vadd.f32 0.0, %v2681
      %v2683 = vpop.f32.mrb[0].mxu0
      %2684 = vmatprep.mubr.f32.mxu0 0.0
      %v2685 = vand.u32 %v2541, 4294901760
      %v2686 = vsub.f32 %v2541, %v2685
      %v2687 = vand.u32 %v2686, 4294901760
      %v2688 = vsub.f32 %v2686, %v2687
      %v2689 = vand.u32 %v2688, 4294901760
      %2690 = vmatmul.mubr.f32.gmra.mrb[0].mxu0 %v2689
      %v2691 = vpop.f32.mrb[0].mxu0
      %v2692 = vadd.f32 0.0, %v2691
      %v2693 = vpop.f32.mrb[0].mxu0
      %2694 = vmatprep.mubr.f32.mxu0 0.0
      %v2695 = vand.u32 %v2543, 4294901760
      %v2696 = vsub.f32 %v2543, %v2695
      %v2697 = vand.u32 %v2696, 4294901760
      %v2698 = vsub.f32 %v2696, %v2697
      %v2699 = vand.u32 %v2698, 4294901760
      %2700 = vmatmul.mubr.f32.gmra.mrb[0].mxu0 %v2699
      %v2701 = vpop.f32.mrb[0].mxu0
      %v2702 = vadd.f32 0.0, %v2701
      %v2703 = vpop.f32.mrb[0].mxu0
      %2704 = vmatprep.mubr.f32.mxu0 0.0
      %v2705 = vand.u32 %v2545, 4294901760
      %v2706 = vsub.f32 %v2545, %v2705
      %v2707 = vand.u32 %v2706, 4294901760
      %v2708 = vsub.f32 %v2706, %v2707
      %v2709 = vand.u32 %v2708, 4294901760
      %2710 = vmatmul.mubr.f32.gmra.mrb[0].mxu0 %v2709
      %v2711 = vpop.f32.mrb[0].mxu0
      %v2712 = vadd.f32 0.0, %v2711
      %v2713 = vpop.f32.mrb[0].mxu0
      %2714 = vmatprep.mubr.f32.mxu0 0.0
      %v2715 = vand.u32 %v2547, 4294901760
      %v2716 = vsub.f32 %v2547, %v2715
      %v2717 = vand.u32 %v2716, 4294901760
      %v2718 = vsub.f32 %v2716, %v2717
      %v2719 = vand.u32 %v2718, 4294901760
      %2720 = vmatmul.mubr.f32.gmra.mrb[0].mxu0 %v2719
      %v2721 = vpop.f32.mrb[0].mxu0
      %v2722 = vadd.f32 0.0, %v2721
      %v2723 = vpop.f32.mrb[0].mxu0
      %2724 = vmatprep.mubr.f32.mxu0 0.0
      %v2725 = vand.u32 %v2549, 4294901760
      %v2726 = vsub.f32 %v2549, %v2725
      %v2727 = vand.u32 %v2726, 4294901760
      %v2728 = vsub.f32 %v2726, %v2727
      %v2729 = vand.u32 %v2728, 4294901760
      %2730 = vmatmul.mubr.f32.gmra.mrb[0].mxu0 %v2729
      %v2731 = vpop.f32.mrb[0].mxu0
      %v2732 = vadd.f32 0.0, %v2731
      %v2733 = vpop.f32.mrb[0].mxu0
      %2734 = vmatprep.mubr.f32.mxu0 0.0
      %v2735 = vand.u32 %v2551, 4294901760
      %v2736 = vsub.f32 %v2551, %v2735
      %v2737 = vand.u32 %v2736, 4294901760
      %v2738 = vsub.f32 %v2736, %v2737
      %v2739 = vand.u32 %v2738, 4294901760
      %2740 = vmatmul.mubr.f32.gmra.mrb[0].mxu0 %v2739
      %v2741 = vpop.f32.mrb[0].mxu0
      %v2742 = vadd.f32 0.0, %v2741
      %v2743 = vpop.f32.mrb[0].mxu0
      %2744 = vmatprep.mubr.f32.mxu0 0.0
      %v2745 = vand.u32 %v2553, 4294901760
      %v2746 = vsub.f32 %v2553, %v2745
      %v2747 = vand.u32 %v2746, 4294901760
      %v2748 = vsub.f32 %v2746, %v2747
      %v2749 = vand.u32 %v2748, 4294901760
      %2750 = vmatmul.mubr.f32.gmra.mrb[0].mxu0 %v2749
      %v2751 = vpop.f32.mrb[0].mxu0
      %v2752 = vadd.f32 0.0, %v2751
      %v2753 = vpop.f32.mrb[0].mxu0
      %2754 = vmatprep.mubr.f32.mxu0 0.0
      %v2755 = vand.u32 %v2555, 4294901760
      %v2756 = vsub.f32 %v2555, %v2755
      %v2757 = vand.u32 %v2756, 4294901760
      %v2758 = vsub.f32 %v2756, %v2757
      %v2759 = vand.u32 %v2758, 4294901760
      %2760 = vmatmul.mubr.f32.gmra.mrb[0].mxu0 %v2759
      %v2761 = vpop.f32.mrb[0].mxu0
      %v2762 = vadd.f32 0.0, %v2761
      %v2763 = vpop.f32.mrb[0].mxu0
      %2764 = vmatprep.mubr.f32.mxu0 0.0
      %v2765 = vand.u32 %v2557, 4294901760
      %v2766 = vsub.f32 %v2557, %v2765
      %v2767 = vand.u32 %v2766, 4294901760
      %v2768 = vsub.f32 %v2766, %v2767
      %v2769 = vand.u32 %v2768, 4294901760
      %2770 = vmatmul.mubr.f32.gmra.mrb[0].mxu0 %v2769
      %v2771 = vpop.f32.mrb[0].mxu0
      %v2772 = vadd.f32 0.0, %v2771
      %v2773 = vpop.f32.mrb[0].mxu0
      %2774 = vmatprep.mubr.f32.mxu0 0.0
      %v2775 = vand.u32 %v2559, 4294901760
      %v2776 = vsub.f32 %v2559, %v2775
      %v2777 = vand.u32 %v2776, 4294901760
      %v2778 = vsub.f32 %v2776, %v2777
      %v2779 = vand.u32 %v2778, 4294901760
      %2780 = vmatmul.mubr.f32.gmra.mrb[0].mxu0 %v2779
      %v2781 = vpop.f32.mrb[0].mxu0
      %v2782 = vadd.f32 0.0, %v2781
      %v2783 = vpop.f32.mrb[0].mxu0
      %2784 = vmatprep.mubr.f32.mxu0 0.0
      %v2785 = vand.u32 %v2561, 4294901760
      %v2786 = vsub.f32 %v2561, %v2785
      %v2787 = vand.u32 %v2786, 4294901760
      %v2788 = vsub.f32 %v2786, %v2787
      %v2789 = vand.u32 %v2788, 4294901760
      %2790 = vmatmul.mubr.f32.gmra.mrb[0].mxu0 %v2789
      %v2791 = vpop.f32.mrb[0].mxu0
      %v2792 = vadd.f32 0.0, %v2791
      %v2793 = vpop.f32.mrb[0].mxu0
      %2794 = vmatprep.mubr.f32.mxu0 0.0
      %v2795 = vand.u32 %v2563, 4294901760
      %v2796 = vsub.f32 %v2563, %v2795
      %v2797 = vand.u32 %v2796, 4294901760
      %v2798 = vsub.f32 %v2796, %v2797
      %v2799 = vand.u32 %v2798, 4294901760
      %2800 = vmatmul.mubr.f32.gmra.mrb[0].mxu0 %v2799
      %v2801 = vpop.f32.mrb[0].mxu0
      %v2802 = vadd.f32 0.0, %v2801
      %v2803 = vpop.f32.mrb[0].mxu0
      %2804 = vdwg.mxu0
      %2805 = vmatprep.subr.mxu0 0.0
      %v2806 = vand.u32 %v158, 4294901760
      %v2807 = vsub.f32 %v158, %v2806
      %v2808 = vand.u32 %v2807, 4294901760
      %v2809 = vsub.f32 %v2807, %v2808
      %v2810 = vand.u32 %v2809, 4294901760
      %2811 = vmatpush1.msra.mxu0 %v2810
      %2812 = vmatprep.subr.mxu0 0.0
      %v2813 = vand.u32 %v159, 4294901760
      %v2814 = vsub.f32 %v159, %v2813
      %v2815 = vand.u32 %v2814, 4294901760
      %v2816 = vsub.f32 %v2814, %v2815
      %v2817 = vand.u32 %v2816, 4294901760
      %2818 = vmatpush1.msra.mxu0 %v2817
      %2819 = vmatprep.subr.mxu0 0.0
      %v2820 = vand.u32 %v160, 4294901760
      %v2821 = vsub.f32 %v160, %v2820
      %v2822 = vand.u32 %v2821, 4294901760
      %v2823 = vsub.f32 %v2821, %v2822
      %v2824 = vand.u32 %v2823, 4294901760
      %2825 = vmatpush1.msra.mxu0 %v2824
      %2826 = vmatprep.subr.mxu0 0.0
      %v2827 = vand.u32 %v161, 4294901760
      %v2828 = vsub.f32 %v161, %v2827
      %v2829 = vand.u32 %v2828, 4294901760
      %v2830 = vsub.f32 %v2828, %v2829
      %v2831 = vand.u32 %v2830, 4294901760
      %2832 = vmatpush1.msra.mxu0 %v2831
      %2833 = vmatprep.subr.mxu0 0.0
      %v2834 = vand.u32 %v162, 4294901760
      %v2835 = vsub.f32 %v162, %v2834
      %v2836 = vand.u32 %v2835, 4294901760
      %v2837 = vsub.f32 %v2835, %v2836
      %v2838 = vand.u32 %v2837, 4294901760
      %2839 = vmatpush1.msra.mxu0 %v2838
      %2840 = vmatprep.subr.mxu0 0.0
      %v2841 = vand.u32 %v163, 4294901760
      %v2842 = vsub.f32 %v163, %v2841
      %v2843 = vand.u32 %v2842, 4294901760
      %v2844 = vsub.f32 %v2842, %v2843
      %v2845 = vand.u32 %v2844, 4294901760
      %2846 = vmatpush1.msra.mxu0 %v2845
      %2847 = vmatprep.subr.mxu0 0.0
      %v2848 = vand.u32 %v164, 4294901760
      %v2849 = vsub.f32 %v164, %v2848
      %v2850 = vand.u32 %v2849, 4294901760
      %v2851 = vsub.f32 %v2849, %v2850
      %v2852 = vand.u32 %v2851, 4294901760
      %2853 = vmatpush1.msra.mxu0 %v2852
      %2854 = vmatprep.subr.mxu0 0.0
      %v2855 = vand.u32 %v165, 4294901760
      %v2856 = vsub.f32 %v165, %v2855
      %v2857 = vand.u32 %v2856, 4294901760
      %v2858 = vsub.f32 %v2856, %v2857
      %v2859 = vand.u32 %v2858, 4294901760
      %2860 = vmatpush1.msra.mxu0 %v2859
      %2861 = vmatprep.subr.mxu0 0.0
      %v2862 = vand.u32 %v166, 4294901760
      %v2863 = vsub.f32 %v166, %v2862
      %v2864 = vand.u32 %v2863, 4294901760
      %v2865 = vsub.f32 %v2863, %v2864
      %v2866 = vand.u32 %v2865, 4294901760
      %2867 = vmatpush1.msra.mxu0 %v2866
      %2868 = vmatprep.subr.mxu0 0.0
      %v2869 = vand.u32 %v167, 4294901760
      %v2870 = vsub.f32 %v167, %v2869
      %v2871 = vand.u32 %v2870, 4294901760
      %v2872 = vsub.f32 %v2870, %v2871
      %v2873 = vand.u32 %v2872, 4294901760
      %2874 = vmatpush1.msra.mxu0 %v2873
      %2875 = vmatprep.subr.mxu0 0.0
      %v2876 = vand.u32 %v168, 4294901760
      %v2877 = vsub.f32 %v168, %v2876
      %v2878 = vand.u32 %v2877, 4294901760
      %v2879 = vsub.f32 %v2877, %v2878
      %v2880 = vand.u32 %v2879, 4294901760
      %2881 = vmatpush1.msra.mxu0 %v2880
      %2882 = vmatprep.subr.mxu0 0.0
      %v2883 = vand.u32 %v169, 4294901760
      %v2884 = vsub.f32 %v169, %v2883
      %v2885 = vand.u32 %v2884, 4294901760
      %v2886 = vsub.f32 %v2884, %v2885
      %v2887 = vand.u32 %v2886, 4294901760
      %2888 = vmatpush1.msra.mxu0 %v2887
      %2889 = vmatprep.subr.mxu0 0.0
      %v2890 = vand.u32 %v170, 4294901760
      %v2891 = vsub.f32 %v170, %v2890
      %v2892 = vand.u32 %v2891, 4294901760
      %v2893 = vsub.f32 %v2891, %v2892
      %v2894 = vand.u32 %v2893, 4294901760
      %2895 = vmatpush1.msra.mxu0 %v2894
      %2896 = vmatprep.subr.mxu0 0.0
      %v2897 = vand.u32 %v171, 4294901760
      %v2898 = vsub.f32 %v171, %v2897
      %v2899 = vand.u32 %v2898, 4294901760
      %v2900 = vsub.f32 %v2898, %v2899
      %v2901 = vand.u32 %v2900, 4294901760
      %2902 = vmatpush1.msra.mxu0 %v2901
      %2903 = vmatprep.subr.mxu0 0.0
      %v2904 = vand.u32 %v172, 4294901760
      %v2905 = vsub.f32 %v172, %v2904
      %v2906 = vand.u32 %v2905, 4294901760
      %v2907 = vsub.f32 %v2905, %v2906
      %v2908 = vand.u32 %v2907, 4294901760
      %2909 = vmatpush1.msra.mxu0 %v2908
      %2910 = vmatprep.subr.mxu0 0.0
      %v2911 = vand.u32 %v173, 4294901760
      %v2912 = vsub.f32 %v173, %v2911
      %v2913 = vand.u32 %v2912, 4294901760
      %v2914 = vsub.f32 %v2912, %v2913
      %v2915 = vand.u32 %v2914, 4294901760
      %2916 = vmatpush1.msra.mxu0 %v2915
      %2917 = vmatprep.subr.mxu0 0.0
      %2918 = vmatpush1.msra.mxu0 0.0
      %2919 = vmatprep.subr.mxu0 0.0
      %2920 = vmatpush1.msra.mxu0 0.0
      %2921 = vmatprep.subr.mxu0 0.0
      %2922 = vmatpush1.msra.mxu0 0.0
      %2923 = vmatprep.subr.mxu0 0.0
      %2924 = vmatpush1.msra.mxu0 0.0
      %2925 = vmatprep.subr.mxu0 0.0
      %2926 = vmatpush1.msra.mxu0 0.0
      %2927 = vmatprep.subr.mxu0 0.0
      %2928 = vmatpush1.msra.mxu0 0.0
      %2929 = vmatprep.subr.mxu0 0.0
      %2930 = vmatpush1.msra.mxu0 0.0
      %2931 = vmatprep.subr.mxu0 0.0
      %2932 = vmatpush1.msra.mxu0 0.0
      %2933 = vmatprep.subr.mxu0 0.0
      %2934 = vmatpush1.msra.mxu0 0.0
      %2935 = vmatprep.subr.mxu0 0.0
      %2936 = vmatpush1.msra.mxu0 0.0
      %2937 = vmatprep.subr.mxu0 0.0
      %2938 = vmatpush1.msra.mxu0 0.0
      %2939 = vmatprep.subr.mxu0 0.0
      %2940 = vmatpush1.msra.mxu0 0.0
      %2941 = vmatprep.subr.mxu0 0.0
      %2942 = vmatpush1.msra.mxu0 0.0
      %2943 = vmatprep.subr.mxu0 0.0
      %2944 = vmatpush1.msra.mxu0 0.0
      %2945 = vmatprep.subr.mxu0 0.0
      %2946 = vmatpush1.msra.mxu0 0.0
      %2947 = vmatprep.subr.mxu0 0.0
      %2948 = vmatpush1.msra.mxu0 0.0
      %2949 = vmatprep.mubr.f32.mxu0 0.0
      %v2950 = vand.u32 %v2533, 4294901760
      %2951 = vmatmul.mubr.f32.gmra.mrb[0].mxu0 %v2950
      %v2952 = vpop.f32.mrb[0].mxu0
      %v2953 = vadd.f32 %v2652, %v2952
      %v2954 = vpop.f32.mrb[0].mxu0
      %2955 = vmatprep.mubr.f32.mxu0 0.0
      %v2956 = vand.u32 %v2535, 4294901760
      %2957 = vmatmul.mubr.f32.gmra.mrb[0].mxu0 %v2956
      %v2958 = vpop.f32.mrb[0].mxu0
      %v2959 = vadd.f32 %v2662, %v2958
      %v2960 = vpop.f32.mrb[0].mxu0
      %2961 = vmatprep.mubr.f32.mxu0 0.0
      %v2962 = vand.u32 %v2537, 4294901760
      %2963 = vmatmul.mubr.f32.gmra.mrb[0].mxu0 %v2962
      %v2964 = vpop.f32.mrb[0].mxu0
      %v2965 = vadd.f32 %v2672, %v2964
      %v2966 = vpop.f32.mrb[0].mxu0
      %2967 = vmatprep.mubr.f32.mxu0 0.0
      %v2968 = vand.u32 %v2539, 4294901760
      %2969 = vmatmul.mubr.f32.gmra.mrb[0].mxu0 %v2968
      %v2970 = vpop.f32.mrb[0].mxu0
      %v2971 = vadd.f32 %v2682, %v2970
      %v2972 = vpop.f32.mrb[0].mxu0
      %2973 = vmatprep.mubr.f32.mxu0 0.0
      %v2974 = vand.u32 %v2541, 4294901760
      %2975 = vmatmul.mubr.f32.gmra.mrb[0].mxu0 %v2974
      %v2976 = vpop.f32.mrb[0].mxu0
      %v2977 = vadd.f32 %v2692, %v2976
      %v2978 = vpop.f32.mrb[0].mxu0
      %2979 = vmatprep.mubr.f32.mxu0 0.0
      %v2980 = vand.u32 %v2543, 4294901760
      %2981 = vmatmul.mubr.f32.gmra.mrb[0].mxu0 %v2980
      %v2982 = vpop.f32.mrb[0].mxu0
      %v2983 = vadd.f32 %v2702, %v2982
      %v2984 = vpop.f32.mrb[0].mxu0
      %2985 = vmatprep.mubr.f32.mxu0 0.0
      %v2986 = vand.u32 %v2545, 4294901760
      %2987 = vmatmul.mubr.f32.gmra.mrb[0].mxu0 %v2986
      %v2988 = vpop.f32.mrb[0].mxu0
      %v2989 = vadd.f32 %v2712, %v2988
      %v2990 = vpop.f32.mrb[0].mxu0
      %2991 = vmatprep.mubr.f32.mxu0 0.0
      %v2992 = vand.u32 %v2547, 4294901760
      %2993 = vmatmul.mubr.f32.gmra.mrb[0].mxu0 %v2992
      %v2994 = vpop.f32.mrb[0].mxu0
      %v2995 = vadd.f32 %v2722, %v2994
      %v2996 = vpop.f32.mrb[0].mxu0
      %2997 = vmatprep.mubr.f32.mxu0 0.0
      %v2998 = vand.u32 %v2549, 4294901760
      %2999 = vmatmul.mubr.f32.gmra.mrb[0].mxu0 %v2998
      %v3000 = vpop.f32.mrb[0].mxu0
      %v3001 = vadd.f32 %v2732, %v3000
      %v3002 = vpop.f32.mrb[0].mxu0
      %3003 = vmatprep.mubr.f32.mxu0 0.0
      %v3004 = vand.u32 %v2551, 4294901760
      %3005 = vmatmul.mubr.f32.gmra.mrb[0].mxu0 %v3004
      %v3006 = vpop.f32.mrb[0].mxu0
      %v3007 = vadd.f32 %v2742, %v3006
      %v3008 = vpop.f32.mrb[0].mxu0
      %3009 = vmatprep.mubr.f32.mxu0 0.0
      %v3010 = vand.u32 %v2553, 4294901760
      %3011 = vmatmul.mubr.f32.gmra.mrb[0].mxu0 %v3010
      %v3012 = vpop.f32.mrb[0].mxu0
      %v3013 = vadd.f32 %v2752, %v3012
      %v3014 = vpop.f32.mrb[0].mxu0
      %3015 = vmatprep.mubr.f32.mxu0 0.0
      %v3016 = vand.u32 %v2555, 4294901760
      %3017 = vmatmul.mubr.f32.gmra.mrb[0].mxu0 %v3016
      %v3018 = vpop.f32.mrb[0].mxu0
      %v3019 = vadd.f32 %v2762, %v3018
      %v3020 = vpop.f32.mrb[0].mxu0
      %3021 = vmatprep.mubr.f32.mxu0 0.0
      %v3022 = vand.u32 %v2557, 4294901760
      %3023 = vmatmul.mubr.f32.gmra.mrb[0].mxu0 %v3022
      %v3024 = vpop.f32.mrb[0].mxu0
      %v3025 = vadd.f32 %v2772, %v3024
      %v3026 = vpop.f32.mrb[0].mxu0
      %3027 = vmatprep.mubr.f32.mxu0 0.0
      %v3028 = vand.u32 %v2559, 4294901760
      %3029 = vmatmul.mubr.f32.gmra.mrb[0].mxu0 %v3028
      %v3030 = vpop.f32.mrb[0].mxu0
      %v3031 = vadd.f32 %v2782, %v3030
      %v3032 = vpop.f32.mrb[0].mxu0
      %3033 = vmatprep.mubr.f32.mxu0 0.0
      %v3034 = vand.u32 %v2561, 4294901760
      %3035 = vmatmul.mubr.f32.gmra.mrb[0].mxu0 %v3034
      %v3036 = vpop.f32.mrb[0].mxu0
      %v3037 = vadd.f32 %v2792, %v3036
      %v3038 = vpop.f32.mrb[0].mxu0
      %3039 = vmatprep.mubr.f32.mxu0 0.0
      %v3040 = vand.u32 %v2563, 4294901760
      %3041 = vmatmul.mubr.f32.gmra.mrb[0].mxu0 %v3040
      %v3042 = vpop.f32.mrb[0].mxu0
      %v3043 = vadd.f32 %v2802, %v3042
      %v3044 = vpop.f32.mrb[0].mxu0
      %3045 = vdwg.mxu0
      %3046 = vmatprep.subr.mxu0 0.0
      %v3047 = vand.u32 %v158, 4294901760
      %v3048 = vsub.f32 %v158, %v3047
      %3049 = vmatpush1.msra.mxu0 %v3048
      %3050 = vmatprep.subr.mxu0 0.0
      %v3051 = vand.u32 %v159, 4294901760
      %v3052 = vsub.f32 %v159, %v3051
      %3053 = vmatpush1.msra.mxu0 %v3052
      %3054 = vmatprep.subr.mxu0 0.0
      %v3055 = vand.u32 %v160, 4294901760
      %v3056 = vsub.f32 %v160, %v3055
      %3057 = vmatpush1.msra.mxu0 %v3056
      %3058 = vmatprep.subr.mxu0 0.0
      %v3059 = vand.u32 %v161, 4294901760
      %v3060 = vsub.f32 %v161, %v3059
      %3061 = vmatpush1.msra.mxu0 %v3060
      %3062 = vmatprep.subr.mxu0 0.0
      %v3063 = vand.u32 %v162, 4294901760
      %v3064 = vsub.f32 %v162, %v3063
      %3065 = vmatpush1.msra.mxu0 %v3064
      %3066 = vmatprep.subr.mxu0 0.0
      %v3067 = vand.u32 %v163, 4294901760
      %v3068 = vsub.f32 %v163, %v3067
      %3069 = vmatpush1.msra.mxu0 %v3068
      %3070 = vmatprep.subr.mxu0 0.0
      %v3071 = vand.u32 %v164, 4294901760
      %v3072 = vsub.f32 %v164, %v3071
      %3073 = vmatpush1.msra.mxu0 %v3072
      %3074 = vmatprep.subr.mxu0 0.0
      %v3075 = vand.u32 %v165, 4294901760
      %v3076 = vsub.f32 %v165, %v3075
      %3077 = vmatpush1.msra.mxu0 %v3076
      %3078 = vmatprep.subr.mxu0 0.0
      %v3079 = vand.u32 %v166, 4294901760
      %v3080 = vsub.f32 %v166, %v3079
      %3081 = vmatpush1.msra.mxu0 %v3080
      %3082 = vmatprep.subr.mxu0 0.0
      %v3083 = vand.u32 %v167, 4294901760
      %v3084 = vsub.f32 %v167, %v3083
      %3085 = vmatpush1.msra.mxu0 %v3084
      %3086 = vmatprep.subr.mxu0 0.0
      %v3087 = vand.u32 %v168, 4294901760
      %v3088 = vsub.f32 %v168, %v3087
      %3089 = vmatpush1.msra.mxu0 %v3088
      %3090 = vmatprep.subr.mxu0 0.0
      %v3091 = vand.u32 %v169, 4294901760
      %v3092 = vsub.f32 %v169, %v3091
      %3093 = vmatpush1.msra.mxu0 %v3092
      %3094 = vmatprep.subr.mxu0 0.0
      %v3095 = vand.u32 %v170, 4294901760
      %v3096 = vsub.f32 %v170, %v3095
      %3097 = vmatpush1.msra.mxu0 %v3096
      %3098 = vmatprep.subr.mxu0 0.0
      %v3099 = vand.u32 %v171, 4294901760
      %v3100 = vsub.f32 %v171, %v3099
      %3101 = vmatpush1.msra.mxu0 %v3100
      %3102 = vmatprep.subr.mxu0 0.0
      %v3103 = vand.u32 %v172, 4294901760
      %v3104 = vsub.f32 %v172, %v3103
      %3105 = vmatpush1.msra.mxu0 %v3104
      %3106 = vmatprep.subr.mxu0 0.0
      %v3107 = vand.u32 %v173, 4294901760
      %v3108 = vsub.f32 %v173, %v3107
      %3109 = vmatpush1.msra.mxu0 %v3108
      %3110 = vmatprep.subr.mxu0 0.0
      %3111 = vmatpush1.msra.mxu0 0.0
      %3112 = vmatprep.subr.mxu0 0.0
      %3113 = vmatpush1.msra.mxu0 0.0
      %3114 = vmatprep.subr.mxu0 0.0
      %3115 = vmatpush1.msra.mxu0 0.0
      %3116 = vmatprep.subr.mxu0 0.0
      %3117 = vmatpush1.msra.mxu0 0.0
      %3118 = vmatprep.subr.mxu0 0.0
      %3119 = vmatpush1.msra.mxu0 0.0
      %3120 = vmatprep.subr.mxu0 0.0
      %3121 = vmatpush1.msra.mxu0 0.0
      %3122 = vmatprep.subr.mxu0 0.0
      %3123 = vmatpush1.msra.mxu0 0.0
      %3124 = vmatprep.subr.mxu0 0.0
      %3125 = vmatpush1.msra.mxu0 0.0
      %3126 = vmatprep.subr.mxu0 0.0
      %3127 = vmatpush1.msra.mxu0 0.0
      %3128 = vmatprep.subr.mxu0 0.0
      %3129 = vmatpush1.msra.mxu0 0.0
      %3130 = vmatprep.subr.mxu0 0.0
      %3131 = vmatpush1.msra.mxu0 0.0
      %3132 = vmatprep.subr.mxu0 0.0
      %3133 = vmatpush1.msra.mxu0 0.0
      %3134 = vmatprep.subr.mxu0 0.0
      %3135 = vmatpush1.msra.mxu0 0.0
      %3136 = vmatprep.subr.mxu0 0.0
      %3137 = vmatpush1.msra.mxu0 0.0
      %3138 = vmatprep.subr.mxu0 0.0
      %3139 = vmatpush1.msra.mxu0 0.0
      %3140 = vmatprep.subr.mxu0 0.0
      %3141 = vmatpush1.msra.mxu0 0.0
      %3142 = vmatprep.mubr.f32.mxu0 0.0
      %v3143 = vand.u32 %v2533, 4294901760
      %v3144 = vsub.f32 %v2533, %v3143
      %3145 = vmatmul.mubr.f32.gmra.mrb[0].mxu0 %v3144
      %v3146 = vpop.f32.mrb[0].mxu0
      %v3147 = vadd.f32 %v2953, %v3146
      %v3148 = vpop.f32.mrb[0].mxu0
      %3149 = vmatprep.mubr.f32.mxu0 0.0
      %v3150 = vand.u32 %v2535, 4294901760
      %v3151 = vsub.f32 %v2535, %v3150
      %3152 = vmatmul.mubr.f32.gmra.mrb[0].mxu0 %v3151
      %v3153 = vpop.f32.mrb[0].mxu0
      %v3154 = vadd.f32 %v2959, %v3153
      %v3155 = vpop.f32.mrb[0].mxu0
      %3156 = vmatprep.mubr.f32.mxu0 0.0
      %v3157 = vand.u32 %v2537, 4294901760
      %v3158 = vsub.f32 %v2537, %v3157
      %3159 = vmatmul.mubr.f32.gmra.mrb[0].mxu0 %v3158
      %v3160 = vpop.f32.mrb[0].mxu0
      %v3161 = vadd.f32 %v2965, %v3160
      %v3162 = vpop.f32.mrb[0].mxu0
      %3163 = vmatprep.mubr.f32.mxu0 0.0
      %v3164 = vand.u32 %v2539, 4294901760
      %v3165 = vsub.f32 %v2539, %v3164
      %3166 = vmatmul.mubr.f32.gmra.mrb[0].mxu0 %v3165
      %v3167 = vpop.f32.mrb[0].mxu0
      %v3168 = vadd.f32 %v2971, %v3167
      %v3169 = vpop.f32.mrb[0].mxu0
      %3170 = vmatprep.mubr.f32.mxu0 0.0
      %v3171 = vand.u32 %v2541, 4294901760
      %v3172 = vsub.f32 %v2541, %v3171
      %3173 = vmatmul.mubr.f32.gmra.mrb[0].mxu0 %v3172
      %v3174 = vpop.f32.mrb[0].mxu0
      %v3175 = vadd.f32 %v2977, %v3174
      %v3176 = vpop.f32.mrb[0].mxu0
      %3177 = vmatprep.mubr.f32.mxu0 0.0
      %v3178 = vand.u32 %v2543, 4294901760
      %v3179 = vsub.f32 %v2543, %v3178
      %3180 = vmatmul.mubr.f32.gmra.mrb[0].mxu0 %v3179
      %v3181 = vpop.f32.mrb[0].mxu0
      %v3182 = vadd.f32 %v2983, %v3181
      %v3183 = vpop.f32.mrb[0].mxu0
      %3184 = vmatprep.mubr.f32.mxu0 0.0
      %v3185 = vand.u32 %v2545, 4294901760
      %v3186 = vsub.f32 %v2545, %v3185
      %3187 = vmatmul.mubr.f32.gmra.mrb[0].mxu0 %v3186
      %v3188 = vpop.f32.mrb[0].mxu0
      %v3189 = vadd.f32 %v2989, %v3188
      %v3190 = vpop.f32.mrb[0].mxu0
      %3191 = vmatprep.mubr.f32.mxu0 0.0
      %v3192 = vand.u32 %v2547, 4294901760
      %v3193 = vsub.f32 %v2547, %v3192
      %3194 = vmatmul.mubr.f32.gmra.mrb[0].mxu0 %v3193
      %v3195 = vpop.f32.mrb[0].mxu0
      %v3196 = vadd.f32 %v2995, %v3195
      %v3197 = vpop.f32.mrb[0].mxu0
      %3198 = vmatprep.mubr.f32.mxu0 0.0
      %v3199 = vand.u32 %v2549, 4294901760
      %v3200 = vsub.f32 %v2549, %v3199
      %3201 = vmatmul.mubr.f32.gmra.mrb[0].mxu0 %v3200
      %v3202 = vpop.f32.mrb[0].mxu0
      %v3203 = vadd.f32 %v3001, %v3202
      %v3204 = vpop.f32.mrb[0].mxu0
      %3205 = vmatprep.mubr.f32.mxu0 0.0
      %v3206 = vand.u32 %v2551, 4294901760
      %v3207 = vsub.f32 %v2551, %v3206
      %3208 = vmatmul.mubr.f32.gmra.mrb[0].mxu0 %v3207
      %v3209 = vpop.f32.mrb[0].mxu0
      %v3210 = vadd.f32 %v3007, %v3209
      %v3211 = vpop.f32.mrb[0].mxu0
      %3212 = vmatprep.mubr.f32.mxu0 0.0
      %v3213 = vand.u32 %v2553, 4294901760
      %v3214 = vsub.f32 %v2553, %v3213
      %3215 = vmatmul.mubr.f32.gmra.mrb[0].mxu0 %v3214
      %v3216 = vpop.f32.mrb[0].mxu0
      %v3217 = vadd.f32 %v3013, %v3216
      %v3218 = vpop.f32.mrb[0].mxu0
      %3219 = vmatprep.mubr.f32.mxu0 0.0
      %v3220 = vand.u32 %v2555, 4294901760
      %v3221 = vsub.f32 %v2555, %v3220
      %3222 = vmatmul.mubr.f32.gmra.mrb[0].mxu0 %v3221
      %v3223 = vpop.f32.mrb[0].mxu0
      %v3224 = vadd.f32 %v3019, %v3223
      %v3225 = vpop.f32.mrb[0].mxu0
      %3226 = vmatprep.mubr.f32.mxu0 0.0
      %v3227 = vand.u32 %v2557, 4294901760
      %v3228 = vsub.f32 %v2557, %v3227
      %3229 = vmatmul.mubr.f32.gmra.mrb[0].mxu0 %v3228
      %v3230 = vpop.f32.mrb[0].mxu0
      %v3231 = vadd.f32 %v3025, %v3230
      %v3232 = vpop.f32.mrb[0].mxu0
      %3233 = vmatprep.mubr.f32.mxu0 0.0
      %v3234 = vand.u32 %v2559, 4294901760
      %v3235 = vsub.f32 %v2559, %v3234
      %3236 = vmatmul.mubr.f32.gmra.mrb[0].mxu0 %v3235
      %v3237 = vpop.f32.mrb[0].mxu0
      %v3238 = vadd.f32 %v3031, %v3237
      %v3239 = vpop.f32.mrb[0].mxu0
      %3240 = vmatprep.mubr.f32.mxu0 0.0
      %v3241 = vand.u32 %v2561, 4294901760
      %v3242 = vsub.f32 %v2561, %v3241
      %3243 = vmatmul.mubr.f32.gmra.mrb[0].mxu0 %v3242
      %v3244 = vpop.f32.mrb[0].mxu0
      %v3245 = vadd.f32 %v3037, %v3244
      %v3246 = vpop.f32.mrb[0].mxu0
      %3247 = vmatprep.mubr.f32.mxu0 0.0
      %v3248 = vand.u32 %v2563, 4294901760
      %v3249 = vsub.f32 %v2563, %v3248
      %3250 = vmatmul.mubr.f32.gmra.mrb[0].mxu0 %v3249
      %v3251 = vpop.f32.mrb[0].mxu0
      %v3252 = vadd.f32 %v3043, %v3251
      %v3253 = vpop.f32.mrb[0].mxu0
      %3254 = vdwg.mxu0
      %3255 = vmatprep.subr.mxu0 0.0
      %v3256 = vand.u32 %v158, 4294901760
      %3257 = vmatpush1.msra.mxu0 %v3256
      %3258 = vmatprep.subr.mxu0 0.0
      %v3259 = vand.u32 %v159, 4294901760
      %3260 = vmatpush1.msra.mxu0 %v3259
      %3261 = vmatprep.subr.mxu0 0.0
      %v3262 = vand.u32 %v160, 4294901760
      %3263 = vmatpush1.msra.mxu0 %v3262
      %3264 = vmatprep.subr.mxu0 0.0
      %v3265 = vand.u32 %v161, 4294901760
      %3266 = vmatpush1.msra.mxu0 %v3265
      %3267 = vmatprep.subr.mxu0 0.0
      %v3268 = vand.u32 %v162, 4294901760
      %3269 = vmatpush1.msra.mxu0 %v3268
      %3270 = vmatprep.subr.mxu0 0.0
      %v3271 = vand.u32 %v163, 4294901760
      %3272 = vmatpush1.msra.mxu0 %v3271
      %3273 = vmatprep.subr.mxu0 0.0
      %v3274 = vand.u32 %v164, 4294901760
      %3275 = vmatpush1.msra.mxu0 %v3274
      %3276 = vmatprep.subr.mxu0 0.0
      %v3277 = vand.u32 %v165, 4294901760
      %3278 = vmatpush1.msra.mxu0 %v3277
      %3279 = vmatprep.subr.mxu0 0.0
      %v3280 = vand.u32 %v166, 4294901760
      %3281 = vmatpush1.msra.mxu0 %v3280
      %3282 = vmatprep.subr.mxu0 0.0
      %v3283 = vand.u32 %v167, 4294901760
      %3284 = vmatpush1.msra.mxu0 %v3283
      %3285 = vmatprep.subr.mxu0 0.0
      %v3286 = vand.u32 %v168, 4294901760
      %3287 = vmatpush1.msra.mxu0 %v3286
      %3288 = vmatprep.subr.mxu0 0.0
      %v3289 = vand.u32 %v169, 4294901760
      %3290 = vmatpush1.msra.mxu0 %v3289
      %3291 = vmatprep.subr.mxu0 0.0
      %v3292 = vand.u32 %v170, 4294901760
      %3293 = vmatpush1.msra.mxu0 %v3292
      %3294 = vmatprep.subr.mxu0 0.0
      %v3295 = vand.u32 %v171, 4294901760
      %3296 = vmatpush1.msra.mxu0 %v3295
      %3297 = vmatprep.subr.mxu0 0.0
      %v3298 = vand.u32 %v172, 4294901760
      %3299 = vmatpush1.msra.mxu0 %v3298
      %3300 = vmatprep.subr.mxu0 0.0
      %v3301 = vand.u32 %v173, 4294901760
      %3302 = vmatpush1.msra.mxu0 %v3301
      %3303 = vmatprep.subr.mxu0 0.0
      %3304 = vmatpush1.msra.mxu0 0.0
      %3305 = vmatprep.subr.mxu0 0.0
      %3306 = vmatpush1.msra.mxu0 0.0
      %3307 = vmatprep.subr.mxu0 0.0
      %3308 = vmatpush1.msra.mxu0 0.0
      %3309 = vmatprep.subr.mxu0 0.0
      %3310 = vmatpush1.msra.mxu0 0.0
      %3311 = vmatprep.subr.mxu0 0.0
      %3312 = vmatpush1.msra.mxu0 0.0
      %3313 = vmatprep.subr.mxu0 0.0
      %3314 = vmatpush1.msra.mxu0 0.0
      %3315 = vmatprep.subr.mxu0 0.0
      %3316 = vmatpush1.msra.mxu0 0.0
      %3317 = vmatprep.subr.mxu0 0.0
      %3318 = vmatpush1.msra.mxu0 0.0
      %3319 = vmatprep.subr.mxu0 0.0
      %3320 = vmatpush1.msra.mxu0 0.0
      %3321 = vmatprep.subr.mxu0 0.0
      %3322 = vmatpush1.msra.mxu0 0.0
      %3323 = vmatprep.subr.mxu0 0.0
      %3324 = vmatpush1.msra.mxu0 0.0
      %3325 = vmatprep.subr.mxu0 0.0
      %3326 = vmatpush1.msra.mxu0 0.0
      %3327 = vmatprep.subr.mxu0 0.0
      %3328 = vmatpush1.msra.mxu0 0.0
      %3329 = vmatprep.subr.mxu0 0.0
      %3330 = vmatpush1.msra.mxu0 0.0
      %3331 = vmatprep.subr.mxu0 0.0
      %3332 = vmatpush1.msra.mxu0 0.0
      %3333 = vmatprep.subr.mxu0 0.0
      %3334 = vmatpush1.msra.mxu0 0.0
      %3335 = vmatprep.mubr.f32.mxu0 0.0
      %v3336 = vand.u32 %v2533, 4294901760
      %v3337 = vsub.f32 %v2533, %v3336
      %v3338 = vand.u32 %v3337, 4294901760
      %3339 = vmatmul.mubr.f32.gmra.mrb[0].mxu0 %v3338
      %v3340 = vpop.f32.mrb[0].mxu0
      %v3341 = vadd.f32 %v3147, %v3340
      %v3342 = vpop.f32.mrb[0].mxu0
      %3343 = vmatprep.mubr.f32.mxu0 0.0
      %v3344 = vand.u32 %v2535, 4294901760
      %v3345 = vsub.f32 %v2535, %v3344
      %v3346 = vand.u32 %v3345, 4294901760
      %3347 = vmatmul.mubr.f32.gmra.mrb[0].mxu0 %v3346
      %v3348 = vpop.f32.mrb[0].mxu0
      %v3349 = vadd.f32 %v3154, %v3348
      %v3350 = vpop.f32.mrb[0].mxu0
      %3351 = vmatprep.mubr.f32.mxu0 0.0
      %v3352 = vand.u32 %v2537, 4294901760
      %v3353 = vsub.f32 %v2537, %v3352
      %v3354 = vand.u32 %v3353, 4294901760
      %3355 = vmatmul.mubr.f32.gmra.mrb[0].mxu0 %v3354
      %v3356 = vpop.f32.mrb[0].mxu0
      %v3357 = vadd.f32 %v3161, %v3356
      %v3358 = vpop.f32.mrb[0].mxu0
      %3359 = vmatprep.mubr.f32.mxu0 0.0
      %v3360 = vand.u32 %v2539, 4294901760
      %v3361 = vsub.f32 %v2539, %v3360
      %v3362 = vand.u32 %v3361, 4294901760
      %3363 = vmatmul.mubr.f32.gmra.mrb[0].mxu0 %v3362
      %v3364 = vpop.f32.mrb[0].mxu0
      %v3365 = vadd.f32 %v3168, %v3364
      %v3366 = vpop.f32.mrb[0].mxu0
      %3367 = vmatprep.mubr.f32.mxu0 0.0
      %v3368 = vand.u32 %v2541, 4294901760
      %v3369 = vsub.f32 %v2541, %v3368
      %v3370 = vand.u32 %v3369, 4294901760
      %3371 = vmatmul.mubr.f32.gmra.mrb[0].mxu0 %v3370
      %v3372 = vpop.f32.mrb[0].mxu0
      %v3373 = vadd.f32 %v3175, %v3372
      %v3374 = vpop.f32.mrb[0].mxu0
      %3375 = vmatprep.mubr.f32.mxu0 0.0
      %v3376 = vand.u32 %v2543, 4294901760
      %v3377 = vsub.f32 %v2543, %v3376
      %v3378 = vand.u32 %v3377, 4294901760
      %3379 = vmatmul.mubr.f32.gmra.mrb[0].mxu0 %v3378
      %v3380 = vpop.f32.mrb[0].mxu0
      %v3381 = vadd.f32 %v3182, %v3380
      %v3382 = vpop.f32.mrb[0].mxu0
      %3383 = vmatprep.mubr.f32.mxu0 0.0
      %v3384 = vand.u32 %v2545, 4294901760
      %v3385 = vsub.f32 %v2545, %v3384
      %v3386 = vand.u32 %v3385, 4294901760
      %3387 = vmatmul.mubr.f32.gmra.mrb[0].mxu0 %v3386
      %v3388 = vpop.f32.mrb[0].mxu0
      %v3389 = vadd.f32 %v3189, %v3388
      %v3390 = vpop.f32.mrb[0].mxu0
      %3391 = vmatprep.mubr.f32.mxu0 0.0
      %v3392 = vand.u32 %v2547, 4294901760
      %v3393 = vsub.f32 %v2547, %v3392
      %v3394 = vand.u32 %v3393, 4294901760
      %3395 = vmatmul.mubr.f32.gmra.mrb[0].mxu0 %v3394
      %v3396 = vpop.f32.mrb[0].mxu0
      %v3397 = vadd.f32 %v3196, %v3396
      %v3398 = vpop.f32.mrb[0].mxu0
      %3399 = vmatprep.mubr.f32.mxu0 0.0
      %v3400 = vand.u32 %v2549, 4294901760
      %v3401 = vsub.f32 %v2549, %v3400
      %v3402 = vand.u32 %v3401, 4294901760
      %3403 = vmatmul.mubr.f32.gmra.mrb[0].mxu0 %v3402
      %v3404 = vpop.f32.mrb[0].mxu0
      %v3405 = vadd.f32 %v3203, %v3404
      %v3406 = vpop.f32.mrb[0].mxu0
      %3407 = vmatprep.mubr.f32.mxu0 0.0
      %v3408 = vand.u32 %v2551, 4294901760
      %v3409 = vsub.f32 %v2551, %v3408
      %v3410 = vand.u32 %v3409, 4294901760
      %3411 = vmatmul.mubr.f32.gmra.mrb[0].mxu0 %v3410
      %v3412 = vpop.f32.mrb[0].mxu0
      %v3413 = vadd.f32 %v3210, %v3412
      %v3414 = vpop.f32.mrb[0].mxu0
      %3415 = vmatprep.mubr.f32.mxu0 0.0
      %v3416 = vand.u32 %v2553, 4294901760
      %v3417 = vsub.f32 %v2553, %v3416
      %v3418 = vand.u32 %v3417, 4294901760
      %3419 = vmatmul.mubr.f32.gmra.mrb[0].mxu0 %v3418
      %v3420 = vpop.f32.mrb[0].mxu0
      %v3421 = vadd.f32 %v3217, %v3420
      %v3422 = vpop.f32.mrb[0].mxu0
      %3423 = vmatprep.mubr.f32.mxu0 0.0
      %v3424 = vand.u32 %v2555, 4294901760
      %v3425 = vsub.f32 %v2555, %v3424
      %v3426 = vand.u32 %v3425, 4294901760
      %3427 = vmatmul.mubr.f32.gmra.mrb[0].mxu0 %v3426
      %v3428 = vpop.f32.mrb[0].mxu0
      %v3429 = vadd.f32 %v3224, %v3428
      %v3430 = vpop.f32.mrb[0].mxu0
      %3431 = vmatprep.mubr.f32.mxu0 0.0
      %v3432 = vand.u32 %v2557, 4294901760
      %v3433 = vsub.f32 %v2557, %v3432
      %v3434 = vand.u32 %v3433, 4294901760
      %3435 = vmatmul.mubr.f32.gmra.mrb[0].mxu0 %v3434
      %v3436 = vpop.f32.mrb[0].mxu0
      %v3437 = vadd.f32 %v3231, %v3436
      %v3438 = vpop.f32.mrb[0].mxu0
      %3439 = vmatprep.mubr.f32.mxu0 0.0
      %v3440 = vand.u32 %v2559, 4294901760
      %v3441 = vsub.f32 %v2559, %v3440
      %v3442 = vand.u32 %v3441, 4294901760
      %3443 = vmatmul.mubr.f32.gmra.mrb[0].mxu0 %v3442
      %v3444 = vpop.f32.mrb[0].mxu0
      %v3445 = vadd.f32 %v3238, %v3444
      %v3446 = vpop.f32.mrb[0].mxu0
      %3447 = vmatprep.mubr.f32.mxu0 0.0
      %v3448 = vand.u32 %v2561, 4294901760
      %v3449 = vsub.f32 %v2561, %v3448
      %v3450 = vand.u32 %v3449, 4294901760
      %3451 = vmatmul.mubr.f32.gmra.mrb[0].mxu0 %v3450
      %v3452 = vpop.f32.mrb[0].mxu0
      %v3453 = vadd.f32 %v3245, %v3452
      %v3454 = vpop.f32.mrb[0].mxu0
      %3455 = vmatprep.mubr.f32.mxu0 0.0
      %v3456 = vand.u32 %v2563, 4294901760
      %v3457 = vsub.f32 %v2563, %v3456
      %v3458 = vand.u32 %v3457, 4294901760
      %3459 = vmatmul.mubr.f32.gmra.mrb[0].mxu0 %v3458
      %v3460 = vpop.f32.mrb[0].mxu0
      %v3461 = vadd.f32 %v3252, %v3460
      %v3462 = vpop.f32.mrb[0].mxu0
      %3463 = vdwg.mxu0
      %3464 = vmatprep.subr.mxu0 0.0
      %v3465 = vand.u32 %v158, 4294901760
      %v3466 = vsub.f32 %v158, %v3465
      %v3467 = vand.u32 %v3466, 4294901760
      %3468 = vmatpush1.msra.mxu0 %v3467
      %3469 = vmatprep.subr.mxu0 0.0
      %v3470 = vand.u32 %v159, 4294901760
      %v3471 = vsub.f32 %v159, %v3470
      %v3472 = vand.u32 %v3471, 4294901760
      %3473 = vmatpush1.msra.mxu0 %v3472
      %3474 = vmatprep.subr.mxu0 0.0
      %v3475 = vand.u32 %v160, 4294901760
      %v3476 = vsub.f32 %v160, %v3475
      %v3477 = vand.u32 %v3476, 4294901760
      %3478 = vmatpush1.msra.mxu0 %v3477
      %3479 = vmatprep.subr.mxu0 0.0
      %v3480 = vand.u32 %v161, 4294901760
      %v3481 = vsub.f32 %v161, %v3480
      %v3482 = vand.u32 %v3481, 4294901760
      %3483 = vmatpush1.msra.mxu0 %v3482
      %3484 = vmatprep.subr.mxu0 0.0
      %v3485 = vand.u32 %v162, 4294901760
      %v3486 = vsub.f32 %v162, %v3485
      %v3487 = vand.u32 %v3486, 4294901760
      %3488 = vmatpush1.msra.mxu0 %v3487
      %3489 = vmatprep.subr.mxu0 0.0
      %v3490 = vand.u32 %v163, 4294901760
      %v3491 = vsub.f32 %v163, %v3490
      %v3492 = vand.u32 %v3491, 4294901760
      %3493 = vmatpush1.msra.mxu0 %v3492
      %3494 = vmatprep.subr.mxu0 0.0
      %v3495 = vand.u32 %v164, 4294901760
      %v3496 = vsub.f32 %v164, %v3495
      %v3497 = vand.u32 %v3496, 4294901760
      %3498 = vmatpush1.msra.mxu0 %v3497
      %3499 = vmatprep.subr.mxu0 0.0
      %v3500 = vand.u32 %v165, 4294901760
      %v3501 = vsub.f32 %v165, %v3500
      %v3502 = vand.u32 %v3501, 4294901760
      %3503 = vmatpush1.msra.mxu0 %v3502
      %3504 = vmatprep.subr.mxu0 0.0
      %v3505 = vand.u32 %v166, 4294901760
      %v3506 = vsub.f32 %v166, %v3505
      %v3507 = vand.u32 %v3506, 4294901760
      %3508 = vmatpush1.msra.mxu0 %v3507
      %3509 = vmatprep.subr.mxu0 0.0
      %v3510 = vand.u32 %v167, 4294901760
      %v3511 = vsub.f32 %v167, %v3510
      %v3512 = vand.u32 %v3511, 4294901760
      %3513 = vmatpush1.msra.mxu0 %v3512
      %3514 = vmatprep.subr.mxu0 0.0
      %v3515 = vand.u32 %v168, 4294901760
      %v3516 = vsub.f32 %v168, %v3515
      %v3517 = vand.u32 %v3516, 4294901760
      %3518 = vmatpush1.msra.mxu0 %v3517
      %3519 = vmatprep.subr.mxu0 0.0
      %v3520 = vand.u32 %v169, 4294901760
      %v3521 = vsub.f32 %v169, %v3520
      %v3522 = vand.u32 %v3521, 4294901760
      %3523 = vmatpush1.msra.mxu0 %v3522
      %3524 = vmatprep.subr.mxu0 0.0
      %v3525 = vand.u32 %v170, 4294901760
      %v3526 = vsub.f32 %v170, %v3525
      %v3527 = vand.u32 %v3526, 4294901760
      %3528 = vmatpush1.msra.mxu0 %v3527
      %3529 = vmatprep.subr.mxu0 0.0
      %v3530 = vand.u32 %v171, 4294901760
      %v3531 = vsub.f32 %v171, %v3530
      %v3532 = vand.u32 %v3531, 4294901760
      %3533 = vmatpush1.msra.mxu0 %v3532
      %3534 = vmatprep.subr.mxu0 0.0
      %v3535 = vand.u32 %v172, 4294901760
      %v3536 = vsub.f32 %v172, %v3535
      %v3537 = vand.u32 %v3536, 4294901760
      %3538 = vmatpush1.msra.mxu0 %v3537
      %3539 = vmatprep.subr.mxu0 0.0
      %v3540 = vand.u32 %v173, 4294901760
      %v3541 = vsub.f32 %v173, %v3540
      %v3542 = vand.u32 %v3541, 4294901760
      %3543 = vmatpush1.msra.mxu0 %v3542
      %3544 = vmatprep.subr.mxu0 0.0
      %3545 = vmatpush1.msra.mxu0 0.0
      %3546 = vmatprep.subr.mxu0 0.0
      %3547 = vmatpush1.msra.mxu0 0.0
      %3548 = vmatprep.subr.mxu0 0.0
      %3549 = vmatpush1.msra.mxu0 0.0
      %3550 = vmatprep.subr.mxu0 0.0
      %3551 = vmatpush1.msra.mxu0 0.0
      %3552 = vmatprep.subr.mxu0 0.0
      %3553 = vmatpush1.msra.mxu0 0.0
      %3554 = vmatprep.subr.mxu0 0.0
      %3555 = vmatpush1.msra.mxu0 0.0
      %3556 = vmatprep.subr.mxu0 0.0
      %3557 = vmatpush1.msra.mxu0 0.0
      %3558 = vmatprep.subr.mxu0 0.0
      %3559 = vmatpush1.msra.mxu0 0.0
      %3560 = vmatprep.subr.mxu0 0.0
      %3561 = vmatpush1.msra.mxu0 0.0
      %3562 = vmatprep.subr.mxu0 0.0
      %3563 = vmatpush1.msra.mxu0 0.0
      %3564 = vmatprep.subr.mxu0 0.0
      %3565 = vmatpush1.msra.mxu0 0.0
      %3566 = vmatprep.subr.mxu0 0.0
      %3567 = vmatpush1.msra.mxu0 0.0
      %3568 = vmatprep.subr.mxu0 0.0
      %3569 = vmatpush1.msra.mxu0 0.0
      %3570 = vmatprep.subr.mxu0 0.0
      %3571 = vmatpush1.msra.mxu0 0.0
      %3572 = vmatprep.subr.mxu0 0.0
      %3573 = vmatpush1.msra.mxu0 0.0
      %3574 = vmatprep.subr.mxu0 0.0
      %3575 = vmatpush1.msra.mxu0 0.0
      %3576 = vmatprep.mubr.f32.mxu0 0.0
      %v3577 = vand.u32 %v2533, 4294901760
      %3578 = vmatmul.mubr.f32.gmra.mrb[0].mxu0 %v3577
      %v3579 = vpop.f32.mrb[0].mxu0
      %v3580 = vadd.f32 %v3341, %v3579
      %v3581 = vpop.f32.mrb[0].mxu0
      %3582 = vmatprep.mubr.f32.mxu0 0.0
      %v3583 = vand.u32 %v2535, 4294901760
      %3584 = vmatmul.mubr.f32.gmra.mrb[0].mxu0 %v3583
      %v3585 = vpop.f32.mrb[0].mxu0
      %v3586 = vadd.f32 %v3349, %v3585
      %v3587 = vpop.f32.mrb[0].mxu0
      %3588 = vmatprep.mubr.f32.mxu0 0.0
      %v3589 = vand.u32 %v2537, 4294901760
      %3590 = vmatmul.mubr.f32.gmra.mrb[0].mxu0 %v3589
      %v3591 = vpop.f32.mrb[0].mxu0
      %v3592 = vadd.f32 %v3357, %v3591
      %v3593 = vpop.f32.mrb[0].mxu0
      %3594 = vmatprep.mubr.f32.mxu0 0.0
      %v3595 = vand.u32 %v2539, 4294901760
      %3596 = vmatmul.mubr.f32.gmra.mrb[0].mxu0 %v3595
      %v3597 = vpop.f32.mrb[0].mxu0
      %v3598 = vadd.f32 %v3365, %v3597
      %v3599 = vpop.f32.mrb[0].mxu0
      %3600 = vmatprep.mubr.f32.mxu0 0.0
      %v3601 = vand.u32 %v2541, 4294901760
      %3602 = vmatmul.mubr.f32.gmra.mrb[0].mxu0 %v3601
      %v3603 = vpop.f32.mrb[0].mxu0
      %v3604 = vadd.f32 %v3373, %v3603
      %v3605 = vpop.f32.mrb[0].mxu0
      %3606 = vmatprep.mubr.f32.mxu0 0.0
      %v3607 = vand.u32 %v2543, 4294901760
      %3608 = vmatmul.mubr.f32.gmra.mrb[0].mxu0 %v3607
      %v3609 = vpop.f32.mrb[0].mxu0
      %v3610 = vadd.f32 %v3381, %v3609
      %v3611 = vpop.f32.mrb[0].mxu0
      %3612 = vmatprep.mubr.f32.mxu0 0.0
      %v3613 = vand.u32 %v2545, 4294901760
      %3614 = vmatmul.mubr.f32.gmra.mrb[0].mxu0 %v3613
      %v3615 = vpop.f32.mrb[0].mxu0
      %v3616 = vadd.f32 %v3389, %v3615
      %v3617 = vpop.f32.mrb[0].mxu0
      %3618 = vmatprep.mubr.f32.mxu0 0.0
      %v3619 = vand.u32 %v2547, 4294901760
      %3620 = vmatmul.mubr.f32.gmra.mrb[0].mxu0 %v3619
      %v3621 = vpop.f32.mrb[0].mxu0
      %v3622 = vadd.f32 %v3397, %v3621
      %v3623 = vpop.f32.mrb[0].mxu0
      %3624 = vmatprep.mubr.f32.mxu0 0.0
      %v3625 = vand.u32 %v2549, 4294901760
      %3626 = vmatmul.mubr.f32.gmra.mrb[0].mxu0 %v3625
      %v3627 = vpop.f32.mrb[0].mxu0
      %v3628 = vadd.f32 %v3405, %v3627
      %v3629 = vpop.f32.mrb[0].mxu0
      %3630 = vmatprep.mubr.f32.mxu0 0.0
      %v3631 = vand.u32 %v2551, 4294901760
      %3632 = vmatmul.mubr.f32.gmra.mrb[0].mxu0 %v3631
      %v3633 = vpop.f32.mrb[0].mxu0
      %v3634 = vadd.f32 %v3413, %v3633
      %v3635 = vpop.f32.mrb[0].mxu0
      %3636 = vmatprep.mubr.f32.mxu0 0.0
      %v3637 = vand.u32 %v2553, 4294901760
      %3638 = vmatmul.mubr.f32.gmra.mrb[0].mxu0 %v3637
      %v3639 = vpop.f32.mrb[0].mxu0
      %v3640 = vadd.f32 %v3421, %v3639
      %v3641 = vpop.f32.mrb[0].mxu0
      %3642 = vmatprep.mubr.f32.mxu0 0.0
      %v3643 = vand.u32 %v2555, 4294901760
      %3644 = vmatmul.mubr.f32.gmra.mrb[0].mxu0 %v3643
      %v3645 = vpop.f32.mrb[0].mxu0
      %v3646 = vadd.f32 %v3429, %v3645
      %v3647 = vpop.f32.mrb[0].mxu0
      %3648 = vmatprep.mubr.f32.mxu0 0.0
      %v3649 = vand.u32 %v2557, 4294901760
      %3650 = vmatmul.mubr.f32.gmra.mrb[0].mxu0 %v3649
      %v3651 = vpop.f32.mrb[0].mxu0
      %v3652 = vadd.f32 %v3437, %v3651
      %v3653 = vpop.f32.mrb[0].mxu0
      %3654 = vmatprep.mubr.f32.mxu0 0.0
      %v3655 = vand.u32 %v2559, 4294901760
      %3656 = vmatmul.mubr.f32.gmra.mrb[0].mxu0 %v3655
      %v3657 = vpop.f32.mrb[0].mxu0
      %v3658 = vadd.f32 %v3445, %v3657
      %v3659 = vpop.f32.mrb[0].mxu0
      %3660 = vmatprep.mubr.f32.mxu0 0.0
      %v3661 = vand.u32 %v2561, 4294901760
      %3662 = vmatmul.mubr.f32.gmra.mrb[0].mxu0 %v3661
      %v3663 = vpop.f32.mrb[0].mxu0
      %v3664 = vadd.f32 %v3453, %v3663
      %v3665 = vpop.f32.mrb[0].mxu0
      %3666 = vmatprep.mubr.f32.mxu0 0.0
      %v3667 = vand.u32 %v2563, 4294901760
      %3668 = vmatmul.mubr.f32.gmra.mrb[0].mxu0 %v3667
      %v3669 = vpop.f32.mrb[0].mxu0
      %v3670 = vadd.f32 %v3461, %v3669
      %v3671 = vpop.f32.mrb[0].mxu0
      %3672 = vdwg.mxu0
      %3673 = vmatprep.subr.mxu0 0.0
      %v3674 = vand.u32 %v158, 4294901760
      %3675 = vmatpush1.msra.mxu0 %v3674
      %3676 = vmatprep.subr.mxu0 0.0
      %v3677 = vand.u32 %v159, 4294901760
      %3678 = vmatpush1.msra.mxu0 %v3677
      %3679 = vmatprep.subr.mxu0 0.0
      %v3680 = vand.u32 %v160, 4294901760
      %3681 = vmatpush1.msra.mxu0 %v3680
      %3682 = vmatprep.subr.mxu0 0.0
      %v3683 = vand.u32 %v161, 4294901760
      %3684 = vmatpush1.msra.mxu0 %v3683
      %3685 = vmatprep.subr.mxu0 0.0
      %v3686 = vand.u32 %v162, 4294901760
      %3687 = vmatpush1.msra.mxu0 %v3686
      %3688 = vmatprep.subr.mxu0 0.0
      %v3689 = vand.u32 %v163, 4294901760
      %3690 = vmatpush1.msra.mxu0 %v3689
      %3691 = vmatprep.subr.mxu0 0.0
      %v3692 = vand.u32 %v164, 4294901760
      %3693 = vmatpush1.msra.mxu0 %v3692
      %3694 = vmatprep.subr.mxu0 0.0
      %v3695 = vand.u32 %v165, 4294901760
      %3696 = vmatpush1.msra.mxu0 %v3695
      %3697 = vmatprep.subr.mxu0 0.0
      %v3698 = vand.u32 %v166, 4294901760
      %3699 = vmatpush1.msra.mxu0 %v3698
      %3700 = vmatprep.subr.mxu0 0.0
      %v3701 = vand.u32 %v167, 4294901760
      %3702 = vmatpush1.msra.mxu0 %v3701
      %3703 = vmatprep.subr.mxu0 0.0
      %v3704 = vand.u32 %v168, 4294901760
      %3705 = vmatpush1.msra.mxu0 %v3704
      %3706 = vmatprep.subr.mxu0 0.0
      %v3707 = vand.u32 %v169, 4294901760
      %3708 = vmatpush1.msra.mxu0 %v3707
      %3709 = vmatprep.subr.mxu0 0.0
      %v3710 = vand.u32 %v170, 4294901760
      %3711 = vmatpush1.msra.mxu0 %v3710
      %3712 = vmatprep.subr.mxu0 0.0
      %v3713 = vand.u32 %v171, 4294901760
      %3714 = vmatpush1.msra.mxu0 %v3713
      %3715 = vmatprep.subr.mxu0 0.0
      %v3716 = vand.u32 %v172, 4294901760
      %3717 = vmatpush1.msra.mxu0 %v3716
      %3718 = vmatprep.subr.mxu0 0.0
      %v3719 = vand.u32 %v173, 4294901760
      %3720 = vmatpush1.msra.mxu0 %v3719
      %3721 = vmatprep.subr.mxu0 0.0
      %3722 = vmatpush1.msra.mxu0 0.0
      %3723 = vmatprep.subr.mxu0 0.0
      %3724 = vmatpush1.msra.mxu0 0.0
      %3725 = vmatprep.subr.mxu0 0.0
      %3726 = vmatpush1.msra.mxu0 0.0
      %3727 = vmatprep.subr.mxu0 0.0
      %3728 = vmatpush1.msra.mxu0 0.0
      %3729 = vmatprep.subr.mxu0 0.0
      %3730 = vmatpush1.msra.mxu0 0.0
      %3731 = vmatprep.subr.mxu0 0.0
      %3732 = vmatpush1.msra.mxu0 0.0
      %3733 = vmatprep.subr.mxu0 0.0
      %3734 = vmatpush1.msra.mxu0 0.0
      %3735 = vmatprep.subr.mxu0 0.0
      %3736 = vmatpush1.msra.mxu0 0.0
      %3737 = vmatprep.subr.mxu0 0.0
      %3738 = vmatpush1.msra.mxu0 0.0
      %3739 = vmatprep.subr.mxu0 0.0
      %3740 = vmatpush1.msra.mxu0 0.0
      %3741 = vmatprep.subr.mxu0 0.0
      %3742 = vmatpush1.msra.mxu0 0.0
      %3743 = vmatprep.subr.mxu0 0.0
      %3744 = vmatpush1.msra.mxu0 0.0
      %3745 = vmatprep.subr.mxu0 0.0
      %3746 = vmatpush1.msra.mxu0 0.0
      %3747 = vmatprep.subr.mxu0 0.0
      %3748 = vmatpush1.msra.mxu0 0.0
      %3749 = vmatprep.subr.mxu0 0.0
      %3750 = vmatpush1.msra.mxu0 0.0
      %3751 = vmatprep.subr.mxu0 0.0
      %3752 = vmatpush1.msra.mxu0 0.0
      %3753 = vmatprep.mubr.f32.mxu0 0.0
      %v3754 = vand.u32 %v2533, 4294901760
      %3755 = vmatmul.mubr.f32.gmra.mrb[0].mxu0 %v3754
      %v3756 = vpop.f32.mrb[0].mxu0
      %v3757 = vadd.f32 %v3580, %v3756
      %v3758 = vpop.f32.mrb[0].mxu0
      %3759 = vmatprep.mubr.f32.mxu0 0.0
      %v3760 = vand.u32 %v2535, 4294901760
      %3761 = vmatmul.mubr.f32.gmra.mrb[0].mxu0 %v3760
      %v3762 = vpop.f32.mrb[0].mxu0
      %v3763 = vadd.f32 %v3586, %v3762
      %v3764 = vpop.f32.mrb[0].mxu0
      %3765 = vmatprep.mubr.f32.mxu0 0.0
      %v3766 = vand.u32 %v2537, 4294901760
      %3767 = vmatmul.mubr.f32.gmra.mrb[0].mxu0 %v3766
      %v3768 = vpop.f32.mrb[0].mxu0
      %v3769 = vadd.f32 %v3592, %v3768
      %v3770 = vpop.f32.mrb[0].mxu0
      %3771 = vmatprep.mubr.f32.mxu0 0.0
      %v3772 = vand.u32 %v2539, 4294901760
      %3773 = vmatmul.mubr.f32.gmra.mrb[0].mxu0 %v3772
      %v3774 = vpop.f32.mrb[0].mxu0
      %v3775 = vadd.f32 %v3598, %v3774
      %v3776 = vpop.f32.mrb[0].mxu0
      %3777 = vmatprep.mubr.f32.mxu0 0.0
      %v3778 = vand.u32 %v2541, 4294901760
      %3779 = vmatmul.mubr.f32.gmra.mrb[0].mxu0 %v3778
      %v3780 = vpop.f32.mrb[0].mxu0
      %v3781 = vadd.f32 %v3604, %v3780
      %v3782 = vpop.f32.mrb[0].mxu0
      %3783 = vmatprep.mubr.f32.mxu0 0.0
      %v3784 = vand.u32 %v2543, 4294901760
      %3785 = vmatmul.mubr.f32.gmra.mrb[0].mxu0 %v3784
      %v3786 = vpop.f32.mrb[0].mxu0
      %v3787 = vadd.f32 %v3610, %v3786
      %v3788 = vpop.f32.mrb[0].mxu0
      %3789 = vmatprep.mubr.f32.mxu0 0.0
      %v3790 = vand.u32 %v2545, 4294901760
      %3791 = vmatmul.mubr.f32.gmra.mrb[0].mxu0 %v3790
      %v3792 = vpop.f32.mrb[0].mxu0
      %v3793 = vadd.f32 %v3616, %v3792
      %v3794 = vpop.f32.mrb[0].mxu0
      %3795 = vmatprep.mubr.f32.mxu0 0.0
      %v3796 = vand.u32 %v2547, 4294901760
      %3797 = vmatmul.mubr.f32.gmra.mrb[0].mxu0 %v3796
      %v3798 = vpop.f32.mrb[0].mxu0
      %v3799 = vadd.f32 %v3622, %v3798
      %v3800 = vpop.f32.mrb[0].mxu0
      %3801 = vmatprep.mubr.f32.mxu0 0.0
      %v3802 = vand.u32 %v2549, 4294901760
      %3803 = vmatmul.mubr.f32.gmra.mrb[0].mxu0 %v3802
      %v3804 = vpop.f32.mrb[0].mxu0
      %v3805 = vadd.f32 %v3628, %v3804
      %v3806 = vpop.f32.mrb[0].mxu0
      %3807 = vmatprep.mubr.f32.mxu0 0.0
      %v3808 = vand.u32 %v2551, 4294901760
      %3809 = vmatmul.mubr.f32.gmra.mrb[0].mxu0 %v3808
      %v3810 = vpop.f32.mrb[0].mxu0
      %v3811 = vadd.f32 %v3634, %v3810
      %v3812 = vpop.f32.mrb[0].mxu0
      %3813 = vmatprep.mubr.f32.mxu0 0.0
      %v3814 = vand.u32 %v2553, 4294901760
      %3815 = vmatmul.mubr.f32.gmra.mrb[0].mxu0 %v3814
      %v3816 = vpop.f32.mrb[0].mxu0
      %v3817 = vadd.f32 %v3640, %v3816
      %v3818 = vpop.f32.mrb[0].mxu0
      %3819 = vmatprep.mubr.f32.mxu0 0.0
      %v3820 = vand.u32 %v2555, 4294901760
      %3821 = vmatmul.mubr.f32.gmra.mrb[0].mxu0 %v3820
      %v3822 = vpop.f32.mrb[0].mxu0
      %v3823 = vadd.f32 %v3646, %v3822
      %v3824 = vpop.f32.mrb[0].mxu0
      %3825 = vmatprep.mubr.f32.mxu0 0.0
      %v3826 = vand.u32 %v2557, 4294901760
      %3827 = vmatmul.mubr.f32.gmra.mrb[0].mxu0 %v3826
      %v3828 = vpop.f32.mrb[0].mxu0
      %v3829 = vadd.f32 %v3652, %v3828
      %v3830 = vpop.f32.mrb[0].mxu0
      %3831 = vmatprep.mubr.f32.mxu0 0.0
      %v3832 = vand.u32 %v2559, 4294901760
      %3833 = vmatmul.mubr.f32.gmra.mrb[0].mxu0 %v3832
      %v3834 = vpop.f32.mrb[0].mxu0
      %v3835 = vadd.f32 %v3658, %v3834
      %v3836 = vpop.f32.mrb[0].mxu0
      %3837 = vmatprep.mubr.f32.mxu0 0.0
      %v3838 = vand.u32 %v2561, 4294901760
      %3839 = vmatmul.mubr.f32.gmra.mrb[0].mxu0 %v3838
      %v3840 = vpop.f32.mrb[0].mxu0
      %v3841 = vadd.f32 %v3664, %v3840
      %v3842 = vpop.f32.mrb[0].mxu0
      %3843 = vmatprep.mubr.f32.mxu0 0.0
      %v3844 = vand.u32 %v2563, 4294901760
      %3845 = vmatmul.mubr.f32.gmra.mrb[0].mxu0 %v3844
      %v3846 = vpop.f32.mrb[0].mxu0
      %v3847 = vadd.f32 %v3670, %v3846
      %v3848 = vpop.f32.mrb[0].mxu0
      %3849 = vdwg.mxu0
      %v3850 = vmul.f32 %v3757, 128.0
      %v3851 = vmul.f32 %v3763, 128.0
      %v3852 = vmul.f32 %v3769, 128.0
      %v3853 = vmul.f32 %v3775, 128.0
      %v3854 = vmul.f32 %v3781, 128.0
      %v3855 = vmul.f32 %v3787, 128.0
      %v3856 = vmul.f32 %v3793, 128.0
      %v3857 = vmul.f32 %v3799, 128.0
      %v3858 = vmul.f32 %v3805, 128.0
      %v3859 = vmul.f32 %v3811, 128.0
      %v3860 = vmul.f32 %v3817, 128.0
      %v3861 = vmul.f32 %v3823, 128.0
      %v3862 = vmul.f32 %v3829, 128.0
      %v3863 = vmul.f32 %v3835, 128.0
      %v3864 = vmul.f32 %v3841, 128.0
      %v3865 = vmul.f32 %v3847, 128.0
      %3866 = vst.msk [vmem:[%s157] sm:$0xff] %vm189, %v3850
      %3867 = vst.msk [vmem:[%s157 + $0x8] sm:$0xff] %vm189, %v3851
      %3868 = vst.msk [vmem:[%s157 + $0x10] sm:$0xff] %vm189, %v3852
      %3869 = vst.msk [vmem:[%s157 + $0x18] sm:$0xff] %vm189, %v3853
      %3870 = vst.msk [vmem:[%s157 + $0x20] sm:$0xff] %vm189, %v3854
      %3871 = vst.msk [vmem:[%s157 + $0x28] sm:$0xff] %vm189, %v3855
      %3872 = vst.msk [vmem:[%s157 + $0x30] sm:$0xff] %vm189, %v3856
      %3873 = vst.msk [vmem:[%s157 + $0x38] sm:$0xff] %vm189, %v3857
      %3874 = vst.msk [vmem:[%s157 + $0x40] sm:$0xff] %vm189, %v3858
      %3875 = vst.msk [vmem:[%s157 + $0x48] sm:$0xff] %vm189, %v3859
      %3876 = vst.msk [vmem:[%s157 + $0x50] sm:$0xff] %vm189, %v3860
      %3877 = vst.msk [vmem:[%s157 + $0x58] sm:$0xff] %vm189, %v3861
      %3878 = vst.msk [vmem:[%s157 + $0x60] sm:$0xff] %vm189, %v3862
      %3879 = vst.msk [vmem:[%s157 + $0x68] sm:$0xff] %vm189, %v3863
      %3880 = vst.msk [vmem:[%s157 + $0x70] sm:$0xff] %vm189, %v3864
      %3881 = vst.msk [vmem:[%s157 + $0x78] sm:$0xff] %vm189, %v3865
      %p3882 = scmp.lt.s32.totalorder %s13, 1
      %s3883 = scalar_select %p3882, %s13, 1
      %s3884 = smul.addr %s3883, 16
      %s3885 = smul.addr %s3884, 8
      %s3886 = scalar_lea.vmem %s2, %s3885
      // Predicated region
      $region36: #{tpu_custom_call.1} parent=27 // pred_check
        %p3887 = pneg %p83
      $region37: #{tpu_custom_call.1} parent=27 // pred_check_branch
        %3889 = sbr.rel (%p3887) target = $region39
      $region38: #{tpu_custom_call.1} parent=27 // pred_region
        _
      $region39: #{tpu_custom_call.1} parent=27 // pred_fallthru
        _
    $region28: #{tpu_custom_call.1} parent=5 // pred_fallthru
      _
    %p3890 = scmp.le.s32.totalorder 2, %s8
    // Predicated region
    $region40: #{tpu_custom_call.1} parent=5 // pred_check
      %p3891 = pneg %p3890
    $region41: #{tpu_custom_call.1} parent=5 // pred_check_branch
      %3893 = sbr.rel (%p3891) target = $region43
    $region42: #{tpu_custom_call.1} parent=5 // pred_region
      %s3894 = ssub.s32 %s8, 2
      // Predicated region
      $region44: #{tpu_custom_call.1} parent=42 // pred_check
        %p3895 = pneg %p89
      $region45: #{tpu_custom_call.1} parent=42 // pred_check_branch
        %3897 = sbr.rel (%p3895) target = $region47
      $region46: #{tpu_custom_call.1} parent=42 // pred_region
        %p3898 = scmp.lt.s32.totalorder %s14, 1
        %s3899 = scalar_select %p3898, %s14, 1
        %s3900 = smul.addr %s3899, 16
        %s3901 = smul.addr %s3900, 8
        %s3902 = scalar_lea.vmem %s2, %s3901
      $region47: #{tpu_custom_call.1} parent=42 // pred_fallthru
        _
    $region43: #{tpu_custom_call.1} parent=5 // pred_fallthru
      _
  $region6: #{tpu_custom_call.1} parent=0 // loop_footer
    %s12 = sadd.s32 1, %s8
  $region7: #{tpu_custom_call.1} parent=0 // loop_footer_branch
    %7 = sbr.rel target = $region3
  $region8: #{tpu_custom_call.1} parent=0 // loop_exit
    _

</llo_original>
